<compile_context>
chip_gen: v6e
topology: v6e:2x2x1
jax: 0.10.0
libtpu: 0.0.40
codegen_flags: <defaults>
</compile_context>

<pallas_src>
import jax
import jax.numpy as jnp
import numpy as np
from jax.experimental import pallas as pl
from jax.experimental.pallas import tpu as pltpu


# ----------------------------------------------------------------------------
# Pallas kernel: one block of TB timesteps per grid iteration.
# ----------------------------------------------------------------------------
def avsr_kernel(patches_ref, audio_ref,
                wconv_ref, bconv_ref,
                wvp_ref, bvp_ref,
                waud_ref, baud_ref,
                wfusv_ref, wfusa_ref, bfus_ref,
                out_ref):
    tb = audio_ref.shape[0]                 # timesteps in this grid block
    hw = patches_ref.shape[0] // tb         # pixels per frame

    # ---- video frontend -----------------------------------------------------
    # Conv2d(3x3, pad=1) for all TB frames as ONE long-M bf16 MXU matmul
    # (im2col rows for every (frame, pixel) stacked along M), f32 accumulate.
    conv = jnp.dot(patches_ref[...], wconv_ref[...],
                   preferred_element_type=jnp.float32)               # (TB*HW, F)
    conv = jnp.maximum(conv + bconv_ref[...], 0.0)                   # bias + ReLU (f32 VPU)

    # Per-frame global average pool as a block-diagonal matmul so the reduction
    # rides the (otherwise idle) MXU instead of a sublane XLU reduction chain.
    rows = jax.lax.broadcasted_iota(jnp.int32, (tb, tb * hw), 0)
    cols = jax.lax.broadcasted_iota(jnp.int32, (tb, tb * hw), 1)
    in_frame = (cols >= rows * hw) & (cols < (rows + 1) * hw)
    pool = jnp.where(in_frame, 1.0 / hw, 0.0)                        # (TB, TB*HW) f32
    pooled = jnp.dot(pool, conv, preferred_element_type=jnp.float32)  # (TB, F)

    vfeat = jnp.dot(pooled, wvp_ref[...],
                    preferred_element_type=jnp.float32) + bvp_ref[...]   # (TB, D)

    # ---- audio frontend: Linear + ReLU --------------------------------------
    afeat = jnp.dot(audio_ref[...], waud_ref[...],
                    preferred_element_type=jnp.float32) + baud_ref[...]
    afeat = jnp.maximum(afeat, 0.0)                                      # (TB, D)

    # ---- fusion: Linear(cat([video, audio], -1)) without an in-kernel concat -
    #   cat([v, a], -1) @ W_fus == v @ W_fus[:D] + a @ W_fus[D:]
    out_ref[...] = (jnp.dot(vfeat, wfusv_ref[...], preferred_element_type=jnp.float32)
                    + jnp.dot(afeat, wfusa_ref[...], preferred_element_type=jnp.float32)
                    + bfus_ref[...])                                     # (TB, O_pad) lane-dense


# ----------------------------------------------------------------------------
# Host glue: im2col for 3x3 / pad=1 / stride=1 conv (matches PyTorch Conv2d NCHW).
# ----------------------------------------------------------------------------
def im2col_3x3(video):
    B, T, C, H, W = video.shape
    x = video.reshape(B * T, C, H, W)
    xp = jnp.pad(x, ((0, 0), (0, 0), (1, 1), (1, 1)))
    wins = [xp[:, :, kh:kh + H, kw:kw + W] for kh in range(3) for kw in range(3)]
    patches = jnp.stack(wins, axis=2)                    # (BT, C, 9, H, W)
    patches = patches.transpose(0, 3, 4, 1, 2)           # (BT, H, W, C, 9)
    return patches.reshape(B * T, H * W, C * 9)          # feature order: c*9 + kh*3 + kw


def init_params(key, C, A, F, D, O):
    ks = jax.random.split(key, 8)
    s = 0.1
    return {
        "w_conv": jax.random.normal(ks[0], (F, C, 3, 3), jnp.float32) * s,  # OIHW
        "b_conv": jax.random.normal(ks[1], (F,), jnp.float32) * s,
        "w_vp":   jax.random.normal(ks[2], (F, D), jnp.float32) * s,
        "b_vp":   jax.random.normal(ks[3], (D,), jnp.float32) * s,
        "w_aud":  jax.random.normal(ks[4], (A, D), jnp.float32) * s,
        "b_aud":  jax.random.normal(ks[5], (D,), jnp.float32) * s,
        "w_fus":  jax.random.normal(ks[6], (2 * D, O), jnp.float32) * s,
        "b_fus":  jax.random.normal(ks[7], (O,), jnp.float32) * s,
    }


def avsr_forward(audio, video, params, *, num_blocks=2):
    B, T, A = audio.shape
    _, _, C, H, W = video.shape
    F = params["w_conv"].shape[0]
    D = params["w_vp"].shape[1]
    O = params["w_fus"].shape[1]
    BT, HW, P = B * T, H * W, C * 9

    if BT % num_blocks != 0:
        num_blocks = 1
    TB = BT // num_blocks
    assert (TB * HW) % 8 == 0, "rows per block must be sublane-aligned"

    # Pad the fusion output axis to a multiple of 128 lanes -> unmasked stores.
    O_pad = ((O + 127) // 128) * 128

    # im2col on host, flatten (time, pixel) into one long M axis, bf16 to halve
    # the dominant HBM->VMEM traffic. Accumulation in-kernel stays f32.
    patches = im2col_3x3(video).reshape(BT * HW, P).astype(jnp.bfloat16)
    audio2 = audio.reshape(BT, A)

    # PyTorch Conv2d weight (F, C, KH, KW) -> im2col matmul weight (C*KH*KW, F)
    w_conv = params["w_conv"].reshape(F, P).T.astype(jnp.bfloat16)
    b_conv = params["b_conv"].reshape(1, F)
    w_vp, b_vp = params["w_vp"], params["b_vp"].reshape(1, D)
    w_aud, b_aud = params["w_aud"], params["b_aud"].reshape(1, D)
    # Split fusion weight so the kernel never concatenates; zero-pad to O_pad.
    w_fus_v = jnp.zeros((D, O_pad), jnp.float32).at[:, :O].set(params["w_fus"][:D])
    w_fus_a = jnp.zeros((D, O_pad), jnp.float32).at[:, :O].set(params["w_fus"][D:])
    b_fus = jnp.zeros((1, O_pad), jnp.float32).at[:, :O].set(params["b_fus"].reshape(1, O))

    out = pl.pallas_call(
        avsr_kernel,
        out_shape=jax.ShapeDtypeStruct((BT, O_pad), jnp.float32),
        grid_spec=pltpu.PrefetchScalarGridSpec(
            num_scalar_prefetch=0,
            grid=(num_blocks,),
            in_specs=[
                pl.BlockSpec((TB * HW, P), lambda i: (i, 0)),    # video im2col rows (bf16)
                pl.BlockSpec((TB, A), lambda i: (i, 0)),         # audio steps
                pl.BlockSpec((P, F), lambda i: (0, 0)),          # conv weight (bf16)
                pl.BlockSpec((1, F), lambda i: (0, 0)),          # conv bias
                pl.BlockSpec((F, D), lambda i: (0, 0)),          # video proj weight
                pl.BlockSpec((1, D), lambda i: (0, 0)),          # video proj bias
                pl.BlockSpec((A, D), lambda i: (0, 0)),          # audio weight
                pl.BlockSpec((1, D), lambda i: (0, 0)),          # audio bias
                pl.BlockSpec((D, O_pad), lambda i: (0, 0)),      # fusion weight (video half)
                pl.BlockSpec((D, O_pad), lambda i: (0, 0)),      # fusion weight (audio half)
                pl.BlockSpec((1, O_pad), lambda i: (0, 0)),      # fusion bias (padded)
            ],
            out_specs=pl.BlockSpec((TB, O_pad), lambda i: (i, 0)),
        ),
        compiler_params=pltpu.CompilerParams(
            dimension_semantics=("parallel",)),
    )(patches, audio2, w_conv, b_conv, w_vp, b_vp,
      w_aud, b_aud, w_fus_v, w_fus_a, b_fus)
    return out[:, :O].reshape(B, T, O)


# ----------------------------------------------------------------------------
# Pure-JAX f32 reference (mirrors the PyTorch forward semantics exactly).
# ----------------------------------------------------------------------------
def avsr_reference(audio, video, params):
    B, T, A = audio.shape
    _, _, C, H, W = video.shape
    x = video.reshape(B * T, C, H, W)
    conv = jax.lax.conv_general_dilated(
        x, params["w_conv"], window_strides=(1, 1), padding="SAME",
        dimension_numbers=("NCHW", "OIHW", "NCHW"))
    conv = jax.nn.relu(conv + params["b_conv"][None, :, None, None])
    pooled = conv.mean(axis=(2, 3))                                      # (BT, F)
    vfeat = pooled @ params["w_vp"] + params["b_vp"]                     # video_features
    afeat = jax.nn.relu(audio.reshape(B * T, A) @ params["w_aud"]
                        + params["b_aud"])                               # audio_features
    fused = jnp.concatenate([vfeat, afeat], axis=-1)                     # torch.cat(..., dim=-1)
    out = fused @ params["w_fus"] + params["b_fus"]                      # fusion(...)
    return out.reshape(B, T, -1)


if __name__ == "__main__":
    # TODO(synk): the real tutorial submodules (Emformer RNN-T streaming model and
    # beam-search decoder in `self.model`, which forward() never calls) have no
    # compact Pallas form; synthetic frontends/fusion above keep the wrapper shape.
    B, T, C, H, W = 2, 8, 4, 16, 16   # video: (B, T, C, H, W)  NCHW frames
    A, F, D, O = 32, 8, 32, 64        # audio dim, conv ch, feature dim, fusion out

    key = jax.random.PRNGKey(0)
    k_a, k_v, k_p = jax.random.split(key, 3)
    audio = jax.random.normal(k_a, (B, T, A), jnp.float32)
    video = jax.random.normal(k_v, (B, T, C, H, W), jnp.float32)
    params = init_params(k_p, C, A, F, D, O)

    fwd = jax.jit(avsr_forward)       # fuse host-side im2col/padding with the call
    out = jax.block_until_ready(fwd(audio, video, params))
    ref = jax.block_until_ready(avsr_reference(audio, video, params))

    # Tolerance allows for bf16 quantization of the conv im2col inputs/weights
    # (measured deviation ~1e-4; f32 accumulation everywhere).
    np.testing.assert_allclose(np.asarray(out), np.asarray(ref),
                               rtol=2e-3, atol=2e-3)
    print("KERNEL_OK")
</pallas_src>

<mosaic_0001>
module attributes {stable_mosaic.version = 11 : i64} {
  func.func @avsr_kernel(%arg0: i32, %arg1: memref<2048x36xbf16, #tpu.memory_space<vmem>>, %arg2: memref<8x32xf32, #tpu.memory_space<vmem>>, %arg3: memref<36x8xbf16, #tpu.memory_space<vmem>>, %arg4: memref<1x8xf32, #tpu.memory_space<vmem>>, %arg5: memref<8x32xf32, #tpu.memory_space<vmem>>, %arg6: memref<1x32xf32, #tpu.memory_space<vmem>>, %arg7: memref<32x32xf32, #tpu.memory_space<vmem>>, %arg8: memref<1x32xf32, #tpu.memory_space<vmem>>, %arg9: memref<32x128xf32, #tpu.memory_space<vmem>>, %arg10: memref<32x128xf32, #tpu.memory_space<vmem>>, %arg11: memref<1x128xf32, #tpu.memory_space<vmem>>, %arg12: memref<8x128xf32, #tpu.memory_space<vmem>>) attributes {dimension_semantics = [#tpu.dimension_semantics<parallel>], iteration_bounds = array<i64: 2>, scalar_prefetch = 0 : i64, scratch_operands = 0 : i64, tpu.core_type = #tpu.core_type<tc>, window_params = [{transform_indices = @transform_0, window_bounds = array<i64: 2048, 36>}, {transform_indices = @transform_1, window_bounds = array<i64: 8, 32>}, {pipeline_mode = #tpu.pipeline_mode<synchronous>, transform_indices = @transform_2, window_bounds = array<i64: 36, 8>}, {pipeline_mode = #tpu.pipeline_mode<synchronous>, transform_indices = @transform_3, window_bounds = array<i64: 1, 8>}, {pipeline_mode = #tpu.pipeline_mode<synchronous>, transform_indices = @transform_4, window_bounds = array<i64: 8, 32>}, {pipeline_mode = #tpu.pipeline_mode<synchronous>, transform_indices = @transform_5, window_bounds = array<i64: 1, 32>}, {pipeline_mode = #tpu.pipeline_mode<synchronous>, transform_indices = @transform_6, window_bounds = array<i64: 32, 32>}, {pipeline_mode = #tpu.pipeline_mode<synchronous>, transform_indices = @transform_7, window_bounds = array<i64: 1, 32>}, {pipeline_mode = #tpu.pipeline_mode<synchronous>, transform_indices = @transform_8, window_bounds = array<i64: 32, 128>}, {pipeline_mode = #tpu.pipeline_mode<synchronous>, transform_indices = @transform_9, window_bounds = array<i64: 32, 128>}, {pipeline_mode = #tpu.pipeline_mode<synchronous>, transform_indices = @transform_10, window_bounds = array<i64: 1, 128>}, {transform_indices = @transform_11, window_bounds = array<i64: 8, 128>}]} {
    %c0 = arith.constant 0 : index
    %c0_0 = arith.constant 0 : index
    %0 = vector.load %arg1[%c0, %c0_0] : memref<2048x36xbf16, #tpu.memory_space<vmem>>, vector<2048x36xbf16>
    %c0_1 = arith.constant 0 : index
    %c0_2 = arith.constant 0 : index
    %1 = vector.load %arg3[%c0_1, %c0_2] : memref<36x8xbf16, #tpu.memory_space<vmem>>, vector<36x8xbf16>
    %cst = arith.constant dense<0.000000e+00> : vector<2048x8xf32>
    %2 = tpu.matmul %0, %1, %cst {dimension_numbers = #tpu.dot_dimension_numbers<[1], [0], [0], [1], [0, 0, 1, 1], [], []>} : vector<2048x36xbf16>, vector<36x8xbf16>, vector<2048x8xf32> -> vector<2048x8xf32>
    %c0_3 = arith.constant 0 : index
    %c0_4 = arith.constant 0 : index
    %3 = vector.load %arg4[%c0_3, %c0_4] : memref<1x8xf32, #tpu.memory_space<vmem>>, vector<1x8xf32>
    %4 = vector.broadcast %3 : vector<1x8xf32> to vector<2048x8xf32>
    %5 = arith.addf %2, %4 : vector<2048x8xf32>
    %cst_5 = arith.constant 0.000000e+00 : f32
    %6 = vector.broadcast %cst_5 : f32 to vector<2048x8xf32>
    %7 = arith.maximumf %5, %6 : vector<2048x8xf32>
    %8 = tpu.iota {dimensions = array<i32: 0>} : vector<8x2048xi32>
    %9 = tpu.iota {dimensions = array<i32: 1>} : vector<8x2048xi32>
    %c256_i32 = arith.constant 256 : i32
    %10 = vector.broadcast %c256_i32 : i32 to vector<8x2048xi32>
    %11 = arith.muli %8, %10 : vector<8x2048xi32>
    %12 = arith.cmpi sge, %9, %11 : vector<8x2048xi32>
    %c1_i32 = arith.constant 1 : i32
    %13 = vector.broadcast %c1_i32 : i32 to vector<8x2048xi32>
    %14 = arith.addi %8, %13 : vector<8x2048xi32>
    %c256_i32_6 = arith.constant 256 : i32
    %15 = vector.broadcast %c256_i32_6 : i32 to vector<8x2048xi32>
    %16 = arith.muli %14, %15 : vector<8x2048xi32>
    %17 = arith.cmpi slt, %9, %16 : vector<8x2048xi32>
    %18 = arith.andi %12, %17 : vector<8x2048xi1>
    %cst_7 = arith.constant 3.906250e-03 : f32
    %cst_8 = arith.constant 0.000000e+00 : f32
    %19 = vector.broadcast %cst_7 : f32 to vector<8x2048xf32>
    %20 = vector.broadcast %cst_8 : f32 to vector<8x2048xf32>
    %21 = arith.select %18, %19, %20 : vector<8x2048xi1>, vector<8x2048xf32>
    %cst_9 = arith.constant dense<0.000000e+00> : vector<8x8xf32>
    %22 = tpu.matmul %21, %7, %cst_9 {dimension_numbers = #tpu.dot_dimension_numbers<[1], [0], [0], [1], [0, 0, 1, 1], [], []>} : vector<8x2048xf32>, vector<2048x8xf32>, vector<8x8xf32> -> vector<8x8xf32>
    %c0_10 = arith.constant 0 : index
    %c0_11 = arith.constant 0 : index
    %23 = vector.load %arg5[%c0_10, %c0_11] : memref<8x32xf32, #tpu.memory_space<vmem>>, vector<8x32xf32>
    %cst_12 = arith.constant dense<0.000000e+00> : vector<8x32xf32>
    %24 = tpu.matmul %22, %23, %cst_12 {dimension_numbers = #tpu.dot_dimension_numbers<[1], [0], [0], [1], [0, 0, 1, 1], [], []>} : vector<8x8xf32>, vector<8x32xf32>, vector<8x32xf32> -> vector<8x32xf32>
    %c0_13 = arith.constant 0 : index
    %c0_14 = arith.constant 0 : index
    %25 = vector.load %arg6[%c0_13, %c0_14] : memref<1x32xf32, #tpu.memory_space<vmem>>, vector<1x32xf32>
    %26 = vector.broadcast %25 : vector<1x32xf32> to vector<8x32xf32>
    %27 = arith.addf %24, %26 : vector<8x32xf32>
    %c0_15 = arith.constant 0 : index
    %c0_16 = arith.constant 0 : index
    %28 = vector.load %arg2[%c0_15, %c0_16] : memref<8x32xf32, #tpu.memory_space<vmem>>, vector<8x32xf32>
    %c0_17 = arith.constant 0 : index
    %c0_18 = arith.constant 0 : index
    %29 = vector.load %arg7[%c0_17, %c0_18] : memref<32x32xf32, #tpu.memory_space<vmem>>, vector<32x32xf32>
    %cst_19 = arith.constant dense<0.000000e+00> : vector<8x32xf32>
    %30 = tpu.matmul %28, %29, %cst_19 {dimension_numbers = #tpu.dot_dimension_numbers<[1], [0], [0], [1], [0, 0, 1, 1], [], []>} : vector<8x32xf32>, vector<32x32xf32>, vector<8x32xf32> -> vector<8x32xf32>
    %c0_20 = arith.constant 0 : index
    %c0_21 = arith.constant 0 : index
    %31 = vector.load %arg8[%c0_20, %c0_21] : memref<1x32xf32, #tpu.memory_space<vmem>>, vector<1x32xf32>
    %32 = vector.broadcast %31 : vector<1x32xf32> to vector<8x32xf32>
    %33 = arith.addf %30, %32 : vector<8x32xf32>
    %cst_22 = arith.constant 0.000000e+00 : f32
    %34 = vector.broadcast %cst_22 : f32 to vector<8x32xf32>
    %35 = arith.maximumf %33, %34 : vector<8x32xf32>
    %c0_23 = arith.constant 0 : index
    %c0_24 = arith.constant 0 : index
    %36 = vector.load %arg9[%c0_23, %c0_24] : memref<32x128xf32, #tpu.memory_space<vmem>>, vector<32x128xf32>
    %cst_25 = arith.constant dense<0.000000e+00> : vector<8x128xf32>
    %37 = tpu.matmul %27, %36, %cst_25 {dimension_numbers = #tpu.dot_dimension_numbers<[1], [0], [0], [1], [0, 0, 1, 1], [], []>} : vector<8x32xf32>, vector<32x128xf32>, vector<8x128xf32> -> vector<8x128xf32>
    %c0_26 = arith.constant 0 : index
    %c0_27 = arith.constant 0 : index
    %38 = vector.load %arg10[%c0_26, %c0_27] : memref<32x128xf32, #tpu.memory_space<vmem>>, vector<32x128xf32>
    %cst_28 = arith.constant dense<0.000000e+00> : vector<8x128xf32>
    %39 = tpu.matmul %35, %38, %cst_28 {dimension_numbers = #tpu.dot_dimension_numbers<[1], [0], [0], [1], [0, 0, 1, 1], [], []>} : vector<8x32xf32>, vector<32x128xf32>, vector<8x128xf32> -> vector<8x128xf32>
    %40 = arith.addf %37, %39 : vector<8x128xf32>
    %c0_29 = arith.constant 0 : index
    %c0_30 = arith.constant 0 : index
    %41 = vector.load %arg11[%c0_29, %c0_30] : memref<1x128xf32, #tpu.memory_space<vmem>>, vector<1x128xf32>
    %42 = vector.broadcast %41 : vector<1x128xf32> to vector<8x128xf32>
    %43 = arith.addf %40, %42 : vector<8x128xf32>
    %c0_31 = arith.constant 0 : index
    %c0_32 = arith.constant 0 : index
    %44 = vector.load %arg12[%c0_31, %c0_32] : memref<8x128xf32, #tpu.memory_space<vmem>>, vector<8x128xf32>
    tpu.vector_store %arg12[%c0_31, %c0_32], %43 {strides = array<i32>} : memref<8x128xf32, #tpu.memory_space<vmem>>, vector<8x128xf32>,
    return
  }
  func.func @transform_0(%arg0: i32) -> (i32, i32) {
    %c0_i32 = arith.constant 0 : i32
    %c0_i32_0 = arith.constant 0 : i32
    return %arg0, %c0_i32 : i32, i32
  }
  func.func @transform_1(%arg0: i32) -> (i32, i32) {
    %c0_i32 = arith.constant 0 : i32
    %c0_i32_0 = arith.constant 0 : i32
    return %arg0, %c0_i32 : i32, i32
  }
  func.func @transform_2(%arg0: i32) -> (i32, i32) {
    %c0_i32 = arith.constant 0 : i32
    %c0_i32_0 = arith.constant 0 : i32
    %c0_i32_1 = arith.constant 0 : i32
    return %c0_i32, %c0_i32_0 : i32, i32
  }
  func.func @transform_3(%arg0: i32) -> (i32, i32) {
    %c0_i32 = arith.constant 0 : i32
    %c0_i32_0 = arith.constant 0 : i32
    %c0_i32_1 = arith.constant 0 : i32
    return %c0_i32, %c0_i32_0 : i32, i32
  }
  func.func @transform_4(%arg0: i32) -> (i32, i32) {
    %c0_i32 = arith.constant 0 : i32
    %c0_i32_0 = arith.constant 0 : i32
    %c0_i32_1 = arith.constant 0 : i32
    return %c0_i32, %c0_i32_0 : i32, i32
  }
  func.func @transform_5(%arg0: i32) -> (i32, i32) {
    %c0_i32 = arith.constant 0 : i32
    %c0_i32_0 = arith.constant 0 : i32
    %c0_i32_1 = arith.constant 0 : i32
    return %c0_i32, %c0_i32_0 : i32, i32
  }
  func.func @transform_6(%arg0: i32) -> (i32, i32) {
    %c0_i32 = arith.constant 0 : i32
    %c0_i32_0 = arith.constant 0 : i32
    %c0_i32_1 = arith.constant 0 : i32
    return %c0_i32, %c0_i32_0 : i32, i32
  }
  func.func @transform_7(%arg0: i32) -> (i32, i32) {
    %c0_i32 = arith.constant 0 : i32
    %c0_i32_0 = arith.constant 0 : i32
    %c0_i32_1 = arith.constant 0 : i32
    return %c0_i32, %c0_i32_0 : i32, i32
  }
  func.func @transform_8(%arg0: i32) -> (i32, i32) {
    %c0_i32 = arith.constant 0 : i32
    %c0_i32_0 = arith.constant 0 : i32
    %c0_i32_1 = arith.constant 0 : i32
    return %c0_i32, %c0_i32_0 : i32, i32
  }
  func.func @transform_9(%arg0: i32) -> (i32, i32) {
    %c0_i32 = arith.constant 0 : i32
    %c0_i32_0 = arith.constant 0 : i32
    %c0_i32_1 = arith.constant 0 : i32
    return %c0_i32, %c0_i32_0 : i32, i32
  }
  func.func @transform_10(%arg0: i32) -> (i32, i32) {
    %c0_i32 = arith.constant 0 : i32
    %c0_i32_0 = arith.constant 0 : i32
    %c0_i32_1 = arith.constant 0 : i32
    return %c0_i32, %c0_i32_0 : i32, i32
  }
  func.func @transform_11(%arg0: i32) -> (i32, i32) {
    %c0_i32 = arith.constant 0 : i32
    %c0_i32_0 = arith.constant 0 : i32
    return %arg0, %c0_i32 : i32, i32
  }
}

</mosaic_0001>

<llo_original>
// kernel: avsr_forward.1
$region0: #{avsr_forward.1}
  #allocation0 [shape = 'u32[]', space=smem, size = 0x4, offset = 0x4, fixed_abs, tag = 'smem constant byte address 0x4 - core index']
  #allocation1 [shape = 'u32[144,128]{1,0:T(1,128)}', space=vmem, size = 0x12000, scoped, tag = 'internal scratch']
  %s0 = inlined_call_operand.vmem [shape: bf16[4096,36], index: 0, kind: input, shape index: {}]
  %s1 = inlined_call_operand.vmem [shape: f32[16,32], index: 1, kind: input, shape index: {}]
  %s2 = inlined_call_operand.vmem [shape: bf16[36,8], index: 2, kind: input, shape index: {}]
  %s3 = inlined_call_operand.vmem [shape: f32[1,8], index: 3, kind: input, shape index: {}]
  %s4 = inlined_call_operand.vmem [shape: f32[8,32], index: 4, kind: input, shape index: {}]
  %s5 = inlined_call_operand.vmem [shape: f32[1,32], index: 5, kind: input, shape index: {}]
  %s6 = inlined_call_operand.vmem [shape: f32[32,32], index: 6, kind: input, shape index: {}]
  %s7 = inlined_call_operand.vmem [shape: f32[1,32], index: 7, kind: input, shape index: {}]
  %s8 = inlined_call_operand.vmem [shape: f32[32,128], index: 8, kind: input, shape index: {}]
  %s9 = inlined_call_operand.vmem [shape: f32[32,128], index: 9, kind: input, shape index: {}]
  %s10 = inlined_call_operand.vmem [shape: f32[1,128], index: 10, kind: input, shape index: {}]
  %s11 = inlined_call_operand.vmem [shape: f32[16,128], index: 11, kind: output, shape index: {}]
  %s12 = sld [smem:[#allocation0]]
  $region77: #{avsr_forward.1} parent=0
    _
  %s14 = ssub.s32 1, %s12
  %s15 = scalar_select 0, %s14, %s12
  loop: start=0, step=1, limit=4
  $region2: #{avsr_forward.1} parent=0 // loop_pre_header
    _
  $region3: #{avsr_forward.1} parent=0 // loop_header
    %s17 = sphi 0, %s21
    %p18 = scmp.ge.s32.totalorder %s17, 4
    %s27 = sphi 0, %s29
    %s30 = sphi 0, %s27
    %s31 = sphi 0, %s30
    %s47 = sphi 0, %s31
    %s53 = sphi 0, %s55
    %s56 = sphi 0, %s53
    %s57 = sphi 0, %s56
    %s73 = sphi 0, %s57
    %s77 = sphi 0, %s77
    %s79 = sphi 0, %s77
    %s80 = sphi 0, %s79
    %s94 = sphi 0, %s80
    %s98 = sphi 0, %s98
    %s100 = sphi 0, %s98
    %s101 = sphi 0, %s100
    %s115 = sphi 0, %s101
    %s119 = sphi 0, %s119
    %s121 = sphi 0, %s119
    %s122 = sphi 0, %s121
    %s136 = sphi 0, %s122
    %s140 = sphi 0, %s140
    %s142 = sphi 0, %s140
    %s143 = sphi 0, %s142
    %s157 = sphi 0, %s143
    %s161 = sphi 0, %s161
    %s163 = sphi 0, %s161
    %s164 = sphi 0, %s163
    %s178 = sphi 0, %s164
    %s182 = sphi 0, %s182
    %s184 = sphi 0, %s182
    %s185 = sphi 0, %s184
    %s199 = sphi 0, %s185
    %s203 = sphi 0, %s203
    %s205 = sphi 0, %s203
    %s206 = sphi 0, %s205
    %s220 = sphi 0, %s206
    %s224 = sphi 0, %s224
    %s226 = sphi 0, %s224
    %s227 = sphi 0, %s226
    %s241 = sphi 0, %s227
    %s245 = sphi 0, %s245
    %s247 = sphi 0, %s245
    %s248 = sphi 0, %s247
    %s262 = sphi 0, %s248
    %s268 = sphi 0, %s270
    %s271 = sphi 0, %s268
    %s272 = sphi 0, %s271
    %s288 = sphi 0, %s272
  $region4: #{avsr_forward.1} parent=0 // loop_header_branch
    %20 = sbr.rel (%p18) target = $region8
  $region5: #{avsr_forward.1} parent=0 // loop_body
    %s22 = ssub.s32 %s17, 1
    %s23 = ssub.s32 %s17, 2
    %s24 = sadd.s32 %s17, 1
    %s25 = ssub.s32 %s17, %s24
    %p26 = scmp.eq.s32.totalorder %s25, 0
    %s28 = sadd.s32 %s27, 1
    %s29 = scalar_select %p26, %s27, %s28
    %p32 = pneg %p26
    %p33 = scmp.eq.s32.totalorder %s17, 1
    %p34 = por %p32, %p33
    %p35 = scmp.ne.s32.totalorder %s27, %s30
    %p36 = scmp.eq.s32.totalorder %s17, 0
    %p37 = por %p35, %p36
    %p38 = scmp.ne.s32.totalorder %s27, %s30
    %p39 = scmp.eq.s32.totalorder %s22, 1
    %p40 = por %p38, %p39
    %p41 = scmp.ne.s32.totalorder %s30, %s31
    %p42 = scmp.eq.s32.totalorder %s22, 0
    %p43 = por %p41, %p42
    %p44 = scmp.ne.s32.totalorder %s30, %s31
    %p45 = scmp.eq.s32.totalorder %s23, 1
    %p46 = por %p44, %p45
    %p48 = scmp.ne.s32.totalorder %s31, %s47
    %p49 = scmp.eq.s32.totalorder %s23, 0
    %p50 = por %p48, %p49
    %s51 = ssub.s32 %s17, %s24
    %p52 = scmp.eq.s32.totalorder %s51, 0
    %s54 = sadd.s32 %s53, 1
    %s55 = scalar_select %p52, %s53, %s54
    %p58 = pneg %p52
    %p59 = scmp.eq.s32.totalorder %s17, 1
    %p60 = por %p58, %p59
    %p61 = scmp.ne.s32.totalorder %s53, %s56
    %p62 = scmp.eq.s32.totalorder %s17, 0
    %p63 = por %p61, %p62
    %p64 = scmp.ne.s32.totalorder %s53, %s56
    %p65 = scmp.eq.s32.totalorder %s22, 1
    %p66 = por %p64, %p65
    %p67 = scmp.ne.s32.totalorder %s56, %s57
    %p68 = scmp.eq.s32.totalorder %s22, 0
    %p69 = por %p67, %p68
    %p70 = scmp.ne.s32.totalorder %s56, %s57
    %p71 = scmp.eq.s32.totalorder %s23, 1
    %p72 = por %p70, %p71
    %p74 = scmp.ne.s32.totalorder %s57, %s73
    %p75 = scmp.eq.s32.totalorder %s23, 0
    %p76 = por %p74, %p75
    %s78 = sadd.s32 %s77, 1
    %p81 = scmp.eq.s32.totalorder %s17, 1
    %p82 = scmp.ne.s32.totalorder %s77, %s79
    %p83 = scmp.eq.s32.totalorder %s17, 0
    %p84 = por %p82, %p83
    %p85 = scmp.ne.s32.totalorder %s77, %s79
    %p86 = scmp.eq.s32.totalorder %s22, 1
    %p87 = por %p85, %p86
    %p88 = scmp.ne.s32.totalorder %s79, %s80
    %p89 = scmp.eq.s32.totalorder %s22, 0
    %p90 = por %p88, %p89
    %p91 = scmp.ne.s32.totalorder %s79, %s80
    %p92 = scmp.eq.s32.totalorder %s23, 1
    %p93 = por %p91, %p92
    %p95 = scmp.ne.s32.totalorder %s80, %s94
    %p96 = scmp.eq.s32.totalorder %s23, 0
    %p97 = por %p95, %p96
    %s99 = sadd.s32 %s98, 1
    %p102 = scmp.eq.s32.totalorder %s17, 1
    %p103 = scmp.ne.s32.totalorder %s98, %s100
    %p104 = scmp.eq.s32.totalorder %s17, 0
    %p105 = por %p103, %p104
    %p106 = scmp.ne.s32.totalorder %s98, %s100
    %p107 = scmp.eq.s32.totalorder %s22, 1
    %p108 = por %p106, %p107
    %p109 = scmp.ne.s32.totalorder %s100, %s101
    %p110 = scmp.eq.s32.totalorder %s22, 0
    %p111 = por %p109, %p110
    %p112 = scmp.ne.s32.totalorder %s100, %s101
    %p113 = scmp.eq.s32.totalorder %s23, 1
    %p114 = por %p112, %p113
    %p116 = scmp.ne.s32.totalorder %s101, %s115
    %p117 = scmp.eq.s32.totalorder %s23, 0
    %p118 = por %p116, %p117
    %s120 = sadd.s32 %s119, 1
    %p123 = scmp.eq.s32.totalorder %s17, 1
    %p124 = scmp.ne.s32.totalorder %s119, %s121
    %p125 = scmp.eq.s32.totalorder %s17, 0
    %p126 = por %p124, %p125
    %p127 = scmp.ne.s32.totalorder %s119, %s121
    %p128 = scmp.eq.s32.totalorder %s22, 1
    %p129 = por %p127, %p128
    %p130 = scmp.ne.s32.totalorder %s121, %s122
    %p131 = scmp.eq.s32.totalorder %s22, 0
    %p132 = por %p130, %p131
    %p133 = scmp.ne.s32.totalorder %s121, %s122
    %p134 = scmp.eq.s32.totalorder %s23, 1
    %p135 = por %p133, %p134
    %p137 = scmp.ne.s32.totalorder %s122, %s136
    %p138 = scmp.eq.s32.totalorder %s23, 0
    %p139 = por %p137, %p138
    %s141 = sadd.s32 %s140, 1
    %p144 = scmp.eq.s32.totalorder %s17, 1
    %p145 = scmp.ne.s32.totalorder %s140, %s142
    %p146 = scmp.eq.s32.totalorder %s17, 0
    %p147 = por %p145, %p146
    %p148 = scmp.ne.s32.totalorder %s140, %s142
    %p149 = scmp.eq.s32.totalorder %s22, 1
    %p150 = por %p148, %p149
    %p151 = scmp.ne.s32.totalorder %s142, %s143
    %p152 = scmp.eq.s32.totalorder %s22, 0
    %p153 = por %p151, %p152
    %p154 = scmp.ne.s32.totalorder %s142, %s143
    %p155 = scmp.eq.s32.totalorder %s23, 1
    %p156 = por %p154, %p155
    %p158 = scmp.ne.s32.totalorder %s143, %s157
    %p159 = scmp.eq.s32.totalorder %s23, 0
    %p160 = por %p158, %p159
    %s162 = sadd.s32 %s161, 1
    %p165 = scmp.eq.s32.totalorder %s17, 1
    %p166 = scmp.ne.s32.totalorder %s161, %s163
    %p167 = scmp.eq.s32.totalorder %s17, 0
    %p168 = por %p166, %p167
    %p169 = scmp.ne.s32.totalorder %s161, %s163
    %p170 = scmp.eq.s32.totalorder %s22, 1
    %p171 = por %p169, %p170
    %p172 = scmp.ne.s32.totalorder %s163, %s164
    %p173 = scmp.eq.s32.totalorder %s22, 0
    %p174 = por %p172, %p173
    %p175 = scmp.ne.s32.totalorder %s163, %s164
    %p176 = scmp.eq.s32.totalorder %s23, 1
    %p177 = por %p175, %p176
    %p179 = scmp.ne.s32.totalorder %s164, %s178
    %p180 = scmp.eq.s32.totalorder %s23, 0
    %p181 = por %p179, %p180
    %s183 = sadd.s32 %s182, 1
    %p186 = scmp.eq.s32.totalorder %s17, 1
    %p187 = scmp.ne.s32.totalorder %s182, %s184
    %p188 = scmp.eq.s32.totalorder %s17, 0
    %p189 = por %p187, %p188
    %p190 = scmp.ne.s32.totalorder %s182, %s184
    %p191 = scmp.eq.s32.totalorder %s22, 1
    %p192 = por %p190, %p191
    %p193 = scmp.ne.s32.totalorder %s184, %s185
    %p194 = scmp.eq.s32.totalorder %s22, 0
    %p195 = por %p193, %p194
    %p196 = scmp.ne.s32.totalorder %s184, %s185
    %p197 = scmp.eq.s32.totalorder %s23, 1
    %p198 = por %p196, %p197
    %p200 = scmp.ne.s32.totalorder %s185, %s199
    %p201 = scmp.eq.s32.totalorder %s23, 0
    %p202 = por %p200, %p201
    %s204 = sadd.s32 %s203, 1
    %p207 = scmp.eq.s32.totalorder %s17, 1
    %p208 = scmp.ne.s32.totalorder %s203, %s205
    %p209 = scmp.eq.s32.totalorder %s17, 0
    %p210 = por %p208, %p209
    %p211 = scmp.ne.s32.totalorder %s203, %s205
    %p212 = scmp.eq.s32.totalorder %s22, 1
    %p213 = por %p211, %p212
    %p214 = scmp.ne.s32.totalorder %s205, %s206
    %p215 = scmp.eq.s32.totalorder %s22, 0
    %p216 = por %p214, %p215
    %p217 = scmp.ne.s32.totalorder %s205, %s206
    %p218 = scmp.eq.s32.totalorder %s23, 1
    %p219 = por %p217, %p218
    %p221 = scmp.ne.s32.totalorder %s206, %s220
    %p222 = scmp.eq.s32.totalorder %s23, 0
    %p223 = por %p221, %p222
    %s225 = sadd.s32 %s224, 1
    %p228 = scmp.eq.s32.totalorder %s17, 1
    %p229 = scmp.ne.s32.totalorder %s224, %s226
    %p230 = scmp.eq.s32.totalorder %s17, 0
    %p231 = por %p229, %p230
    %p232 = scmp.ne.s32.totalorder %s224, %s226
    %p233 = scmp.eq.s32.totalorder %s22, 1
    %p234 = por %p232, %p233
    %p235 = scmp.ne.s32.totalorder %s226, %s227
    %p236 = scmp.eq.s32.totalorder %s22, 0
    %p237 = por %p235, %p236
    %p238 = scmp.ne.s32.totalorder %s226, %s227
    %p239 = scmp.eq.s32.totalorder %s23, 1
    %p240 = por %p238, %p239
    %p242 = scmp.ne.s32.totalorder %s227, %s241
    %p243 = scmp.eq.s32.totalorder %s23, 0
    %p244 = por %p242, %p243
    %s246 = sadd.s32 %s245, 1
    %p249 = scmp.eq.s32.totalorder %s17, 1
    %p250 = scmp.ne.s32.totalorder %s245, %s247
    %p251 = scmp.eq.s32.totalorder %s17, 0
    %p252 = por %p250, %p251
    %p253 = scmp.ne.s32.totalorder %s245, %s247
    %p254 = scmp.eq.s32.totalorder %s22, 1
    %p255 = por %p253, %p254
    %p256 = scmp.ne.s32.totalorder %s247, %s248
    %p257 = scmp.eq.s32.totalorder %s22, 0
    %p258 = por %p256, %p257
    %p259 = scmp.ne.s32.totalorder %s247, %s248
    %p260 = scmp.eq.s32.totalorder %s23, 1
    %p261 = por %p259, %p260
    %p263 = scmp.ne.s32.totalorder %s248, %s262
    %p264 = scmp.eq.s32.totalorder %s23, 0
    %p265 = por %p263, %p264
    %s266 = ssub.s32 %s17, %s24
    %p267 = scmp.eq.s32.totalorder %s266, 0
    %s269 = sadd.s32 %s268, 1
    %s270 = scalar_select %p267, %s268, %s269
    %p273 = pneg %p267
    %p274 = scmp.eq.s32.totalorder %s17, 1
    %p275 = por %p273, %p274
    %p276 = scmp.ne.s32.totalorder %s268, %s271
    %p277 = scmp.eq.s32.totalorder %s17, 0
    %p278 = por %p276, %p277
    %p279 = scmp.ne.s32.totalorder %s268, %s271
    %p280 = scmp.eq.s32.totalorder %s22, 1
    %p281 = por %p279, %p280
    %p282 = scmp.ne.s32.totalorder %s271, %s272
    %p283 = scmp.eq.s32.totalorder %s22, 0
    %p284 = por %p282, %p283
    %p285 = scmp.ne.s32.totalorder %s271, %s272
    %p286 = scmp.eq.s32.totalorder %s23, 1
    %p287 = por %p285, %p286
    %p289 = scmp.ne.s32.totalorder %s272, %s288
    %p290 = scmp.eq.s32.totalorder %s23, 0
    %p291 = por %p289, %p290
    %p292 = scmp.le.s32.totalorder 1, %s17
    %p293 = scmp.lt.s32.totalorder %s17, 3
    %p294 = pnand %p292, %p293
    %p295 = pneg %p294
    // Predicated region
    $region9: #{avsr_forward.1} parent=5 // pred_check
      _
    $region10: #{avsr_forward.1} parent=5 // pred_check_branch
      %297 = sbr.rel (%p294) target = $region12
    $region11: #{avsr_forward.1} parent=5 // pred_region
      %s298 = ssub.s32 %s17, 1
      // Predicated region
      $region13: #{avsr_forward.1} parent=11 // pred_check
        %p299 = pneg %p90
      $region14: #{avsr_forward.1} parent=11 // pred_check_branch
        %301 = sbr.rel (%p299) target = $region16
      $region15: #{avsr_forward.1} parent=11 // pred_region
        _
      $region16: #{avsr_forward.1} parent=11 // pred_fallthru
        _
      // Predicated region
      $region17: #{avsr_forward.1} parent=11 // pred_check
        %p302 = pneg %p111
      $region18: #{avsr_forward.1} parent=11 // pred_check_branch
        %304 = sbr.rel (%p302) target = $region20
      $region19: #{avsr_forward.1} parent=11 // pred_region
        _
      $region20: #{avsr_forward.1} parent=11 // pred_fallthru
        _
      // Predicated region
      $region21: #{avsr_forward.1} parent=11 // pred_check
        %p305 = pneg %p132
      $region22: #{avsr_forward.1} parent=11 // pred_check_branch
        %307 = sbr.rel (%p305) target = $region24
      $region23: #{avsr_forward.1} parent=11 // pred_region
        _
      $region24: #{avsr_forward.1} parent=11 // pred_fallthru
        _
      // Predicated region
      $region25: #{avsr_forward.1} parent=11 // pred_check
        %p308 = pneg %p153
      $region26: #{avsr_forward.1} parent=11 // pred_check_branch
        %310 = sbr.rel (%p308) target = $region28
      $region27: #{avsr_forward.1} parent=11 // pred_region
        _
      $region28: #{avsr_forward.1} parent=11 // pred_fallthru
        _
      // Predicated region
      $region29: #{avsr_forward.1} parent=11 // pred_check
        %p311 = pneg %p174
      $region30: #{avsr_forward.1} parent=11 // pred_check_branch
        %313 = sbr.rel (%p311) target = $region32
      $region31: #{avsr_forward.1} parent=11 // pred_region
        _
      $region32: #{avsr_forward.1} parent=11 // pred_fallthru
        _
      // Predicated region
      $region33: #{avsr_forward.1} parent=11 // pred_check
        %p314 = pneg %p195
      $region34: #{avsr_forward.1} parent=11 // pred_check_branch
        %316 = sbr.rel (%p314) target = $region36
      $region35: #{avsr_forward.1} parent=11 // pred_region
        _
      $region36: #{avsr_forward.1} parent=11 // pred_fallthru
        _
      // Predicated region
      $region37: #{avsr_forward.1} parent=11 // pred_check
        %p317 = pneg %p216
      $region38: #{avsr_forward.1} parent=11 // pred_check_branch
        %319 = sbr.rel (%p317) target = $region40
      $region39: #{avsr_forward.1} parent=11 // pred_region
        _
      $region40: #{avsr_forward.1} parent=11 // pred_fallthru
        _
      // Predicated region
      $region41: #{avsr_forward.1} parent=11 // pred_check
        %p320 = pneg %p237
      $region42: #{avsr_forward.1} parent=11 // pred_check_branch
        %322 = sbr.rel (%p320) target = $region44
      $region43: #{avsr_forward.1} parent=11 // pred_region
        _
      $region44: #{avsr_forward.1} parent=11 // pred_fallthru
        _
      // Predicated region
      $region45: #{avsr_forward.1} parent=11 // pred_check
        %p323 = pneg %p258
      $region46: #{avsr_forward.1} parent=11 // pred_check_branch
        %325 = sbr.rel (%p323) target = $region48
      $region47: #{avsr_forward.1} parent=11 // pred_region
        _
      $region48: #{avsr_forward.1} parent=11 // pred_fallthru
        _
    $region12: #{avsr_forward.1} parent=5 // pred_fallthru
      _
    %p326 = scmp.lt.s32.totalorder %s17, 2
    // Predicated region
    $region49: #{avsr_forward.1} parent=5 // pred_check
      %p327 = pneg %p326
    $region50: #{avsr_forward.1} parent=5 // pred_check_branch
      %329 = sbr.rel (%p327) target = $region52
    $region51: #{avsr_forward.1} parent=5 // pred_region
      // Predicated region
      $region53: #{avsr_forward.1} parent=51 // pred_check
        %p330 = pneg %p37
      $region54: #{avsr_forward.1} parent=51 // pred_check_branch
        %332 = sbr.rel (%p330) target = $region56
      $region55: #{avsr_forward.1} parent=51 // pred_region
        %s333 = smul.u32 256, %s17
        %p334 = scmp.lt.s32.totalorder %s333, 511
        %s335 = scalar_select %p334, %s333, 511
        %s336 = smul.addr %s335, 4
        %s337 = scalar_lea.vmem %s0, %s336
        %s338 = smul.u32 256, %s17
      $region56: #{avsr_forward.1} parent=51 // pred_fallthru
        _
      // Predicated region
      $region57: #{avsr_forward.1} parent=51 // pred_check
        %p339 = pneg %p63
      $region58: #{avsr_forward.1} parent=51 // pred_check_branch
        %341 = sbr.rel (%p339) target = $region60
      $region59: #{avsr_forward.1} parent=51 // pred_region
        %p342 = scmp.lt.s32.totalorder %s17, 1
        %s343 = scalar_select %p342, %s17, 1
        %s344 = smul.addr %s343, 8
        %s345 = scalar_lea.vmem %s1, %s344
      $region60: #{avsr_forward.1} parent=51 // pred_fallthru
        _
    $region52: #{avsr_forward.1} parent=5 // pred_fallthru
      _
    %p346 = scmp.le.s32.totalorder 1, %s17
    %p347 = scmp.lt.s32.totalorder %s17, 3
    %p348 = pnand %p346, %p347
    %p349 = pneg %p348
    // Predicated region
    $region61: #{avsr_forward.1} parent=5 // pred_check
      _
    $region62: #{avsr_forward.1} parent=5 // pred_check_branch
      %351 = sbr.rel (%p348) target = $region64
    $region63: #{avsr_forward.1} parent=5 // pred_region
      %s352 = ssub.s32 %s17, 1
      %s353 = smul.u32 256, %s22
      %p354 = scmp.lt.s32.totalorder %s353, 511
      %s355 = scalar_select %p354, %s353, 511
      %s356 = smul.addr %s355, 4
      %s357 = scalar_lea.vmem %s0, %s356
      %p358 = pneg %p43
      %p359 = pneg %p40
      %p360 = scmp.lt.s32.totalorder %s22, 1
      %s361 = scalar_select %p360, %s22, 1
      %s362 = smul.addr %s361, 8
      %s363 = scalar_lea.vmem %s1, %s362
      %p364 = pneg %p69
      %p365 = pneg %p66
      %p366 = pneg %p90
      %p367 = pneg %p87
      %p368 = pneg %p111
      %p369 = pneg %p108
      %p370 = pneg %p132
      %p371 = pneg %p129
      %p372 = pneg %p153
      %p373 = pneg %p150
      %p374 = pneg %p174
      %p375 = pneg %p171
      %p376 = pneg %p195
      %p377 = pneg %p192
      %p378 = pneg %p216
      %p379 = pneg %p213
      %p380 = pneg %p237
      %p381 = pneg %p234
      %p382 = pneg %p258
      %p383 = pneg %p255
      %p384 = pneg %p284
      %p385 = pneg %p281
      %p386 = scmp.lt.s32.totalorder %s22, 1
      %s387 = scalar_select %p386, %s22, 1
      %s388 = smul.addr %s387, 8
      %s389 = scalar_lea.vmem %s11, %s388
      %s390 = smul.u32 256, %s22
      %p391 = scmp.lt.s32.totalorder %s390, 511
      %s392 = scalar_select %p391, %s390, 511
      %s393 = smul.addr %s392, 4
      %s394 = scalar_lea.vmem %s0, %s393
      %s395 = smul.u32 256, %s22
      %p396 = scmp.lt.s32.totalorder %s22, 1
      %s397 = scalar_select %p396, %s22, 1
      %s398 = smul.addr %s397, 8
      %s399 = scalar_lea.vmem %s1, %s398
      %p400 = scmp.lt.s32.totalorder %s22, 1
      %s401 = scalar_select %p400, %s22, 1
      %s402 = smul.addr %s401, 8
      %s403 = scalar_lea.vmem %s11, %s402
      %v405 = vld [vmem:[%s394] sm:$0xf]
      %v406 = vld [vmem:[%s394 + $0x4] sm:$0xf]
      %v407 = vld [vmem:[%s394 + $0x8] sm:$0xf]
      %v408 = vld [vmem:[%s394 + $0xc] sm:$0xf]
      %v409 = vld [vmem:[%s394 + $0x10] sm:$0xf]
      %v410 = vld [vmem:[%s394 + $0x14] sm:$0xf]
      %v411 = vld [vmem:[%s394 + $0x18] sm:$0xf]
      %v412 = vld [vmem:[%s394 + $0x1c] sm:$0xf]
      %v413 = vld [vmem:[%s394 + $0x20] sm:$0xf]
      %v414 = vld [vmem:[%s394 + $0x24] sm:$0xf]
      %v415 = vld [vmem:[%s394 + $0x28] sm:$0xf]
      %v416 = vld [vmem:[%s394 + $0x2c] sm:$0xf]
      %v417 = vld [vmem:[%s394 + $0x30] sm:$0xf]
      %v418 = vld [vmem:[%s394 + $0x34] sm:$0xf]
      %v419 = vld [vmem:[%s394 + $0x38] sm:$0xf]
      %v420 = vld [vmem:[%s394 + $0x3c] sm:$0xf]
      %v421 = vld [vmem:[%s394 + $0x40] sm:$0xf]
      %v422 = vld [vmem:[%s394 + $0x44] sm:$0xf]
      %v423 = vld [vmem:[%s394 + $0x48] sm:$0xf]
      %v424 = vld [vmem:[%s394 + $0x4c] sm:$0xf]
      %v425 = vld [vmem:[%s394 + $0x50] sm:$0xf]
      %v426 = vld [vmem:[%s394 + $0x54] sm:$0xf]
      %v427 = vld [vmem:[%s394 + $0x58] sm:$0xf]
      %v428 = vld [vmem:[%s394 + $0x5c] sm:$0xf]
      %v429 = vld [vmem:[%s394 + $0x60] sm:$0xf]
      %v430 = vld [vmem:[%s394 + $0x64] sm:$0xf]
      %v431 = vld [vmem:[%s394 + $0x68] sm:$0xf]
      %v432 = vld [vmem:[%s394 + $0x6c] sm:$0xf]
      %v433 = vld [vmem:[%s394 + $0x70] sm:$0xf]
      %v434 = vld [vmem:[%s394 + $0x74] sm:$0xf]
      %v435 = vld [vmem:[%s394 + $0x78] sm:$0xf]
      %v436 = vld [vmem:[%s394 + $0x7c] sm:$0xf]
      %v437 = vld [vmem:[%s394 + $0x80] sm:$0xf]
      %v438 = vld [vmem:[%s394 + $0x84] sm:$0xf]
      %v439 = vld [vmem:[%s394 + $0x88] sm:$0xf]
      %v440 = vld [vmem:[%s394 + $0x8c] sm:$0xf]
      %v441 = vld [vmem:[%s394 + $0x90] sm:$0xf]
      %v442 = vld [vmem:[%s394 + $0x94] sm:$0xf]
      %v443 = vld [vmem:[%s394 + $0x98] sm:$0xf]
      %v444 = vld [vmem:[%s394 + $0x9c] sm:$0xf]
      %v445 = vld [vmem:[%s394 + $0xa0] sm:$0xf]
      %v446 = vld [vmem:[%s394 + $0xa4] sm:$0xf]
      %v447 = vld [vmem:[%s394 + $0xa8] sm:$0xf]
      %v448 = vld [vmem:[%s394 + $0xac] sm:$0xf]
      %v449 = vld [vmem:[%s394 + $0xb0] sm:$0xf]
      %v450 = vld [vmem:[%s394 + $0xb4] sm:$0xf]
      %v451 = vld [vmem:[%s394 + $0xb8] sm:$0xf]
      %v452 = vld [vmem:[%s394 + $0xbc] sm:$0xf]
      %v453 = vld [vmem:[%s394 + $0xc0] sm:$0xf]
      %v454 = vld [vmem:[%s394 + $0xc4] sm:$0xf]
      %v455 = vld [vmem:[%s394 + $0xc8] sm:$0xf]
      %v456 = vld [vmem:[%s394 + $0xcc] sm:$0xf]
      %v457 = vld [vmem:[%s394 + $0xd0] sm:$0xf]
      %v458 = vld [vmem:[%s394 + $0xd4] sm:$0xf]
      %v459 = vld [vmem:[%s394 + $0xd8] sm:$0xf]
      %v460 = vld [vmem:[%s394 + $0xdc] sm:$0xf]
      %v461 = vld [vmem:[%s394 + $0xe0] sm:$0xf]
      %v462 = vld [vmem:[%s394 + $0xe4] sm:$0xf]
      %v463 = vld [vmem:[%s394 + $0xe8] sm:$0xf]
      %v464 = vld [vmem:[%s394 + $0xec] sm:$0xf]
      %v465 = vld [vmem:[%s394 + $0xf0] sm:$0xf]
      %v466 = vld [vmem:[%s394 + $0xf4] sm:$0xf]
      %v467 = vld [vmem:[%s394 + $0xf8] sm:$0xf]
      %v468 = vld [vmem:[%s394 + $0xfc] sm:$0xf]
      %v469 = vld [vmem:[%s394 + $0x100] sm:$0xf]
      %v470 = vld [vmem:[%s394 + $0x104] sm:$0xf]
      %v471 = vld [vmem:[%s394 + $0x108] sm:$0xf]
      %v472 = vld [vmem:[%s394 + $0x10c] sm:$0xf]
      %v473 = vld [vmem:[%s394 + $0x110] sm:$0xf]
      %v474 = vld [vmem:[%s394 + $0x114] sm:$0xf]
      %v475 = vld [vmem:[%s394 + $0x118] sm:$0xf]
      %v476 = vld [vmem:[%s394 + $0x11c] sm:$0xf]
      %v477 = vld [vmem:[%s394 + $0x120] sm:$0xf]
      %v478 = vld [vmem:[%s394 + $0x124] sm:$0xf]
      %v479 = vld [vmem:[%s394 + $0x128] sm:$0xf]
      %v480 = vld [vmem:[%s394 + $0x12c] sm:$0xf]
      %v481 = vld [vmem:[%s394 + $0x130] sm:$0xf]
      %v482 = vld [vmem:[%s394 + $0x134] sm:$0xf]
      %v483 = vld [vmem:[%s394 + $0x138] sm:$0xf]
      %v484 = vld [vmem:[%s394 + $0x13c] sm:$0xf]
      %v485 = vld [vmem:[%s394 + $0x140] sm:$0xf]
      %v486 = vld [vmem:[%s394 + $0x144] sm:$0xf]
      %v487 = vld [vmem:[%s394 + $0x148] sm:$0xf]
      %v488 = vld [vmem:[%s394 + $0x14c] sm:$0xf]
      %v489 = vld [vmem:[%s394 + $0x150] sm:$0xf]
      %v490 = vld [vmem:[%s394 + $0x154] sm:$0xf]
      %v491 = vld [vmem:[%s394 + $0x158] sm:$0xf]
      %v492 = vld [vmem:[%s394 + $0x15c] sm:$0xf]
      %v493 = vld [vmem:[%s394 + $0x160] sm:$0xf]
      %v494 = vld [vmem:[%s394 + $0x164] sm:$0xf]
      %v495 = vld [vmem:[%s394 + $0x168] sm:$0xf]
      %v496 = vld [vmem:[%s394 + $0x16c] sm:$0xf]
      %v497 = vld [vmem:[%s394 + $0x170] sm:$0xf]
      %v498 = vld [vmem:[%s394 + $0x174] sm:$0xf]
      %v499 = vld [vmem:[%s394 + $0x178] sm:$0xf]
      %v500 = vld [vmem:[%s394 + $0x17c] sm:$0xf]
      %v501 = vld [vmem:[%s394 + $0x180] sm:$0xf]
      %v502 = vld [vmem:[%s394 + $0x184] sm:$0xf]
      %v503 = vld [vmem:[%s394 + $0x188] sm:$0xf]
      %v504 = vld [vmem:[%s394 + $0x18c] sm:$0xf]
      %v505 = vld [vmem:[%s394 + $0x190] sm:$0xf]
      %v506 = vld [vmem:[%s394 + $0x194] sm:$0xf]
      %v507 = vld [vmem:[%s394 + $0x198] sm:$0xf]
      %v508 = vld [vmem:[%s394 + $0x19c] sm:$0xf]
      %v509 = vld [vmem:[%s394 + $0x1a0] sm:$0xf]
      %v510 = vld [vmem:[%s394 + $0x1a4] sm:$0xf]
      %v511 = vld [vmem:[%s394 + $0x1a8] sm:$0xf]
      %v512 = vld [vmem:[%s394 + $0x1ac] sm:$0xf]
      %v513 = vld [vmem:[%s394 + $0x1b0] sm:$0xf]
      %v514 = vld [vmem:[%s394 + $0x1b4] sm:$0xf]
      %v515 = vld [vmem:[%s394 + $0x1b8] sm:$0xf]
      %v516 = vld [vmem:[%s394 + $0x1bc] sm:$0xf]
      %v517 = vld [vmem:[%s394 + $0x1c0] sm:$0xf]
      %v518 = vld [vmem:[%s394 + $0x1c4] sm:$0xf]
      %v519 = vld [vmem:[%s394 + $0x1c8] sm:$0xf]
      %v520 = vld [vmem:[%s394 + $0x1cc] sm:$0xf]
      %v521 = vld [vmem:[%s394 + $0x1d0] sm:$0xf]
      %v522 = vld [vmem:[%s394 + $0x1d4] sm:$0xf]
      %v523 = vld [vmem:[%s394 + $0x1d8] sm:$0xf]
      %v524 = vld [vmem:[%s394 + $0x1dc] sm:$0xf]
      %v525 = vld [vmem:[%s394 + $0x1e0] sm:$0xf]
      %v526 = vld [vmem:[%s394 + $0x1e4] sm:$0xf]
      %v527 = vld [vmem:[%s394 + $0x1e8] sm:$0xf]
      %v528 = vld [vmem:[%s394 + $0x1ec] sm:$0xf]
      %v529 = vld [vmem:[%s394 + $0x1f0] sm:$0xf]
      %v530 = vld [vmem:[%s394 + $0x1f4] sm:$0xf]
      %v531 = vld [vmem:[%s394 + $0x1f8] sm:$0xf]
      %v532 = vld [vmem:[%s394 + $0x1fc] sm:$0xf]
      %v533 = vld [vmem:[%s394 + $0x200] sm:$0xf]
      %v534 = vld [vmem:[%s394 + $0x204] sm:$0xf]
      %v535 = vld [vmem:[%s394 + $0x208] sm:$0xf]
      %v536 = vld [vmem:[%s394 + $0x20c] sm:$0xf]
      %v537 = vld [vmem:[%s394 + $0x210] sm:$0xf]
      %v538 = vld [vmem:[%s394 + $0x214] sm:$0xf]
      %v539 = vld [vmem:[%s394 + $0x218] sm:$0xf]
      %v540 = vld [vmem:[%s394 + $0x21c] sm:$0xf]
      %v541 = vld [vmem:[%s394 + $0x220] sm:$0xf]
      %v542 = vld [vmem:[%s394 + $0x224] sm:$0xf]
      %v543 = vld [vmem:[%s394 + $0x228] sm:$0xf]
      %v544 = vld [vmem:[%s394 + $0x22c] sm:$0xf]
      %v545 = vld [vmem:[%s394 + $0x230] sm:$0xf]
      %v546 = vld [vmem:[%s394 + $0x234] sm:$0xf]
      %v547 = vld [vmem:[%s394 + $0x238] sm:$0xf]
      %v548 = vld [vmem:[%s394 + $0x23c] sm:$0xf]
      %v549 = vld [vmem:[%s394 + $0x240] sm:$0xf]
      %v550 = vld [vmem:[%s394 + $0x244] sm:$0xf]
      %v551 = vld [vmem:[%s394 + $0x248] sm:$0xf]
      %v552 = vld [vmem:[%s394 + $0x24c] sm:$0xf]
      %v553 = vld [vmem:[%s394 + $0x250] sm:$0xf]
      %v554 = vld [vmem:[%s394 + $0x254] sm:$0xf]
      %v555 = vld [vmem:[%s394 + $0x258] sm:$0xf]
      %v556 = vld [vmem:[%s394 + $0x25c] sm:$0xf]
      %v557 = vld [vmem:[%s394 + $0x260] sm:$0xf]
      %v558 = vld [vmem:[%s394 + $0x264] sm:$0xf]
      %v559 = vld [vmem:[%s394 + $0x268] sm:$0xf]
      %v560 = vld [vmem:[%s394 + $0x26c] sm:$0xf]
      %v561 = vld [vmem:[%s394 + $0x270] sm:$0xf]
      %v562 = vld [vmem:[%s394 + $0x274] sm:$0xf]
      %v563 = vld [vmem:[%s394 + $0x278] sm:$0xf]
      %v564 = vld [vmem:[%s394 + $0x27c] sm:$0xf]
      %v565 = vld [vmem:[%s394 + $0x280] sm:$0xf]
      %v566 = vld [vmem:[%s394 + $0x284] sm:$0xf]
      %v567 = vld [vmem:[%s394 + $0x288] sm:$0xf]
      %v568 = vld [vmem:[%s394 + $0x28c] sm:$0xf]
      %v569 = vld [vmem:[%s394 + $0x290] sm:$0xf]
      %v570 = vld [vmem:[%s394 + $0x294] sm:$0xf]
      %v571 = vld [vmem:[%s394 + $0x298] sm:$0xf]
      %v572 = vld [vmem:[%s394 + $0x29c] sm:$0xf]
      %v573 = vld [vmem:[%s394 + $0x2a0] sm:$0xf]
      %v574 = vld [vmem:[%s394 + $0x2a4] sm:$0xf]
      %v575 = vld [vmem:[%s394 + $0x2a8] sm:$0xf]
      %v576 = vld [vmem:[%s394 + $0x2ac] sm:$0xf]
      %v577 = vld [vmem:[%s394 + $0x2b0] sm:$0xf]
      %v578 = vld [vmem:[%s394 + $0x2b4] sm:$0xf]
      %v579 = vld [vmem:[%s394 + $0x2b8] sm:$0xf]
      %v580 = vld [vmem:[%s394 + $0x2bc] sm:$0xf]
      %v581 = vld [vmem:[%s394 + $0x2c0] sm:$0xf]
      %v582 = vld [vmem:[%s394 + $0x2c4] sm:$0xf]
      %v583 = vld [vmem:[%s394 + $0x2c8] sm:$0xf]
      %v584 = vld [vmem:[%s394 + $0x2cc] sm:$0xf]
      %v585 = vld [vmem:[%s394 + $0x2d0] sm:$0xf]
      %v586 = vld [vmem:[%s394 + $0x2d4] sm:$0xf]
      %v587 = vld [vmem:[%s394 + $0x2d8] sm:$0xf]
      %v588 = vld [vmem:[%s394 + $0x2dc] sm:$0xf]
      %v589 = vld [vmem:[%s394 + $0x2e0] sm:$0xf]
      %v590 = vld [vmem:[%s394 + $0x2e4] sm:$0xf]
      %v591 = vld [vmem:[%s394 + $0x2e8] sm:$0xf]
      %v592 = vld [vmem:[%s394 + $0x2ec] sm:$0xf]
      %v593 = vld [vmem:[%s394 + $0x2f0] sm:$0xf]
      %v594 = vld [vmem:[%s394 + $0x2f4] sm:$0xf]
      %v595 = vld [vmem:[%s394 + $0x2f8] sm:$0xf]
      %v596 = vld [vmem:[%s394 + $0x2fc] sm:$0xf]
      %v597 = vld [vmem:[%s394 + $0x300] sm:$0xf]
      %v598 = vld [vmem:[%s394 + $0x304] sm:$0xf]
      %v599 = vld [vmem:[%s394 + $0x308] sm:$0xf]
      %v600 = vld [vmem:[%s394 + $0x30c] sm:$0xf]
      %v601 = vld [vmem:[%s394 + $0x310] sm:$0xf]
      %v602 = vld [vmem:[%s394 + $0x314] sm:$0xf]
      %v603 = vld [vmem:[%s394 + $0x318] sm:$0xf]
      %v604 = vld [vmem:[%s394 + $0x31c] sm:$0xf]
      %v605 = vld [vmem:[%s394 + $0x320] sm:$0xf]
      %v606 = vld [vmem:[%s394 + $0x324] sm:$0xf]
      %v607 = vld [vmem:[%s394 + $0x328] sm:$0xf]
      %v608 = vld [vmem:[%s394 + $0x32c] sm:$0xf]
      %v609 = vld [vmem:[%s394 + $0x330] sm:$0xf]
      %v610 = vld [vmem:[%s394 + $0x334] sm:$0xf]
      %v611 = vld [vmem:[%s394 + $0x338] sm:$0xf]
      %v612 = vld [vmem:[%s394 + $0x33c] sm:$0xf]
      %v613 = vld [vmem:[%s394 + $0x340] sm:$0xf]
      %v614 = vld [vmem:[%s394 + $0x344] sm:$0xf]
      %v615 = vld [vmem:[%s394 + $0x348] sm:$0xf]
      %v616 = vld [vmem:[%s394 + $0x34c] sm:$0xf]
      %v617 = vld [vmem:[%s394 + $0x350] sm:$0xf]
      %v618 = vld [vmem:[%s394 + $0x354] sm:$0xf]
      %v619 = vld [vmem:[%s394 + $0x358] sm:$0xf]
      %v620 = vld [vmem:[%s394 + $0x35c] sm:$0xf]
      %v621 = vld [vmem:[%s394 + $0x360] sm:$0xf]
      %v622 = vld [vmem:[%s394 + $0x364] sm:$0xf]
      %v623 = vld [vmem:[%s394 + $0x368] sm:$0xf]
      %v624 = vld [vmem:[%s394 + $0x36c] sm:$0xf]
      %v625 = vld [vmem:[%s394 + $0x370] sm:$0xf]
      %v626 = vld [vmem:[%s394 + $0x374] sm:$0xf]
      %v627 = vld [vmem:[%s394 + $0x378] sm:$0xf]
      %v628 = vld [vmem:[%s394 + $0x37c] sm:$0xf]
      %v629 = vld [vmem:[%s394 + $0x380] sm:$0xf]
      %v630 = vld [vmem:[%s394 + $0x384] sm:$0xf]
      %v631 = vld [vmem:[%s394 + $0x388] sm:$0xf]
      %v632 = vld [vmem:[%s394 + $0x38c] sm:$0xf]
      %v633 = vld [vmem:[%s394 + $0x390] sm:$0xf]
      %v634 = vld [vmem:[%s394 + $0x394] sm:$0xf]
      %v635 = vld [vmem:[%s394 + $0x398] sm:$0xf]
      %v636 = vld [vmem:[%s394 + $0x39c] sm:$0xf]
      %v637 = vld [vmem:[%s394 + $0x3a0] sm:$0xf]
      %v638 = vld [vmem:[%s394 + $0x3a4] sm:$0xf]
      %v639 = vld [vmem:[%s394 + $0x3a8] sm:$0xf]
      %v640 = vld [vmem:[%s394 + $0x3ac] sm:$0xf]
      %v641 = vld [vmem:[%s394 + $0x3b0] sm:$0xf]
      %v642 = vld [vmem:[%s394 + $0x3b4] sm:$0xf]
      %v643 = vld [vmem:[%s394 + $0x3b8] sm:$0xf]
      %v644 = vld [vmem:[%s394 + $0x3bc] sm:$0xf]
      %v645 = vld [vmem:[%s394 + $0x3c0] sm:$0xf]
      %v646 = vld [vmem:[%s394 + $0x3c4] sm:$0xf]
      %v647 = vld [vmem:[%s394 + $0x3c8] sm:$0xf]
      %v648 = vld [vmem:[%s394 + $0x3cc] sm:$0xf]
      %v649 = vld [vmem:[%s394 + $0x3d0] sm:$0xf]
      %v650 = vld [vmem:[%s394 + $0x3d4] sm:$0xf]
      %v651 = vld [vmem:[%s394 + $0x3d8] sm:$0xf]
      %v652 = vld [vmem:[%s394 + $0x3dc] sm:$0xf]
      %v653 = vld [vmem:[%s394 + $0x3e0] sm:$0xf]
      %v654 = vld [vmem:[%s394 + $0x3e4] sm:$0xf]
      %v655 = vld [vmem:[%s394 + $0x3e8] sm:$0xf]
      %v656 = vld [vmem:[%s394 + $0x3ec] sm:$0xf]
      %v657 = vld [vmem:[%s394 + $0x3f0] sm:$0xf]
      %v658 = vld [vmem:[%s394 + $0x3f4] sm:$0xf]
      %v659 = vld [vmem:[%s394 + $0x3f8] sm:$0xf]
      %v660 = vld [vmem:[%s394 + $0x3fc] sm:$0xf]
      %v661 = vld [vmem:[%s2] sm:$0xf]
      %v662 = vld [vmem:[%s2 + $0x4] sm:$0xf]
      %v663 = vld [vmem:[%s2 + $0x8] sm:$0xf]
      %v664 = vld [vmem:[%s2 + $0xc] sm:$0xf]
      %v665 = vld [vmem:[%s2 + $0x10] sm:$0x3]
      %v666 = vld [vmem:[%s3] sm:$0x1]
      %v668 = vlaneseq
      %v669 = vshrl.u32 %v668, 7
      %v670 = vsub.s32 0, %v669
      %v671 = vrot.slane %v666, %v670
      %v929 = vunpack.c.l.b16 %v405
      %v930 = vunpack.c.l.b16 %v406
      %v931 = vunpack.c.l.b16 %v407
      %v932 = vunpack.c.l.b16 %v408
      %v933 = vunpack.c.l.b16 %v409
      %v934 = vunpack.c.l.b16 %v410
      %v935 = vunpack.c.l.b16 %v411
      %v936 = vunpack.c.l.b16 %v412
      %v937 = vunpack.c.l.b16 %v413
      %v938 = vunpack.c.l.b16 %v414
      %v939 = vunpack.c.l.b16 %v415
      %v940 = vunpack.c.l.b16 %v416
      %v941 = vunpack.c.l.b16 %v417
      %v942 = vunpack.c.l.b16 %v418
      %v943 = vunpack.c.l.b16 %v419
      %v944 = vunpack.c.l.b16 %v420
      %v945 = vunpack.c.l.b16 %v421
      %v946 = vunpack.c.l.b16 %v422
      %v947 = vunpack.c.l.b16 %v423
      %v948 = vunpack.c.l.b16 %v424
      %v949 = vunpack.c.l.b16 %v425
      %v950 = vunpack.c.l.b16 %v426
      %v951 = vunpack.c.l.b16 %v427
      %v952 = vunpack.c.l.b16 %v428
      %v953 = vunpack.c.l.b16 %v429
      %v954 = vunpack.c.l.b16 %v430
      %v955 = vunpack.c.l.b16 %v431
      %v956 = vunpack.c.l.b16 %v432
      %v957 = vunpack.c.l.b16 %v433
      %v958 = vunpack.c.l.b16 %v434
      %v959 = vunpack.c.l.b16 %v435
      %v960 = vunpack.c.l.b16 %v436
      %v961 = vunpack.c.l.b16 %v437
      %v962 = vunpack.c.l.b16 %v438
      %v963 = vunpack.c.l.b16 %v439
      %v964 = vunpack.c.l.b16 %v440
      %v965 = vunpack.c.l.b16 %v441
      %v966 = vunpack.c.l.b16 %v442
      %v967 = vunpack.c.l.b16 %v443
      %v968 = vunpack.c.l.b16 %v444
      %v969 = vunpack.c.l.b16 %v445
      %v970 = vunpack.c.l.b16 %v446
      %v971 = vunpack.c.l.b16 %v447
      %v972 = vunpack.c.l.b16 %v448
      %v973 = vunpack.c.l.b16 %v449
      %v974 = vunpack.c.l.b16 %v450
      %v975 = vunpack.c.l.b16 %v451
      %v976 = vunpack.c.l.b16 %v452
      %v977 = vunpack.c.l.b16 %v453
      %v978 = vunpack.c.l.b16 %v454
      %v979 = vunpack.c.l.b16 %v455
      %v980 = vunpack.c.l.b16 %v456
      %v981 = vunpack.c.l.b16 %v457
      %v982 = vunpack.c.l.b16 %v458
      %v983 = vunpack.c.l.b16 %v459
      %v984 = vunpack.c.l.b16 %v460
      %v985 = vunpack.c.l.b16 %v461
      %v986 = vunpack.c.l.b16 %v462
      %v987 = vunpack.c.l.b16 %v463
      %v988 = vunpack.c.l.b16 %v464
      %v989 = vunpack.c.l.b16 %v465
      %v990 = vunpack.c.l.b16 %v466
      %v991 = vunpack.c.l.b16 %v467
      %v992 = vunpack.c.l.b16 %v468
      %v993 = vunpack.c.l.b16 %v469
      %v994 = vunpack.c.l.b16 %v470
      %v995 = vunpack.c.l.b16 %v471
      %v996 = vunpack.c.l.b16 %v472
      %v997 = vunpack.c.l.b16 %v473
      %v998 = vunpack.c.l.b16 %v474
      %v999 = vunpack.c.l.b16 %v475
      %v1000 = vunpack.c.l.b16 %v476
      %v1001 = vunpack.c.l.b16 %v477
      %v1002 = vunpack.c.l.b16 %v478
      %v1003 = vunpack.c.l.b16 %v479
      %v1004 = vunpack.c.l.b16 %v480
      %v1005 = vunpack.c.l.b16 %v481
      %v1006 = vunpack.c.l.b16 %v482
      %v1007 = vunpack.c.l.b16 %v483
      %v1008 = vunpack.c.l.b16 %v484
      %v1009 = vunpack.c.l.b16 %v485
      %v1010 = vunpack.c.l.b16 %v486
      %v1011 = vunpack.c.l.b16 %v487
      %v1012 = vunpack.c.l.b16 %v488
      %v1013 = vunpack.c.l.b16 %v489
      %v1014 = vunpack.c.l.b16 %v490
      %v1015 = vunpack.c.l.b16 %v491
      %v1016 = vunpack.c.l.b16 %v492
      %v1017 = vunpack.c.l.b16 %v493
      %v1018 = vunpack.c.l.b16 %v494
      %v1019 = vunpack.c.l.b16 %v495
      %v1020 = vunpack.c.l.b16 %v496
      %v1021 = vunpack.c.l.b16 %v497
      %v1022 = vunpack.c.l.b16 %v498
      %v1023 = vunpack.c.l.b16 %v499
      %v1024 = vunpack.c.l.b16 %v500
      %v1025 = vunpack.c.l.b16 %v501
      %v1026 = vunpack.c.l.b16 %v502
      %v1027 = vunpack.c.l.b16 %v503
      %v1028 = vunpack.c.l.b16 %v504
      %v1029 = vunpack.c.l.b16 %v505
      %v1030 = vunpack.c.l.b16 %v506
      %v1031 = vunpack.c.l.b16 %v507
      %v1032 = vunpack.c.l.b16 %v508
      %v1033 = vunpack.c.l.b16 %v509
      %v1034 = vunpack.c.l.b16 %v510
      %v1035 = vunpack.c.l.b16 %v511
      %v1036 = vunpack.c.l.b16 %v512
      %v1037 = vunpack.c.l.b16 %v513
      %v1038 = vunpack.c.l.b16 %v514
      %v1039 = vunpack.c.l.b16 %v515
      %v1040 = vunpack.c.l.b16 %v516
      %v1041 = vunpack.c.l.b16 %v517
      %v1042 = vunpack.c.l.b16 %v518
      %v1043 = vunpack.c.l.b16 %v519
      %v1044 = vunpack.c.l.b16 %v520
      %v1045 = vunpack.c.l.b16 %v521
      %v1046 = vunpack.c.l.b16 %v522
      %v1047 = vunpack.c.l.b16 %v523
      %v1048 = vunpack.c.l.b16 %v524
      %v1049 = vunpack.c.l.b16 %v525
      %v1050 = vunpack.c.l.b16 %v526
      %v1051 = vunpack.c.l.b16 %v527
      %v1052 = vunpack.c.l.b16 %v528
      %v1053 = vunpack.c.l.b16 %v529
      %v1054 = vunpack.c.l.b16 %v530
      %v1055 = vunpack.c.l.b16 %v531
      %v1056 = vunpack.c.l.b16 %v532
      %v1057 = vunpack.c.l.b16 %v533
      %v1058 = vunpack.c.l.b16 %v534
      %v1059 = vunpack.c.l.b16 %v535
      %v1060 = vunpack.c.l.b16 %v536
      %v1061 = vunpack.c.l.b16 %v537
      %v1062 = vunpack.c.l.b16 %v538
      %v1063 = vunpack.c.l.b16 %v539
      %v1064 = vunpack.c.l.b16 %v540
      %v1065 = vunpack.c.l.b16 %v541
      %v1066 = vunpack.c.l.b16 %v542
      %v1067 = vunpack.c.l.b16 %v543
      %v1068 = vunpack.c.l.b16 %v544
      %v1069 = vunpack.c.l.b16 %v545
      %v1070 = vunpack.c.l.b16 %v546
      %v1071 = vunpack.c.l.b16 %v547
      %v1072 = vunpack.c.l.b16 %v548
      %v1073 = vunpack.c.l.b16 %v549
      %v1074 = vunpack.c.l.b16 %v550
      %v1075 = vunpack.c.l.b16 %v551
      %v1076 = vunpack.c.l.b16 %v552
      %v1077 = vunpack.c.l.b16 %v553
      %v1078 = vunpack.c.l.b16 %v554
      %v1079 = vunpack.c.l.b16 %v555
      %v1080 = vunpack.c.l.b16 %v556
      %v1081 = vunpack.c.l.b16 %v557
      %v1082 = vunpack.c.l.b16 %v558
      %v1083 = vunpack.c.l.b16 %v559
      %v1084 = vunpack.c.l.b16 %v560
      %v1085 = vunpack.c.l.b16 %v561
      %v1086 = vunpack.c.l.b16 %v562
      %v1087 = vunpack.c.l.b16 %v563
      %v1088 = vunpack.c.l.b16 %v564
      %v1089 = vunpack.c.l.b16 %v565
      %v1090 = vunpack.c.l.b16 %v566
      %v1091 = vunpack.c.l.b16 %v567
      %v1092 = vunpack.c.l.b16 %v568
      %v1093 = vunpack.c.l.b16 %v569
      %v1094 = vunpack.c.l.b16 %v570
      %v1095 = vunpack.c.l.b16 %v571
      %v1096 = vunpack.c.l.b16 %v572
      %v1097 = vunpack.c.l.b16 %v573
      %v1098 = vunpack.c.l.b16 %v574
      %v1099 = vunpack.c.l.b16 %v575
      %v1100 = vunpack.c.l.b16 %v576
      %v1101 = vunpack.c.l.b16 %v577
      %v1102 = vunpack.c.l.b16 %v578
      %v1103 = vunpack.c.l.b16 %v579
      %v1104 = vunpack.c.l.b16 %v580
      %v1105 = vunpack.c.l.b16 %v581
      %v1106 = vunpack.c.l.b16 %v582
      %v1107 = vunpack.c.l.b16 %v583
      %v1108 = vunpack.c.l.b16 %v584
      %v1109 = vunpack.c.l.b16 %v585
      %v1110 = vunpack.c.l.b16 %v586
      %v1111 = vunpack.c.l.b16 %v587
      %v1112 = vunpack.c.l.b16 %v588
      %v1113 = vunpack.c.l.b16 %v589
      %v1114 = vunpack.c.l.b16 %v590
      %v1115 = vunpack.c.l.b16 %v591
      %v1116 = vunpack.c.l.b16 %v592
      %v1117 = vunpack.c.l.b16 %v593
      %v1118 = vunpack.c.l.b16 %v594
      %v1119 = vunpack.c.l.b16 %v595
      %v1120 = vunpack.c.l.b16 %v596
      %v1121 = vunpack.c.l.b16 %v597
      %v1122 = vunpack.c.l.b16 %v598
      %v1123 = vunpack.c.l.b16 %v599
      %v1124 = vunpack.c.l.b16 %v600
      %v1125 = vunpack.c.l.b16 %v601
      %v1126 = vunpack.c.l.b16 %v602
      %v1127 = vunpack.c.l.b16 %v603
      %v1128 = vunpack.c.l.b16 %v604
      %v1129 = vunpack.c.l.b16 %v605
      %v1130 = vunpack.c.l.b16 %v606
      %v1131 = vunpack.c.l.b16 %v607
      %v1132 = vunpack.c.l.b16 %v608
      %v1133 = vunpack.c.l.b16 %v609
      %v1134 = vunpack.c.l.b16 %v610
      %v1135 = vunpack.c.l.b16 %v611
      %v1136 = vunpack.c.l.b16 %v612
      %v1137 = vunpack.c.l.b16 %v613
      %v1138 = vunpack.c.l.b16 %v614
      %v1139 = vunpack.c.l.b16 %v615
      %v1140 = vunpack.c.l.b16 %v616
      %v1141 = vunpack.c.l.b16 %v617
      %v1142 = vunpack.c.l.b16 %v618
      %v1143 = vunpack.c.l.b16 %v619
      %v1144 = vunpack.c.l.b16 %v620
      %v1145 = vunpack.c.l.b16 %v621
      %v1146 = vunpack.c.l.b16 %v622
      %v1147 = vunpack.c.l.b16 %v623
      %v1148 = vunpack.c.l.b16 %v624
      %v1149 = vunpack.c.l.b16 %v625
      %v1150 = vunpack.c.l.b16 %v626
      %v1151 = vunpack.c.l.b16 %v627
      %v1152 = vunpack.c.l.b16 %v628
      %v1153 = vunpack.c.l.b16 %v629
      %v1154 = vunpack.c.l.b16 %v630
      %v1155 = vunpack.c.l.b16 %v631
      %v1156 = vunpack.c.l.b16 %v632
      %v1157 = vunpack.c.l.b16 %v633
      %v1158 = vunpack.c.l.b16 %v634
      %v1159 = vunpack.c.l.b16 %v635
      %v1160 = vunpack.c.l.b16 %v636
      %v1161 = vunpack.c.l.b16 %v637
      %v1162 = vunpack.c.l.b16 %v638
      %v1163 = vunpack.c.l.b16 %v639
      %v1164 = vunpack.c.l.b16 %v640
      %v1165 = vunpack.c.l.b16 %v641
      %v1166 = vunpack.c.l.b16 %v642
      %v1167 = vunpack.c.l.b16 %v643
      %v1168 = vunpack.c.l.b16 %v644
      %v1169 = vunpack.c.l.b16 %v645
      %v1170 = vunpack.c.l.b16 %v646
      %v1171 = vunpack.c.l.b16 %v647
      %v1172 = vunpack.c.l.b16 %v648
      %v1173 = vunpack.c.l.b16 %v649
      %v1174 = vunpack.c.l.b16 %v650
      %v1175 = vunpack.c.l.b16 %v651
      %v1176 = vunpack.c.l.b16 %v652
      %v1177 = vunpack.c.l.b16 %v653
      %v1178 = vunpack.c.l.b16 %v654
      %v1179 = vunpack.c.l.b16 %v655
      %v1180 = vunpack.c.l.b16 %v656
      %v1181 = vunpack.c.l.b16 %v657
      %v1182 = vunpack.c.l.b16 %v658
      %v1183 = vunpack.c.l.b16 %v659
      %v1184 = vunpack.c.l.b16 %v660
      %v1185 = vpack.c.b16 %v930, %v929
      %v1186 = vpack.c.b16 %v932, %v931
      %v1187 = vpack.c.b16 %v934, %v933
      %v1188 = vpack.c.b16 %v936, %v935
      %v1189 = vpack.c.b16 %v938, %v937
      %v1190 = vpack.c.b16 %v940, %v939
      %v1191 = vpack.c.b16 %v942, %v941
      %v1192 = vpack.c.b16 %v944, %v943
      %v1193 = vpack.c.b16 %v946, %v945
      %v1194 = vpack.c.b16 %v948, %v947
      %v1195 = vpack.c.b16 %v950, %v949
      %v1196 = vpack.c.b16 %v952, %v951
      %v1197 = vpack.c.b16 %v954, %v953
      %v1198 = vpack.c.b16 %v956, %v955
      %v1199 = vpack.c.b16 %v958, %v957
      %v1200 = vpack.c.b16 %v960, %v959
      %v1201 = vpack.c.b16 %v962, %v961
      %v1202 = vpack.c.b16 %v964, %v963
      %v1203 = vpack.c.b16 %v966, %v965
      %v1204 = vpack.c.b16 %v968, %v967
      %v1205 = vpack.c.b16 %v970, %v969
      %v1206 = vpack.c.b16 %v972, %v971
      %v1207 = vpack.c.b16 %v974, %v973
      %v1208 = vpack.c.b16 %v976, %v975
      %v1209 = vpack.c.b16 %v978, %v977
      %v1210 = vpack.c.b16 %v980, %v979
      %v1211 = vpack.c.b16 %v982, %v981
      %v1212 = vpack.c.b16 %v984, %v983
      %v1213 = vpack.c.b16 %v986, %v985
      %v1214 = vpack.c.b16 %v988, %v987
      %v1215 = vpack.c.b16 %v990, %v989
      %v1216 = vpack.c.b16 %v992, %v991
      %v1217 = vpack.c.b16 %v994, %v993
      %v1218 = vpack.c.b16 %v996, %v995
      %v1219 = vpack.c.b16 %v998, %v997
      %v1220 = vpack.c.b16 %v1000, %v999
      %v1221 = vpack.c.b16 %v1002, %v1001
      %v1222 = vpack.c.b16 %v1004, %v1003
      %v1223 = vpack.c.b16 %v1006, %v1005
      %v1224 = vpack.c.b16 %v1008, %v1007
      %v1225 = vpack.c.b16 %v1010, %v1009
      %v1226 = vpack.c.b16 %v1012, %v1011
      %v1227 = vpack.c.b16 %v1014, %v1013
      %v1228 = vpack.c.b16 %v1016, %v1015
      %v1229 = vpack.c.b16 %v1018, %v1017
      %v1230 = vpack.c.b16 %v1020, %v1019
      %v1231 = vpack.c.b16 %v1022, %v1021
      %v1232 = vpack.c.b16 %v1024, %v1023
      %v1233 = vpack.c.b16 %v1026, %v1025
      %v1234 = vpack.c.b16 %v1028, %v1027
      %v1235 = vpack.c.b16 %v1030, %v1029
      %v1236 = vpack.c.b16 %v1032, %v1031
      %v1237 = vpack.c.b16 %v1034, %v1033
      %v1238 = vpack.c.b16 %v1036, %v1035
      %v1239 = vpack.c.b16 %v1038, %v1037
      %v1240 = vpack.c.b16 %v1040, %v1039
      %v1241 = vpack.c.b16 %v1042, %v1041
      %v1242 = vpack.c.b16 %v1044, %v1043
      %v1243 = vpack.c.b16 %v1046, %v1045
      %v1244 = vpack.c.b16 %v1048, %v1047
      %v1245 = vpack.c.b16 %v1050, %v1049
      %v1246 = vpack.c.b16 %v1052, %v1051
      %v1247 = vpack.c.b16 %v1054, %v1053
      %v1248 = vpack.c.b16 %v1056, %v1055
      %v1249 = vpack.c.b16 %v1058, %v1057
      %v1250 = vpack.c.b16 %v1060, %v1059
      %v1251 = vpack.c.b16 %v1062, %v1061
      %v1252 = vpack.c.b16 %v1064, %v1063
      %v1253 = vpack.c.b16 %v1066, %v1065
      %v1254 = vpack.c.b16 %v1068, %v1067
      %v1255 = vpack.c.b16 %v1070, %v1069
      %v1256 = vpack.c.b16 %v1072, %v1071
      %v1257 = vpack.c.b16 %v1074, %v1073
      %v1258 = vpack.c.b16 %v1076, %v1075
      %v1259 = vpack.c.b16 %v1078, %v1077
      %v1260 = vpack.c.b16 %v1080, %v1079
      %v1261 = vpack.c.b16 %v1082, %v1081
      %v1262 = vpack.c.b16 %v1084, %v1083
      %v1263 = vpack.c.b16 %v1086, %v1085
      %v1264 = vpack.c.b16 %v1088, %v1087
      %v1265 = vpack.c.b16 %v1090, %v1089
      %v1266 = vpack.c.b16 %v1092, %v1091
      %v1267 = vpack.c.b16 %v1094, %v1093
      %v1268 = vpack.c.b16 %v1096, %v1095
      %v1269 = vpack.c.b16 %v1098, %v1097
      %v1270 = vpack.c.b16 %v1100, %v1099
      %v1271 = vpack.c.b16 %v1102, %v1101
      %v1272 = vpack.c.b16 %v1104, %v1103
      %v1273 = vpack.c.b16 %v1106, %v1105
      %v1274 = vpack.c.b16 %v1108, %v1107
      %v1275 = vpack.c.b16 %v1110, %v1109
      %v1276 = vpack.c.b16 %v1112, %v1111
      %v1277 = vpack.c.b16 %v1114, %v1113
      %v1278 = vpack.c.b16 %v1116, %v1115
      %v1279 = vpack.c.b16 %v1118, %v1117
      %v1280 = vpack.c.b16 %v1120, %v1119
      %v1281 = vpack.c.b16 %v1122, %v1121
      %v1282 = vpack.c.b16 %v1124, %v1123
      %v1283 = vpack.c.b16 %v1126, %v1125
      %v1284 = vpack.c.b16 %v1128, %v1127
      %v1285 = vpack.c.b16 %v1130, %v1129
      %v1286 = vpack.c.b16 %v1132, %v1131
      %v1287 = vpack.c.b16 %v1134, %v1133
      %v1288 = vpack.c.b16 %v1136, %v1135
      %v1289 = vpack.c.b16 %v1138, %v1137
      %v1290 = vpack.c.b16 %v1140, %v1139
      %v1291 = vpack.c.b16 %v1142, %v1141
      %v1292 = vpack.c.b16 %v1144, %v1143
      %v1293 = vpack.c.b16 %v1146, %v1145
      %v1294 = vpack.c.b16 %v1148, %v1147
      %v1295 = vpack.c.b16 %v1150, %v1149
      %v1296 = vpack.c.b16 %v1152, %v1151
      %v1297 = vpack.c.b16 %v1154, %v1153
      %v1298 = vpack.c.b16 %v1156, %v1155
      %v1299 = vpack.c.b16 %v1158, %v1157
      %v1300 = vpack.c.b16 %v1160, %v1159
      %v1301 = vpack.c.b16 %v1162, %v1161
      %v1302 = vpack.c.b16 %v1164, %v1163
      %v1303 = vpack.c.b16 %v1166, %v1165
      %v1304 = vpack.c.b16 %v1168, %v1167
      %v1305 = vpack.c.b16 %v1170, %v1169
      %v1306 = vpack.c.b16 %v1172, %v1171
      %v1307 = vpack.c.b16 %v1174, %v1173
      %v1308 = vpack.c.b16 %v1176, %v1175
      %v1309 = vpack.c.b16 %v1178, %v1177
      %v1310 = vpack.c.b16 %v1180, %v1179
      %v1311 = vpack.c.b16 %v1182, %v1181
      %v1312 = vpack.c.b16 %v1184, %v1183
      %v1318 = vunpack.c.l.b16 %v661
      %v1319 = vunpack.c.l.b16 %v662
      %v1320 = vunpack.c.l.b16 %v663
      %v1321 = vunpack.c.l.b16 %v664
      %v1322 = vunpack.c.l.b16 %v665
      %v1323 = vpack.c.b16 %v1319, %v1318
      %v1324 = vpack.c.b16 %v1321, %v1320
      %v1325 = vpack.c.b16 %v1322, %v1322
      %vm1328 = vcmask 293888
      %v1330 = vsel %vm1328, %v1185, 0
      %v1333 = vsel %vm1328, %v1186, 0
      %v1336 = vsel %vm1328, %v1187, 0
      %v1339 = vsel %vm1328, %v1188, 0
      %v1342 = vsel %vm1328, %v1189, 0
      %v1345 = vsel %vm1328, %v1190, 0
      %v1348 = vsel %vm1328, %v1191, 0
      %v1351 = vsel %vm1328, %v1192, 0
      %v1354 = vsel %vm1328, %v1193, 0
      %v1357 = vsel %vm1328, %v1194, 0
      %v1360 = vsel %vm1328, %v1195, 0
      %v1363 = vsel %vm1328, %v1196, 0
      %v1366 = vsel %vm1328, %v1197, 0
      %v1369 = vsel %vm1328, %v1198, 0
      %v1372 = vsel %vm1328, %v1199, 0
      %v1375 = vsel %vm1328, %v1200, 0
      %v1378 = vsel %vm1328, %v1201, 0
      %v1381 = vsel %vm1328, %v1202, 0
      %v1384 = vsel %vm1328, %v1203, 0
      %v1387 = vsel %vm1328, %v1204, 0
      %v1390 = vsel %vm1328, %v1205, 0
      %v1393 = vsel %vm1328, %v1206, 0
      %v1396 = vsel %vm1328, %v1207, 0
      %v1399 = vsel %vm1328, %v1208, 0
      %v1402 = vsel %vm1328, %v1209, 0
      %v1405 = vsel %vm1328, %v1210, 0
      %v1408 = vsel %vm1328, %v1211, 0
      %v1411 = vsel %vm1328, %v1212, 0
      %v1414 = vsel %vm1328, %v1213, 0
      %v1417 = vsel %vm1328, %v1214, 0
      %v1420 = vsel %vm1328, %v1215, 0
      %v1423 = vsel %vm1328, %v1216, 0
      %v1426 = vsel %vm1328, %v1217, 0
      %v1429 = vsel %vm1328, %v1218, 0
      %v1432 = vsel %vm1328, %v1219, 0
      %v1435 = vsel %vm1328, %v1220, 0
      %v1438 = vsel %vm1328, %v1221, 0
      %v1441 = vsel %vm1328, %v1222, 0
      %v1444 = vsel %vm1328, %v1223, 0
      %v1447 = vsel %vm1328, %v1224, 0
      %v1450 = vsel %vm1328, %v1225, 0
      %v1453 = vsel %vm1328, %v1226, 0
      %v1456 = vsel %vm1328, %v1227, 0
      %v1459 = vsel %vm1328, %v1228, 0
      %v1462 = vsel %vm1328, %v1229, 0
      %v1465 = vsel %vm1328, %v1230, 0
      %v1468 = vsel %vm1328, %v1231, 0
      %v1471 = vsel %vm1328, %v1232, 0
      %v1474 = vsel %vm1328, %v1233, 0
      %v1477 = vsel %vm1328, %v1234, 0
      %v1480 = vsel %vm1328, %v1235, 0
      %v1483 = vsel %vm1328, %v1236, 0
      %v1486 = vsel %vm1328, %v1237, 0
      %v1489 = vsel %vm1328, %v1238, 0
      %v1492 = vsel %vm1328, %v1239, 0
      %v1495 = vsel %vm1328, %v1240, 0
      %v1498 = vsel %vm1328, %v1241, 0
      %v1501 = vsel %vm1328, %v1242, 0
      %v1504 = vsel %vm1328, %v1243, 0
      %v1507 = vsel %vm1328, %v1244, 0
      %v1510 = vsel %vm1328, %v1245, 0
      %v1513 = vsel %vm1328, %v1246, 0
      %v1516 = vsel %vm1328, %v1247, 0
      %v1519 = vsel %vm1328, %v1248, 0
      %v1522 = vsel %vm1328, %v1249, 0
      %v1525 = vsel %vm1328, %v1250, 0
      %v1528 = vsel %vm1328, %v1251, 0
      %v1531 = vsel %vm1328, %v1252, 0
      %v1534 = vsel %vm1328, %v1253, 0
      %v1537 = vsel %vm1328, %v1254, 0
      %v1540 = vsel %vm1328, %v1255, 0
      %v1543 = vsel %vm1328, %v1256, 0
      %v1546 = vsel %vm1328, %v1257, 0
      %v1549 = vsel %vm1328, %v1258, 0
      %v1552 = vsel %vm1328, %v1259, 0
      %v1555 = vsel %vm1328, %v1260, 0
      %v1558 = vsel %vm1328, %v1261, 0
      %v1561 = vsel %vm1328, %v1262, 0
      %v1564 = vsel %vm1328, %v1263, 0
      %v1567 = vsel %vm1328, %v1264, 0
      %v1570 = vsel %vm1328, %v1265, 0
      %v1573 = vsel %vm1328, %v1266, 0
      %v1576 = vsel %vm1328, %v1267, 0
      %v1579 = vsel %vm1328, %v1268, 0
      %v1582 = vsel %vm1328, %v1269, 0
      %v1585 = vsel %vm1328, %v1270, 0
      %v1588 = vsel %vm1328, %v1271, 0
      %v1591 = vsel %vm1328, %v1272, 0
      %v1594 = vsel %vm1328, %v1273, 0
      %v1597 = vsel %vm1328, %v1274, 0
      %v1600 = vsel %vm1328, %v1275, 0
      %v1603 = vsel %vm1328, %v1276, 0
      %v1606 = vsel %vm1328, %v1277, 0
      %v1609 = vsel %vm1328, %v1278, 0
      %v1612 = vsel %vm1328, %v1279, 0
      %v1615 = vsel %vm1328, %v1280, 0
      %v1618 = vsel %vm1328, %v1281, 0
      %v1621 = vsel %vm1328, %v1282, 0
      %v1624 = vsel %vm1328, %v1283, 0
      %v1627 = vsel %vm1328, %v1284, 0
      %v1630 = vsel %vm1328, %v1285, 0
      %v1633 = vsel %vm1328, %v1286, 0
      %v1636 = vsel %vm1328, %v1287, 0
      %v1639 = vsel %vm1328, %v1288, 0
      %v1642 = vsel %vm1328, %v1289, 0
      %v1645 = vsel %vm1328, %v1290, 0
      %v1648 = vsel %vm1328, %v1291, 0
      %v1651 = vsel %vm1328, %v1292, 0
      %v1654 = vsel %vm1328, %v1293, 0
      %v1657 = vsel %vm1328, %v1294, 0
      %v1660 = vsel %vm1328, %v1295, 0
      %v1663 = vsel %vm1328, %v1296, 0
      %v1666 = vsel %vm1328, %v1297, 0
      %v1669 = vsel %vm1328, %v1298, 0
      %v1672 = vsel %vm1328, %v1299, 0
      %v1675 = vsel %vm1328, %v1300, 0
      %v1678 = vsel %vm1328, %v1301, 0
      %v1681 = vsel %vm1328, %v1302, 0
      %v1684 = vsel %vm1328, %v1303, 0
      %v1687 = vsel %vm1328, %v1304, 0
      %v1690 = vsel %vm1328, %v1305, 0
      %v1693 = vsel %vm1328, %v1306, 0
      %v1696 = vsel %vm1328, %v1307, 0
      %v1699 = vsel %vm1328, %v1308, 0
      %v1702 = vsel %vm1328, %v1309, 0
      %v1705 = vsel %vm1328, %v1310, 0
      %v1708 = vsel %vm1328, %v1311, 0
      %v1711 = vsel %vm1328, %v1312, 0
      %vm1713 = vcmask 1041408
      %v1715 = vsel %vm1713, %v1325, 0
      %1717 = vmatprep.subr.bf16.mxu0 0
      %1718 = vmatpush1.bf16.msra.mxu0 0
      %1719 = vmatprep.subr.bf16.mxu0 0
      %1720 = vmatpush1.bf16.msra.mxu0 0
      %1721 = vmatprep.subr.bf16.mxu0 0
      %1722 = vmatpush1.bf16.msra.mxu0 0
      %1723 = vmatprep.subr.bf16.mxu0 0
      %1724 = vmatpush1.bf16.msra.mxu0 0
      %1725 = vmatprep.subr.bf16.mxu0 0
      %1726 = vmatpush1.bf16.msra.mxu0 0
      %1727 = vmatprep.subr.bf16.mxu0 0
      %1728 = vmatpush1.bf16.msra.mxu0 %v1715
      %1729 = vmatprep.subr.bf16.mxu0 0
      %1730 = vmatpush1.bf16.msra.mxu0 %v1324
      %1731 = vmatprep.subr.bf16.mxu0 0
      %1732 = vmatpush1.bf16.msra.mxu0 %v1323
      %1733 = vmatprep.subr.bf16.mxu0 0
      %1734 = vmatpush2.bf16.msra.mxu0 0
      %1735 = vmatprep.subr.bf16.mxu0 0
      %1736 = vmatpush2.bf16.msra.mxu0 0
      %1737 = vmatprep.subr.bf16.mxu0 0
      %1738 = vmatpush2.bf16.msra.mxu0 0
      %1739 = vmatprep.subr.bf16.mxu0 0
      %1740 = vmatpush2.bf16.msra.mxu0 0
      %1741 = vmatprep.subr.bf16.mxu0 0
      %1742 = vmatpush2.bf16.msra.mxu0 0
      %1743 = vmatprep.subr.bf16.mxu0 0
      %1744 = vmatpush2.bf16.msra.mxu0 0
      %1745 = vmatprep.subr.bf16.mxu0 0
      %1746 = vmatpush2.bf16.msra.mxu0 0
      %1747 = vmatprep.subr.bf16.mxu0 0
      %1748 = vmatpush2.bf16.msra.mxu0 0
      %1749 = vmatprep.mubr.bf16.mxu0 0
      %1750 = vmatmul.mubr.bf16.gmra.mxu0 %v1330
      %v1751 = vpop.f32.mrf.mxu0
      %v1752 = vadd.f32 %v671, %v1751
      %v1753 = vpop.f32.mrf.mxu0
      %v1754 = vpop.f32.mrf.mxu0
      %v1755 = vadd.f32 %v671, %v1754
      %v1756 = vpop.f32.mrf.mxu0
      %1757 = vmatprep.mubr.bf16.mxu0 0
      %1758 = vmatmul.mubr.bf16.gmra.mxu0 %v1333
      %v1759 = vpop.f32.mrf.mxu0
      %v1760 = vadd.f32 %v671, %v1759
      %v1761 = vpop.f32.mrf.mxu0
      %v1762 = vpop.f32.mrf.mxu0
      %v1763 = vadd.f32 %v671, %v1762
      %v1764 = vpop.f32.mrf.mxu0
      %1765 = vmatprep.mubr.bf16.mxu0 0
      %1766 = vmatmul.mubr.bf16.gmra.mxu0 %v1336
      %v1767 = vpop.f32.mrf.mxu0
      %v1768 = vadd.f32 %v671, %v1767
      %v1769 = vpop.f32.mrf.mxu0
      %v1770 = vpop.f32.mrf.mxu0
      %v1771 = vadd.f32 %v671, %v1770
      %v1772 = vpop.f32.mrf.mxu0
      %1773 = vmatprep.mubr.bf16.mxu0 0
      %1774 = vmatmul.mubr.bf16.gmra.mxu0 %v1339
      %v1775 = vpop.f32.mrf.mxu0
      %v1776 = vadd.f32 %v671, %v1775
      %v1777 = vpop.f32.mrf.mxu0
      %v1778 = vpop.f32.mrf.mxu0
      %v1779 = vadd.f32 %v671, %v1778
      %v1780 = vpop.f32.mrf.mxu0
      %1781 = vmatprep.mubr.bf16.mxu0 0
      %1782 = vmatmul.mubr.bf16.gmra.mxu0 %v1342
      %v1783 = vpop.f32.mrf.mxu0
      %v1784 = vadd.f32 %v671, %v1783
      %v1785 = vpop.f32.mrf.mxu0
      %v1786 = vpop.f32.mrf.mxu0
      %v1787 = vadd.f32 %v671, %v1786
      %v1788 = vpop.f32.mrf.mxu0
      %1789 = vmatprep.mubr.bf16.mxu0 0
      %1790 = vmatmul.mubr.bf16.gmra.mxu0 %v1345
      %v1791 = vpop.f32.mrf.mxu0
      %v1792 = vadd.f32 %v671, %v1791
      %v1793 = vpop.f32.mrf.mxu0
      %v1794 = vpop.f32.mrf.mxu0
      %v1795 = vadd.f32 %v671, %v1794
      %v1796 = vpop.f32.mrf.mxu0
      %1797 = vmatprep.mubr.bf16.mxu0 0
      %1798 = vmatmul.mubr.bf16.gmra.mxu0 %v1348
      %v1799 = vpop.f32.mrf.mxu0
      %v1800 = vadd.f32 %v671, %v1799
      %v1801 = vpop.f32.mrf.mxu0
      %v1802 = vpop.f32.mrf.mxu0
      %v1803 = vadd.f32 %v671, %v1802
      %v1804 = vpop.f32.mrf.mxu0
      %1805 = vmatprep.mubr.bf16.mxu0 0
      %1806 = vmatmul.mubr.bf16.gmra.mxu0 %v1351
      %v1807 = vpop.f32.mrf.mxu0
      %v1808 = vadd.f32 %v671, %v1807
      %v1809 = vpop.f32.mrf.mxu0
      %v1810 = vpop.f32.mrf.mxu0
      %v1811 = vadd.f32 %v671, %v1810
      %v1812 = vpop.f32.mrf.mxu0
      %1813 = vmatprep.mubr.bf16.mxu0 0
      %1814 = vmatmul.mubr.bf16.gmra.mxu0 %v1354
      %v1815 = vpop.f32.mrf.mxu0
      %v1816 = vadd.f32 %v671, %v1815
      %v1817 = vpop.f32.mrf.mxu0
      %v1818 = vpop.f32.mrf.mxu0
      %v1819 = vadd.f32 %v671, %v1818
      %v1820 = vpop.f32.mrf.mxu0
      %1821 = vmatprep.mubr.bf16.mxu0 0
      %1822 = vmatmul.mubr.bf16.gmra.mxu0 %v1357
      %v1823 = vpop.f32.mrf.mxu0
      %v1824 = vadd.f32 %v671, %v1823
      %v1825 = vpop.f32.mrf.mxu0
      %v1826 = vpop.f32.mrf.mxu0
      %v1827 = vadd.f32 %v671, %v1826
      %v1828 = vpop.f32.mrf.mxu0
      %1829 = vmatprep.mubr.bf16.mxu0 0
      %1830 = vmatmul.mubr.bf16.gmra.mxu0 %v1360
      %v1831 = vpop.f32.mrf.mxu0
      %v1832 = vadd.f32 %v671, %v1831
      %v1833 = vpop.f32.mrf.mxu0
      %v1834 = vpop.f32.mrf.mxu0
      %v1835 = vadd.f32 %v671, %v1834
      %v1836 = vpop.f32.mrf.mxu0
      %1837 = vmatprep.mubr.bf16.mxu0 0
      %1838 = vmatmul.mubr.bf16.gmra.mxu0 %v1363
      %v1839 = vpop.f32.mrf.mxu0
      %v1840 = vadd.f32 %v671, %v1839
      %v1841 = vpop.f32.mrf.mxu0
      %v1842 = vpop.f32.mrf.mxu0
      %v1843 = vadd.f32 %v671, %v1842
      %v1844 = vpop.f32.mrf.mxu0
      %1845 = vmatprep.mubr.bf16.mxu0 0
      %1846 = vmatmul.mubr.bf16.gmra.mxu0 %v1366
      %v1847 = vpop.f32.mrf.mxu0
      %v1848 = vadd.f32 %v671, %v1847
      %v1849 = vpop.f32.mrf.mxu0
      %v1850 = vpop.f32.mrf.mxu0
      %v1851 = vadd.f32 %v671, %v1850
      %v1852 = vpop.f32.mrf.mxu0
      %1853 = vmatprep.mubr.bf16.mxu0 0
      %1854 = vmatmul.mubr.bf16.gmra.mxu0 %v1369
      %v1855 = vpop.f32.mrf.mxu0
      %v1856 = vadd.f32 %v671, %v1855
      %v1857 = vpop.f32.mrf.mxu0
      %v1858 = vpop.f32.mrf.mxu0
      %v1859 = vadd.f32 %v671, %v1858
      %v1860 = vpop.f32.mrf.mxu0
      %1861 = vmatprep.mubr.bf16.mxu0 0
      %1862 = vmatmul.mubr.bf16.gmra.mxu0 %v1372
      %v1863 = vpop.f32.mrf.mxu0
      %v1864 = vadd.f32 %v671, %v1863
      %v1865 = vpop.f32.mrf.mxu0
      %v1866 = vpop.f32.mrf.mxu0
      %v1867 = vadd.f32 %v671, %v1866
      %v1868 = vpop.f32.mrf.mxu0
      %1869 = vmatprep.mubr.bf16.mxu0 0
      %1870 = vmatmul.mubr.bf16.gmra.mxu0 %v1375
      %v1871 = vpop.f32.mrf.mxu0
      %v1872 = vadd.f32 %v671, %v1871
      %v1873 = vpop.f32.mrf.mxu0
      %v1874 = vpop.f32.mrf.mxu0
      %v1875 = vadd.f32 %v671, %v1874
      %v1876 = vpop.f32.mrf.mxu0
      %1877 = vmatprep.mubr.bf16.mxu0 0
      %1878 = vmatmul.mubr.bf16.gmra.mxu0 %v1378
      %v1879 = vpop.f32.mrf.mxu0
      %v1880 = vadd.f32 %v671, %v1879
      %v1881 = vpop.f32.mrf.mxu0
      %v1882 = vpop.f32.mrf.mxu0
      %v1883 = vadd.f32 %v671, %v1882
      %v1884 = vpop.f32.mrf.mxu0
      %1885 = vmatprep.mubr.bf16.mxu0 0
      %1886 = vmatmul.mubr.bf16.gmra.mxu0 %v1381
      %v1887 = vpop.f32.mrf.mxu0
      %v1888 = vadd.f32 %v671, %v1887
      %v1889 = vpop.f32.mrf.mxu0
      %v1890 = vpop.f32.mrf.mxu0
      %v1891 = vadd.f32 %v671, %v1890
      %v1892 = vpop.f32.mrf.mxu0
      %1893 = vmatprep.mubr.bf16.mxu0 0
      %1894 = vmatmul.mubr.bf16.gmra.mxu0 %v1384
      %v1895 = vpop.f32.mrf.mxu0
      %v1896 = vadd.f32 %v671, %v1895
      %v1897 = vpop.f32.mrf.mxu0
      %v1898 = vpop.f32.mrf.mxu0
      %v1899 = vadd.f32 %v671, %v1898
      %v1900 = vpop.f32.mrf.mxu0
      %1901 = vmatprep.mubr.bf16.mxu0 0
      %1902 = vmatmul.mubr.bf16.gmra.mxu0 %v1387
      %v1903 = vpop.f32.mrf.mxu0
      %v1904 = vadd.f32 %v671, %v1903
      %v1905 = vpop.f32.mrf.mxu0
      %v1906 = vpop.f32.mrf.mxu0
      %v1907 = vadd.f32 %v671, %v1906
      %v1908 = vpop.f32.mrf.mxu0
      %1909 = vmatprep.mubr.bf16.mxu0 0
      %1910 = vmatmul.mubr.bf16.gmra.mxu0 %v1390
      %v1911 = vpop.f32.mrf.mxu0
      %v1912 = vadd.f32 %v671, %v1911
      %v1913 = vpop.f32.mrf.mxu0
      %v1914 = vpop.f32.mrf.mxu0
      %v1915 = vadd.f32 %v671, %v1914
      %v1916 = vpop.f32.mrf.mxu0
      %1917 = vmatprep.mubr.bf16.mxu0 0
      %1918 = vmatmul.mubr.bf16.gmra.mxu0 %v1393
      %v1919 = vpop.f32.mrf.mxu0
      %v1920 = vadd.f32 %v671, %v1919
      %v1921 = vpop.f32.mrf.mxu0
      %v1922 = vpop.f32.mrf.mxu0
      %v1923 = vadd.f32 %v671, %v1922
      %v1924 = vpop.f32.mrf.mxu0
      %1925 = vmatprep.mubr.bf16.mxu0 0
      %1926 = vmatmul.mubr.bf16.gmra.mxu0 %v1396
      %v1927 = vpop.f32.mrf.mxu0
      %v1928 = vadd.f32 %v671, %v1927
      %v1929 = vpop.f32.mrf.mxu0
      %v1930 = vpop.f32.mrf.mxu0
      %v1931 = vadd.f32 %v671, %v1930
      %v1932 = vpop.f32.mrf.mxu0
      %1933 = vmatprep.mubr.bf16.mxu0 0
      %1934 = vmatmul.mubr.bf16.gmra.mxu0 %v1399
      %v1935 = vpop.f32.mrf.mxu0
      %v1936 = vadd.f32 %v671, %v1935
      %v1937 = vpop.f32.mrf.mxu0
      %v1938 = vpop.f32.mrf.mxu0
      %v1939 = vadd.f32 %v671, %v1938
      %v1940 = vpop.f32.mrf.mxu0
      %1941 = vmatprep.mubr.bf16.mxu0 0
      %1942 = vmatmul.mubr.bf16.gmra.mxu0 %v1402
      %v1943 = vpop.f32.mrf.mxu0
      %v1944 = vadd.f32 %v671, %v1943
      %v1945 = vpop.f32.mrf.mxu0
      %v1946 = vpop.f32.mrf.mxu0
      %v1947 = vadd.f32 %v671, %v1946
      %v1948 = vpop.f32.mrf.mxu0
      %1949 = vmatprep.mubr.bf16.mxu0 0
      %1950 = vmatmul.mubr.bf16.gmra.mxu0 %v1405
      %v1951 = vpop.f32.mrf.mxu0
      %v1952 = vadd.f32 %v671, %v1951
      %v1953 = vpop.f32.mrf.mxu0
      %v1954 = vpop.f32.mrf.mxu0
      %v1955 = vadd.f32 %v671, %v1954
      %v1956 = vpop.f32.mrf.mxu0
      %1957 = vmatprep.mubr.bf16.mxu0 0
      %1958 = vmatmul.mubr.bf16.gmra.mxu0 %v1408
      %v1959 = vpop.f32.mrf.mxu0
      %v1960 = vadd.f32 %v671, %v1959
      %v1961 = vpop.f32.mrf.mxu0
      %v1962 = vpop.f32.mrf.mxu0
      %v1963 = vadd.f32 %v671, %v1962
      %v1964 = vpop.f32.mrf.mxu0
      %1965 = vmatprep.mubr.bf16.mxu0 0
      %1966 = vmatmul.mubr.bf16.gmra.mxu0 %v1411
      %v1967 = vpop.f32.mrf.mxu0
      %v1968 = vadd.f32 %v671, %v1967
      %v1969 = vpop.f32.mrf.mxu0
      %v1970 = vpop.f32.mrf.mxu0
      %v1971 = vadd.f32 %v671, %v1970
      %v1972 = vpop.f32.mrf.mxu0
      %1973 = vmatprep.mubr.bf16.mxu0 0
      %1974 = vmatmul.mubr.bf16.gmra.mxu0 %v1414
      %v1975 = vpop.f32.mrf.mxu0
      %v1976 = vadd.f32 %v671, %v1975
      %v1977 = vpop.f32.mrf.mxu0
      %v1978 = vpop.f32.mrf.mxu0
      %v1979 = vadd.f32 %v671, %v1978
      %v1980 = vpop.f32.mrf.mxu0
      %1981 = vmatprep.mubr.bf16.mxu0 0
      %1982 = vmatmul.mubr.bf16.gmra.mxu0 %v1417
      %v1983 = vpop.f32.mrf.mxu0
      %v1984 = vadd.f32 %v671, %v1983
      %v1985 = vpop.f32.mrf.mxu0
      %v1986 = vpop.f32.mrf.mxu0
      %v1987 = vadd.f32 %v671, %v1986
      %v1988 = vpop.f32.mrf.mxu0
      %1989 = vmatprep.mubr.bf16.mxu0 0
      %1990 = vmatmul.mubr.bf16.gmra.mxu0 %v1420
      %v1991 = vpop.f32.mrf.mxu0
      %v1992 = vadd.f32 %v671, %v1991
      %v1993 = vpop.f32.mrf.mxu0
      %v1994 = vpop.f32.mrf.mxu0
      %v1995 = vadd.f32 %v671, %v1994
      %v1996 = vpop.f32.mrf.mxu0
      %1997 = vmatprep.mubr.bf16.mxu0 0
      %1998 = vmatmul.mubr.bf16.gmra.mxu0 %v1423
      %v1999 = vpop.f32.mrf.mxu0
      %v2000 = vadd.f32 %v671, %v1999
      %v2001 = vpop.f32.mrf.mxu0
      %v2002 = vpop.f32.mrf.mxu0
      %v2003 = vadd.f32 %v671, %v2002
      %v2004 = vpop.f32.mrf.mxu0
      %2005 = vmatprep.mubr.bf16.mxu0 0
      %2006 = vmatmul.mubr.bf16.gmra.mxu0 %v1426
      %v2007 = vpop.f32.mrf.mxu0
      %v2008 = vadd.f32 %v671, %v2007
      %v2009 = vpop.f32.mrf.mxu0
      %v2010 = vpop.f32.mrf.mxu0
      %v2011 = vadd.f32 %v671, %v2010
      %v2012 = vpop.f32.mrf.mxu0
      %2013 = vmatprep.mubr.bf16.mxu0 0
      %2014 = vmatmul.mubr.bf16.gmra.mxu0 %v1429
      %v2015 = vpop.f32.mrf.mxu0
      %v2016 = vadd.f32 %v671, %v2015
      %v2017 = vpop.f32.mrf.mxu0
      %v2018 = vpop.f32.mrf.mxu0
      %v2019 = vadd.f32 %v671, %v2018
      %v2020 = vpop.f32.mrf.mxu0
      %2021 = vmatprep.mubr.bf16.mxu0 0
      %2022 = vmatmul.mubr.bf16.gmra.mxu0 %v1432
      %v2023 = vpop.f32.mrf.mxu0
      %v2024 = vadd.f32 %v671, %v2023
      %v2025 = vpop.f32.mrf.mxu0
      %v2026 = vpop.f32.mrf.mxu0
      %v2027 = vadd.f32 %v671, %v2026
      %v2028 = vpop.f32.mrf.mxu0
      %2029 = vmatprep.mubr.bf16.mxu0 0
      %2030 = vmatmul.mubr.bf16.gmra.mxu0 %v1435
      %v2031 = vpop.f32.mrf.mxu0
      %v2032 = vadd.f32 %v671, %v2031
      %v2033 = vpop.f32.mrf.mxu0
      %v2034 = vpop.f32.mrf.mxu0
      %v2035 = vadd.f32 %v671, %v2034
      %v2036 = vpop.f32.mrf.mxu0
      %2037 = vmatprep.mubr.bf16.mxu0 0
      %2038 = vmatmul.mubr.bf16.gmra.mxu0 %v1438
      %v2039 = vpop.f32.mrf.mxu0
      %v2040 = vadd.f32 %v671, %v2039
      %v2041 = vpop.f32.mrf.mxu0
      %v2042 = vpop.f32.mrf.mxu0
      %v2043 = vadd.f32 %v671, %v2042
      %v2044 = vpop.f32.mrf.mxu0
      %2045 = vmatprep.mubr.bf16.mxu0 0
      %2046 = vmatmul.mubr.bf16.gmra.mxu0 %v1441
      %v2047 = vpop.f32.mrf.mxu0
      %v2048 = vadd.f32 %v671, %v2047
      %v2049 = vpop.f32.mrf.mxu0
      %v2050 = vpop.f32.mrf.mxu0
      %v2051 = vadd.f32 %v671, %v2050
      %v2052 = vpop.f32.mrf.mxu0
      %2053 = vmatprep.mubr.bf16.mxu0 0
      %2054 = vmatmul.mubr.bf16.gmra.mxu0 %v1444
      %v2055 = vpop.f32.mrf.mxu0
      %v2056 = vadd.f32 %v671, %v2055
      %v2057 = vpop.f32.mrf.mxu0
      %v2058 = vpop.f32.mrf.mxu0
      %v2059 = vadd.f32 %v671, %v2058
      %v2060 = vpop.f32.mrf.mxu0
      %2061 = vmatprep.mubr.bf16.mxu0 0
      %2062 = vmatmul.mubr.bf16.gmra.mxu0 %v1447
      %v2063 = vpop.f32.mrf.mxu0
      %v2064 = vadd.f32 %v671, %v2063
      %v2065 = vpop.f32.mrf.mxu0
      %v2066 = vpop.f32.mrf.mxu0
      %v2067 = vadd.f32 %v671, %v2066
      %v2068 = vpop.f32.mrf.mxu0
      %2069 = vmatprep.mubr.bf16.mxu0 0
      %2070 = vmatmul.mubr.bf16.gmra.mxu0 %v1450
      %v2071 = vpop.f32.mrf.mxu0
      %v2072 = vadd.f32 %v671, %v2071
      %v2073 = vpop.f32.mrf.mxu0
      %v2074 = vpop.f32.mrf.mxu0
      %v2075 = vadd.f32 %v671, %v2074
      %v2076 = vpop.f32.mrf.mxu0
      %2077 = vmatprep.mubr.bf16.mxu0 0
      %2078 = vmatmul.mubr.bf16.gmra.mxu0 %v1453
      %v2079 = vpop.f32.mrf.mxu0
      %v2080 = vadd.f32 %v671, %v2079
      %v2081 = vpop.f32.mrf.mxu0
      %v2082 = vpop.f32.mrf.mxu0
      %v2083 = vadd.f32 %v671, %v2082
      %v2084 = vpop.f32.mrf.mxu0
      %2085 = vmatprep.mubr.bf16.mxu0 0
      %2086 = vmatmul.mubr.bf16.gmra.mxu0 %v1456
      %v2087 = vpop.f32.mrf.mxu0
      %v2088 = vadd.f32 %v671, %v2087
      %v2089 = vpop.f32.mrf.mxu0
      %v2090 = vpop.f32.mrf.mxu0
      %v2091 = vadd.f32 %v671, %v2090
      %v2092 = vpop.f32.mrf.mxu0
      %2093 = vmatprep.mubr.bf16.mxu0 0
      %2094 = vmatmul.mubr.bf16.gmra.mxu0 %v1459
      %v2095 = vpop.f32.mrf.mxu0
      %v2096 = vadd.f32 %v671, %v2095
      %v2097 = vpop.f32.mrf.mxu0
      %v2098 = vpop.f32.mrf.mxu0
      %v2099 = vadd.f32 %v671, %v2098
      %v2100 = vpop.f32.mrf.mxu0
      %2101 = vmatprep.mubr.bf16.mxu0 0
      %2102 = vmatmul.mubr.bf16.gmra.mxu0 %v1462
      %v2103 = vpop.f32.mrf.mxu0
      %v2104 = vadd.f32 %v671, %v2103
      %v2105 = vpop.f32.mrf.mxu0
      %v2106 = vpop.f32.mrf.mxu0
      %v2107 = vadd.f32 %v671, %v2106
      %v2108 = vpop.f32.mrf.mxu0
      %2109 = vmatprep.mubr.bf16.mxu0 0
      %2110 = vmatmul.mubr.bf16.gmra.mxu0 %v1465
      %v2111 = vpop.f32.mrf.mxu0
      %v2112 = vadd.f32 %v671, %v2111
      %v2113 = vpop.f32.mrf.mxu0
      %v2114 = vpop.f32.mrf.mxu0
      %v2115 = vadd.f32 %v671, %v2114
      %v2116 = vpop.f32.mrf.mxu0
      %2117 = vmatprep.mubr.bf16.mxu0 0
      %2118 = vmatmul.mubr.bf16.gmra.mxu0 %v1468
      %v2119 = vpop.f32.mrf.mxu0
      %v2120 = vadd.f32 %v671, %v2119
      %v2121 = vpop.f32.mrf.mxu0
      %v2122 = vpop.f32.mrf.mxu0
      %v2123 = vadd.f32 %v671, %v2122
      %v2124 = vpop.f32.mrf.mxu0
      %2125 = vmatprep.mubr.bf16.mxu0 0
      %2126 = vmatmul.mubr.bf16.gmra.mxu0 %v1471
      %v2127 = vpop.f32.mrf.mxu0
      %v2128 = vadd.f32 %v671, %v2127
      %v2129 = vpop.f32.mrf.mxu0
      %v2130 = vpop.f32.mrf.mxu0
      %v2131 = vadd.f32 %v671, %v2130
      %v2132 = vpop.f32.mrf.mxu0
      %2133 = vmatprep.mubr.bf16.mxu0 0
      %2134 = vmatmul.mubr.bf16.gmra.mxu0 %v1474
      %v2135 = vpop.f32.mrf.mxu0
      %v2136 = vadd.f32 %v671, %v2135
      %v2137 = vpop.f32.mrf.mxu0
      %v2138 = vpop.f32.mrf.mxu0
      %v2139 = vadd.f32 %v671, %v2138
      %v2140 = vpop.f32.mrf.mxu0
      %2141 = vmatprep.mubr.bf16.mxu0 0
      %2142 = vmatmul.mubr.bf16.gmra.mxu0 %v1477
      %v2143 = vpop.f32.mrf.mxu0
      %v2144 = vadd.f32 %v671, %v2143
      %v2145 = vpop.f32.mrf.mxu0
      %v2146 = vpop.f32.mrf.mxu0
      %v2147 = vadd.f32 %v671, %v2146
      %v2148 = vpop.f32.mrf.mxu0
      %2149 = vmatprep.mubr.bf16.mxu0 0
      %2150 = vmatmul.mubr.bf16.gmra.mxu0 %v1480
      %v2151 = vpop.f32.mrf.mxu0
      %v2152 = vadd.f32 %v671, %v2151
      %v2153 = vpop.f32.mrf.mxu0
      %v2154 = vpop.f32.mrf.mxu0
      %v2155 = vadd.f32 %v671, %v2154
      %v2156 = vpop.f32.mrf.mxu0
      %2157 = vmatprep.mubr.bf16.mxu0 0
      %2158 = vmatmul.mubr.bf16.gmra.mxu0 %v1483
      %v2159 = vpop.f32.mrf.mxu0
      %v2160 = vadd.f32 %v671, %v2159
      %v2161 = vpop.f32.mrf.mxu0
      %v2162 = vpop.f32.mrf.mxu0
      %v2163 = vadd.f32 %v671, %v2162
      %v2164 = vpop.f32.mrf.mxu0
      %2165 = vmatprep.mubr.bf16.mxu0 0
      %2166 = vmatmul.mubr.bf16.gmra.mxu0 %v1486
      %v2167 = vpop.f32.mrf.mxu0
      %v2168 = vadd.f32 %v671, %v2167
      %v2169 = vpop.f32.mrf.mxu0
      %v2170 = vpop.f32.mrf.mxu0
      %v2171 = vadd.f32 %v671, %v2170
      %v2172 = vpop.f32.mrf.mxu0
      %2173 = vmatprep.mubr.bf16.mxu0 0
      %2174 = vmatmul.mubr.bf16.gmra.mxu0 %v1489
      %v2175 = vpop.f32.mrf.mxu0
      %v2176 = vadd.f32 %v671, %v2175
      %v2177 = vpop.f32.mrf.mxu0
      %v2178 = vpop.f32.mrf.mxu0
      %v2179 = vadd.f32 %v671, %v2178
      %v2180 = vpop.f32.mrf.mxu0
      %2181 = vmatprep.mubr.bf16.mxu0 0
      %2182 = vmatmul.mubr.bf16.gmra.mxu0 %v1492
      %v2183 = vpop.f32.mrf.mxu0
      %v2184 = vadd.f32 %v671, %v2183
      %v2185 = vpop.f32.mrf.mxu0
      %v2186 = vpop.f32.mrf.mxu0
      %v2187 = vadd.f32 %v671, %v2186
      %v2188 = vpop.f32.mrf.mxu0
      %2189 = vmatprep.mubr.bf16.mxu0 0
      %2190 = vmatmul.mubr.bf16.gmra.mxu0 %v1495
      %v2191 = vpop.f32.mrf.mxu0
      %v2192 = vadd.f32 %v671, %v2191
      %v2193 = vpop.f32.mrf.mxu0
      %v2194 = vpop.f32.mrf.mxu0
      %v2195 = vadd.f32 %v671, %v2194
      %v2196 = vpop.f32.mrf.mxu0
      %2197 = vmatprep.mubr.bf16.mxu0 0
      %2198 = vmatmul.mubr.bf16.gmra.mxu0 %v1498
      %v2199 = vpop.f32.mrf.mxu0
      %v2200 = vadd.f32 %v671, %v2199
      %v2201 = vpop.f32.mrf.mxu0
      %v2202 = vpop.f32.mrf.mxu0
      %v2203 = vadd.f32 %v671, %v2202
      %v2204 = vpop.f32.mrf.mxu0
      %2205 = vmatprep.mubr.bf16.mxu0 0
      %2206 = vmatmul.mubr.bf16.gmra.mxu0 %v1501
      %v2207 = vpop.f32.mrf.mxu0
      %v2208 = vadd.f32 %v671, %v2207
      %v2209 = vpop.f32.mrf.mxu0
      %v2210 = vpop.f32.mrf.mxu0
      %v2211 = vadd.f32 %v671, %v2210
      %v2212 = vpop.f32.mrf.mxu0
      %2213 = vmatprep.mubr.bf16.mxu0 0
      %2214 = vmatmul.mubr.bf16.gmra.mxu0 %v1504
      %v2215 = vpop.f32.mrf.mxu0
      %v2216 = vadd.f32 %v671, %v2215
      %v2217 = vpop.f32.mrf.mxu0
      %v2218 = vpop.f32.mrf.mxu0
      %v2219 = vadd.f32 %v671, %v2218
      %v2220 = vpop.f32.mrf.mxu0
      %2221 = vmatprep.mubr.bf16.mxu0 0
      %2222 = vmatmul.mubr.bf16.gmra.mxu0 %v1507
      %v2223 = vpop.f32.mrf.mxu0
      %v2224 = vadd.f32 %v671, %v2223
      %v2225 = vpop.f32.mrf.mxu0
      %v2226 = vpop.f32.mrf.mxu0
      %v2227 = vadd.f32 %v671, %v2226
      %v2228 = vpop.f32.mrf.mxu0
      %2229 = vmatprep.mubr.bf16.mxu0 0
      %2230 = vmatmul.mubr.bf16.gmra.mxu0 %v1510
      %v2231 = vpop.f32.mrf.mxu0
      %v2232 = vadd.f32 %v671, %v2231
      %v2233 = vpop.f32.mrf.mxu0
      %v2234 = vpop.f32.mrf.mxu0
      %v2235 = vadd.f32 %v671, %v2234
      %v2236 = vpop.f32.mrf.mxu0
      %2237 = vmatprep.mubr.bf16.mxu0 0
      %2238 = vmatmul.mubr.bf16.gmra.mxu0 %v1513
      %v2239 = vpop.f32.mrf.mxu0
      %v2240 = vadd.f32 %v671, %v2239
      %v2241 = vpop.f32.mrf.mxu0
      %v2242 = vpop.f32.mrf.mxu0
      %v2243 = vadd.f32 %v671, %v2242
      %v2244 = vpop.f32.mrf.mxu0
      %2245 = vmatprep.mubr.bf16.mxu0 0
      %2246 = vmatmul.mubr.bf16.gmra.mxu0 %v1516
      %v2247 = vpop.f32.mrf.mxu0
      %v2248 = vadd.f32 %v671, %v2247
      %v2249 = vpop.f32.mrf.mxu0
      %v2250 = vpop.f32.mrf.mxu0
      %v2251 = vadd.f32 %v671, %v2250
      %v2252 = vpop.f32.mrf.mxu0
      %2253 = vmatprep.mubr.bf16.mxu0 0
      %2254 = vmatmul.mubr.bf16.gmra.mxu0 %v1519
      %v2255 = vpop.f32.mrf.mxu0
      %v2256 = vadd.f32 %v671, %v2255
      %v2257 = vpop.f32.mrf.mxu0
      %v2258 = vpop.f32.mrf.mxu0
      %v2259 = vadd.f32 %v671, %v2258
      %v2260 = vpop.f32.mrf.mxu0
      %2261 = vmatprep.mubr.bf16.mxu0 0
      %2262 = vmatmul.mubr.bf16.gmra.mxu0 %v1522
      %v2263 = vpop.f32.mrf.mxu0
      %v2264 = vadd.f32 %v671, %v2263
      %v2265 = vpop.f32.mrf.mxu0
      %v2266 = vpop.f32.mrf.mxu0
      %v2267 = vadd.f32 %v671, %v2266
      %v2268 = vpop.f32.mrf.mxu0
      %2269 = vmatprep.mubr.bf16.mxu0 0
      %2270 = vmatmul.mubr.bf16.gmra.mxu0 %v1525
      %v2271 = vpop.f32.mrf.mxu0
      %v2272 = vadd.f32 %v671, %v2271
      %v2273 = vpop.f32.mrf.mxu0
      %v2274 = vpop.f32.mrf.mxu0
      %v2275 = vadd.f32 %v671, %v2274
      %v2276 = vpop.f32.mrf.mxu0
      %2277 = vmatprep.mubr.bf16.mxu0 0
      %2278 = vmatmul.mubr.bf16.gmra.mxu0 %v1528
      %v2279 = vpop.f32.mrf.mxu0
      %v2280 = vadd.f32 %v671, %v2279
      %v2281 = vpop.f32.mrf.mxu0
      %v2282 = vpop.f32.mrf.mxu0
      %v2283 = vadd.f32 %v671, %v2282
      %v2284 = vpop.f32.mrf.mxu0
      %2285 = vmatprep.mubr.bf16.mxu0 0
      %2286 = vmatmul.mubr.bf16.gmra.mxu0 %v1531
      %v2287 = vpop.f32.mrf.mxu0
      %v2288 = vadd.f32 %v671, %v2287
      %v2289 = vpop.f32.mrf.mxu0
      %v2290 = vpop.f32.mrf.mxu0
      %v2291 = vadd.f32 %v671, %v2290
      %v2292 = vpop.f32.mrf.mxu0
      %2293 = vmatprep.mubr.bf16.mxu0 0
      %2294 = vmatmul.mubr.bf16.gmra.mxu0 %v1534
      %v2295 = vpop.f32.mrf.mxu0
      %v2296 = vadd.f32 %v671, %v2295
      %v2297 = vpop.f32.mrf.mxu0
      %v2298 = vpop.f32.mrf.mxu0
      %v2299 = vadd.f32 %v671, %v2298
      %v2300 = vpop.f32.mrf.mxu0
      %2301 = vmatprep.mubr.bf16.mxu0 0
      %2302 = vmatmul.mubr.bf16.gmra.mxu0 %v1537
      %v2303 = vpop.f32.mrf.mxu0
      %v2304 = vadd.f32 %v671, %v2303
      %v2305 = vpop.f32.mrf.mxu0
      %v2306 = vpop.f32.mrf.mxu0
      %v2307 = vadd.f32 %v671, %v2306
      %v2308 = vpop.f32.mrf.mxu0
      %2309 = vmatprep.mubr.bf16.mxu0 0
      %2310 = vmatmul.mubr.bf16.gmra.mxu0 %v1540
      %v2311 = vpop.f32.mrf.mxu0
      %v2312 = vadd.f32 %v671, %v2311
      %v2313 = vpop.f32.mrf.mxu0
      %v2314 = vpop.f32.mrf.mxu0
      %v2315 = vadd.f32 %v671, %v2314
      %v2316 = vpop.f32.mrf.mxu0
      %2317 = vmatprep.mubr.bf16.mxu0 0
      %2318 = vmatmul.mubr.bf16.gmra.mxu0 %v1543
      %v2319 = vpop.f32.mrf.mxu0
      %v2320 = vadd.f32 %v671, %v2319
      %v2321 = vpop.f32.mrf.mxu0
      %v2322 = vpop.f32.mrf.mxu0
      %v2323 = vadd.f32 %v671, %v2322
      %v2324 = vpop.f32.mrf.mxu0
      %2325 = vmatprep.mubr.bf16.mxu0 0
      %2326 = vmatmul.mubr.bf16.gmra.mxu0 %v1546
      %v2327 = vpop.f32.mrf.mxu0
      %v2328 = vadd.f32 %v671, %v2327
      %v2329 = vpop.f32.mrf.mxu0
      %v2330 = vpop.f32.mrf.mxu0
      %v2331 = vadd.f32 %v671, %v2330
      %v2332 = vpop.f32.mrf.mxu0
      %2333 = vmatprep.mubr.bf16.mxu0 0
      %2334 = vmatmul.mubr.bf16.gmra.mxu0 %v1549
      %v2335 = vpop.f32.mrf.mxu0
      %v2336 = vadd.f32 %v671, %v2335
      %v2337 = vpop.f32.mrf.mxu0
      %v2338 = vpop.f32.mrf.mxu0
      %v2339 = vadd.f32 %v671, %v2338
      %v2340 = vpop.f32.mrf.mxu0
      %2341 = vmatprep.mubr.bf16.mxu0 0
      %2342 = vmatmul.mubr.bf16.gmra.mxu0 %v1552
      %v2343 = vpop.f32.mrf.mxu0
      %v2344 = vadd.f32 %v671, %v2343
      %v2345 = vpop.f32.mrf.mxu0
      %v2346 = vpop.f32.mrf.mxu0
      %v2347 = vadd.f32 %v671, %v2346
      %v2348 = vpop.f32.mrf.mxu0
      %2349 = vmatprep.mubr.bf16.mxu0 0
      %2350 = vmatmul.mubr.bf16.gmra.mxu0 %v1555
      %v2351 = vpop.f32.mrf.mxu0
      %v2352 = vadd.f32 %v671, %v2351
      %v2353 = vpop.f32.mrf.mxu0
      %v2354 = vpop.f32.mrf.mxu0
      %v2355 = vadd.f32 %v671, %v2354
      %v2356 = vpop.f32.mrf.mxu0
      %2357 = vmatprep.mubr.bf16.mxu0 0
      %2358 = vmatmul.mubr.bf16.gmra.mxu0 %v1558
      %v2359 = vpop.f32.mrf.mxu0
      %v2360 = vadd.f32 %v671, %v2359
      %v2361 = vpop.f32.mrf.mxu0
      %v2362 = vpop.f32.mrf.mxu0
      %v2363 = vadd.f32 %v671, %v2362
      %v2364 = vpop.f32.mrf.mxu0
      %2365 = vmatprep.mubr.bf16.mxu0 0
      %2366 = vmatmul.mubr.bf16.gmra.mxu0 %v1561
      %v2367 = vpop.f32.mrf.mxu0
      %v2368 = vadd.f32 %v671, %v2367
      %v2369 = vpop.f32.mrf.mxu0
      %v2370 = vpop.f32.mrf.mxu0
      %v2371 = vadd.f32 %v671, %v2370
      %v2372 = vpop.f32.mrf.mxu0
      %2373 = vmatprep.mubr.bf16.mxu0 0
      %2374 = vmatmul.mubr.bf16.gmra.mxu0 %v1564
      %v2375 = vpop.f32.mrf.mxu0
      %v2376 = vadd.f32 %v671, %v2375
      %v2377 = vpop.f32.mrf.mxu0
      %v2378 = vpop.f32.mrf.mxu0
      %v2379 = vadd.f32 %v671, %v2378
      %v2380 = vpop.f32.mrf.mxu0
      %2381 = vmatprep.mubr.bf16.mxu0 0
      %2382 = vmatmul.mubr.bf16.gmra.mxu0 %v1567
      %v2383 = vpop.f32.mrf.mxu0
      %v2384 = vadd.f32 %v671, %v2383
      %v2385 = vpop.f32.mrf.mxu0
      %v2386 = vpop.f32.mrf.mxu0
      %v2387 = vadd.f32 %v671, %v2386
      %v2388 = vpop.f32.mrf.mxu0
      %2389 = vmatprep.mubr.bf16.mxu0 0
      %2390 = vmatmul.mubr.bf16.gmra.mxu0 %v1570
      %v2391 = vpop.f32.mrf.mxu0
      %v2392 = vadd.f32 %v671, %v2391
      %v2393 = vpop.f32.mrf.mxu0
      %v2394 = vpop.f32.mrf.mxu0
      %v2395 = vadd.f32 %v671, %v2394
      %v2396 = vpop.f32.mrf.mxu0
      %2397 = vmatprep.mubr.bf16.mxu0 0
      %2398 = vmatmul.mubr.bf16.gmra.mxu0 %v1573
      %v2399 = vpop.f32.mrf.mxu0
      %v2400 = vadd.f32 %v671, %v2399
      %v2401 = vpop.f32.mrf.mxu0
      %v2402 = vpop.f32.mrf.mxu0
      %v2403 = vadd.f32 %v671, %v2402
      %v2404 = vpop.f32.mrf.mxu0
      %2405 = vmatprep.mubr.bf16.mxu0 0
      %2406 = vmatmul.mubr.bf16.gmra.mxu0 %v1576
      %v2407 = vpop.f32.mrf.mxu0
      %v2408 = vadd.f32 %v671, %v2407
      %v2409 = vpop.f32.mrf.mxu0
      %v2410 = vpop.f32.mrf.mxu0
      %v2411 = vadd.f32 %v671, %v2410
      %v2412 = vpop.f32.mrf.mxu0
      %2413 = vmatprep.mubr.bf16.mxu0 0
      %2414 = vmatmul.mubr.bf16.gmra.mxu0 %v1579
      %v2415 = vpop.f32.mrf.mxu0
      %v2416 = vadd.f32 %v671, %v2415
      %v2417 = vpop.f32.mrf.mxu0
      %v2418 = vpop.f32.mrf.mxu0
      %v2419 = vadd.f32 %v671, %v2418
      %v2420 = vpop.f32.mrf.mxu0
      %2421 = vmatprep.mubr.bf16.mxu0 0
      %2422 = vmatmul.mubr.bf16.gmra.mxu0 %v1582
      %v2423 = vpop.f32.mrf.mxu0
      %v2424 = vadd.f32 %v671, %v2423
      %v2425 = vpop.f32.mrf.mxu0
      %v2426 = vpop.f32.mrf.mxu0
      %v2427 = vadd.f32 %v671, %v2426
      %v2428 = vpop.f32.mrf.mxu0
      %2429 = vmatprep.mubr.bf16.mxu0 0
      %2430 = vmatmul.mubr.bf16.gmra.mxu0 %v1585
      %v2431 = vpop.f32.mrf.mxu0
      %v2432 = vadd.f32 %v671, %v2431
      %v2433 = vpop.f32.mrf.mxu0
      %v2434 = vpop.f32.mrf.mxu0
      %v2435 = vadd.f32 %v671, %v2434
      %v2436 = vpop.f32.mrf.mxu0
      %2437 = vmatprep.mubr.bf16.mxu0 0
      %2438 = vmatmul.mubr.bf16.gmra.mxu0 %v1588
      %v2439 = vpop.f32.mrf.mxu0
      %v2440 = vadd.f32 %v671, %v2439
      %v2441 = vpop.f32.mrf.mxu0
      %v2442 = vpop.f32.mrf.mxu0
      %v2443 = vadd.f32 %v671, %v2442
      %v2444 = vpop.f32.mrf.mxu0
      %2445 = vmatprep.mubr.bf16.mxu0 0
      %2446 = vmatmul.mubr.bf16.gmra.mxu0 %v1591
      %v2447 = vpop.f32.mrf.mxu0
      %v2448 = vadd.f32 %v671, %v2447
      %v2449 = vpop.f32.mrf.mxu0
      %v2450 = vpop.f32.mrf.mxu0
      %v2451 = vadd.f32 %v671, %v2450
      %v2452 = vpop.f32.mrf.mxu0
      %2453 = vmatprep.mubr.bf16.mxu0 0
      %2454 = vmatmul.mubr.bf16.gmra.mxu0 %v1594
      %v2455 = vpop.f32.mrf.mxu0
      %v2456 = vadd.f32 %v671, %v2455
      %v2457 = vpop.f32.mrf.mxu0
      %v2458 = vpop.f32.mrf.mxu0
      %v2459 = vadd.f32 %v671, %v2458
      %v2460 = vpop.f32.mrf.mxu0
      %2461 = vmatprep.mubr.bf16.mxu0 0
      %2462 = vmatmul.mubr.bf16.gmra.mxu0 %v1597
      %v2463 = vpop.f32.mrf.mxu0
      %v2464 = vadd.f32 %v671, %v2463
      %v2465 = vpop.f32.mrf.mxu0
      %v2466 = vpop.f32.mrf.mxu0
      %v2467 = vadd.f32 %v671, %v2466
      %v2468 = vpop.f32.mrf.mxu0
      %2469 = vmatprep.mubr.bf16.mxu0 0
      %2470 = vmatmul.mubr.bf16.gmra.mxu0 %v1600
      %v2471 = vpop.f32.mrf.mxu0
      %v2472 = vadd.f32 %v671, %v2471
      %v2473 = vpop.f32.mrf.mxu0
      %v2474 = vpop.f32.mrf.mxu0
      %v2475 = vadd.f32 %v671, %v2474
      %v2476 = vpop.f32.mrf.mxu0
      %2477 = vmatprep.mubr.bf16.mxu0 0
      %2478 = vmatmul.mubr.bf16.gmra.mxu0 %v1603
      %v2479 = vpop.f32.mrf.mxu0
      %v2480 = vadd.f32 %v671, %v2479
      %v2481 = vpop.f32.mrf.mxu0
      %v2482 = vpop.f32.mrf.mxu0
      %v2483 = vadd.f32 %v671, %v2482
      %v2484 = vpop.f32.mrf.mxu0
      %2485 = vmatprep.mubr.bf16.mxu0 0
      %2486 = vmatmul.mubr.bf16.gmra.mxu0 %v1606
      %v2487 = vpop.f32.mrf.mxu0
      %v2488 = vadd.f32 %v671, %v2487
      %v2489 = vpop.f32.mrf.mxu0
      %v2490 = vpop.f32.mrf.mxu0
      %v2491 = vadd.f32 %v671, %v2490
      %v2492 = vpop.f32.mrf.mxu0
      %2493 = vmatprep.mubr.bf16.mxu0 0
      %2494 = vmatmul.mubr.bf16.gmra.mxu0 %v1609
      %v2495 = vpop.f32.mrf.mxu0
      %v2496 = vadd.f32 %v671, %v2495
      %v2497 = vpop.f32.mrf.mxu0
      %v2498 = vpop.f32.mrf.mxu0
      %v2499 = vadd.f32 %v671, %v2498
      %v2500 = vpop.f32.mrf.mxu0
      %2501 = vmatprep.mubr.bf16.mxu0 0
      %2502 = vmatmul.mubr.bf16.gmra.mxu0 %v1612
      %v2503 = vpop.f32.mrf.mxu0
      %v2504 = vadd.f32 %v671, %v2503
      %v2505 = vpop.f32.mrf.mxu0
      %v2506 = vpop.f32.mrf.mxu0
      %v2507 = vadd.f32 %v671, %v2506
      %v2508 = vpop.f32.mrf.mxu0
      %2509 = vmatprep.mubr.bf16.mxu0 0
      %2510 = vmatmul.mubr.bf16.gmra.mxu0 %v1615
      %v2511 = vpop.f32.mrf.mxu0
      %v2512 = vadd.f32 %v671, %v2511
      %v2513 = vpop.f32.mrf.mxu0
      %v2514 = vpop.f32.mrf.mxu0
      %v2515 = vadd.f32 %v671, %v2514
      %v2516 = vpop.f32.mrf.mxu0
      %2517 = vmatprep.mubr.bf16.mxu0 0
      %2518 = vmatmul.mubr.bf16.gmra.mxu0 %v1618
      %v2519 = vpop.f32.mrf.mxu0
      %v2520 = vadd.f32 %v671, %v2519
      %v2521 = vpop.f32.mrf.mxu0
      %v2522 = vpop.f32.mrf.mxu0
      %v2523 = vadd.f32 %v671, %v2522
      %v2524 = vpop.f32.mrf.mxu0
      %2525 = vmatprep.mubr.bf16.mxu0 0
      %2526 = vmatmul.mubr.bf16.gmra.mxu0 %v1621
      %v2527 = vpop.f32.mrf.mxu0
      %v2528 = vadd.f32 %v671, %v2527
      %v2529 = vpop.f32.mrf.mxu0
      %v2530 = vpop.f32.mrf.mxu0
      %v2531 = vadd.f32 %v671, %v2530
      %v2532 = vpop.f32.mrf.mxu0
      %2533 = vmatprep.mubr.bf16.mxu0 0
      %2534 = vmatmul.mubr.bf16.gmra.mxu0 %v1624
      %v2535 = vpop.f32.mrf.mxu0
      %v2536 = vadd.f32 %v671, %v2535
      %v2537 = vpop.f32.mrf.mxu0
      %v2538 = vpop.f32.mrf.mxu0
      %v2539 = vadd.f32 %v671, %v2538
      %v2540 = vpop.f32.mrf.mxu0
      %2541 = vmatprep.mubr.bf16.mxu0 0
      %2542 = vmatmul.mubr.bf16.gmra.mxu0 %v1627
      %v2543 = vpop.f32.mrf.mxu0
      %v2544 = vadd.f32 %v671, %v2543
      %v2545 = vpop.f32.mrf.mxu0
      %v2546 = vpop.f32.mrf.mxu0
      %v2547 = vadd.f32 %v671, %v2546
      %v2548 = vpop.f32.mrf.mxu0
      %2549 = vmatprep.mubr.bf16.mxu0 0
      %2550 = vmatmul.mubr.bf16.gmra.mxu0 %v1630
      %v2551 = vpop.f32.mrf.mxu0
      %v2552 = vadd.f32 %v671, %v2551
      %v2553 = vpop.f32.mrf.mxu0
      %v2554 = vpop.f32.mrf.mxu0
      %v2555 = vadd.f32 %v671, %v2554
      %v2556 = vpop.f32.mrf.mxu0
      %2557 = vmatprep.mubr.bf16.mxu0 0
      %2558 = vmatmul.mubr.bf16.gmra.mxu0 %v1633
      %v2559 = vpop.f32.mrf.mxu0
      %v2560 = vadd.f32 %v671, %v2559
      %v2561 = vpop.f32.mrf.mxu0
      %v2562 = vpop.f32.mrf.mxu0
      %v2563 = vadd.f32 %v671, %v2562
      %v2564 = vpop.f32.mrf.mxu0
      %2565 = vmatprep.mubr.bf16.mxu0 0
      %2566 = vmatmul.mubr.bf16.gmra.mxu0 %v1636
      %v2567 = vpop.f32.mrf.mxu0
      %v2568 = vadd.f32 %v671, %v2567
      %v2569 = vpop.f32.mrf.mxu0
      %v2570 = vpop.f32.mrf.mxu0
      %v2571 = vadd.f32 %v671, %v2570
      %v2572 = vpop.f32.mrf.mxu0
      %2573 = vmatprep.mubr.bf16.mxu0 0
      %2574 = vmatmul.mubr.bf16.gmra.mxu0 %v1639
      %v2575 = vpop.f32.mrf.mxu0
      %v2576 = vadd.f32 %v671, %v2575
      %v2577 = vpop.f32.mrf.mxu0
      %v2578 = vpop.f32.mrf.mxu0
      %v2579 = vadd.f32 %v671, %v2578
      %v2580 = vpop.f32.mrf.mxu0
      %2581 = vmatprep.mubr.bf16.mxu0 0
      %2582 = vmatmul.mubr.bf16.gmra.mxu0 %v1642
      %v2583 = vpop.f32.mrf.mxu0
      %v2584 = vadd.f32 %v671, %v2583
      %v2585 = vpop.f32.mrf.mxu0
      %v2586 = vpop.f32.mrf.mxu0
      %v2587 = vadd.f32 %v671, %v2586
      %v2588 = vpop.f32.mrf.mxu0
      %2589 = vmatprep.mubr.bf16.mxu0 0
      %2590 = vmatmul.mubr.bf16.gmra.mxu0 %v1645
      %v2591 = vpop.f32.mrf.mxu0
      %v2592 = vadd.f32 %v671, %v2591
      %v2593 = vpop.f32.mrf.mxu0
      %v2594 = vpop.f32.mrf.mxu0
      %v2595 = vadd.f32 %v671, %v2594
      %v2596 = vpop.f32.mrf.mxu0
      %2597 = vmatprep.mubr.bf16.mxu0 0
      %2598 = vmatmul.mubr.bf16.gmra.mxu0 %v1648
      %v2599 = vpop.f32.mrf.mxu0
      %v2600 = vadd.f32 %v671, %v2599
      %v2601 = vpop.f32.mrf.mxu0
      %v2602 = vpop.f32.mrf.mxu0
      %v2603 = vadd.f32 %v671, %v2602
      %v2604 = vpop.f32.mrf.mxu0
      %2605 = vmatprep.mubr.bf16.mxu0 0
      %2606 = vmatmul.mubr.bf16.gmra.mxu0 %v1651
      %v2607 = vpop.f32.mrf.mxu0
      %v2608 = vadd.f32 %v671, %v2607
      %v2609 = vpop.f32.mrf.mxu0
      %v2610 = vpop.f32.mrf.mxu0
      %v2611 = vadd.f32 %v671, %v2610
      %v2612 = vpop.f32.mrf.mxu0
      %2613 = vmatprep.mubr.bf16.mxu0 0
      %2614 = vmatmul.mubr.bf16.gmra.mxu0 %v1654
      %v2615 = vpop.f32.mrf.mxu0
      %v2616 = vadd.f32 %v671, %v2615
      %v2617 = vpop.f32.mrf.mxu0
      %v2618 = vpop.f32.mrf.mxu0
      %v2619 = vadd.f32 %v671, %v2618
      %v2620 = vpop.f32.mrf.mxu0
      %2621 = vmatprep.mubr.bf16.mxu0 0
      %2622 = vmatmul.mubr.bf16.gmra.mxu0 %v1657
      %v2623 = vpop.f32.mrf.mxu0
      %v2624 = vadd.f32 %v671, %v2623
      %v2625 = vpop.f32.mrf.mxu0
      %v2626 = vpop.f32.mrf.mxu0
      %v2627 = vadd.f32 %v671, %v2626
      %v2628 = vpop.f32.mrf.mxu0
      %2629 = vmatprep.mubr.bf16.mxu0 0
      %2630 = vmatmul.mubr.bf16.gmra.mxu0 %v1660
      %v2631 = vpop.f32.mrf.mxu0
      %v2632 = vadd.f32 %v671, %v2631
      %v2633 = vpop.f32.mrf.mxu0
      %v2634 = vpop.f32.mrf.mxu0
      %v2635 = vadd.f32 %v671, %v2634
      %v2636 = vpop.f32.mrf.mxu0
      %2637 = vmatprep.mubr.bf16.mxu0 0
      %2638 = vmatmul.mubr.bf16.gmra.mxu0 %v1663
      %v2639 = vpop.f32.mrf.mxu0
      %v2640 = vadd.f32 %v671, %v2639
      %v2641 = vpop.f32.mrf.mxu0
      %v2642 = vpop.f32.mrf.mxu0
      %v2643 = vadd.f32 %v671, %v2642
      %v2644 = vpop.f32.mrf.mxu0
      %2645 = vmatprep.mubr.bf16.mxu0 0
      %2646 = vmatmul.mubr.bf16.gmra.mxu0 %v1666
      %v2647 = vpop.f32.mrf.mxu0
      %v2648 = vadd.f32 %v671, %v2647
      %v2649 = vpop.f32.mrf.mxu0
      %v2650 = vpop.f32.mrf.mxu0
      %v2651 = vadd.f32 %v671, %v2650
      %v2652 = vpop.f32.mrf.mxu0
      %2653 = vmatprep.mubr.bf16.mxu0 0
      %2654 = vmatmul.mubr.bf16.gmra.mxu0 %v1669
      %v2655 = vpop.f32.mrf.mxu0
      %v2656 = vadd.f32 %v671, %v2655
      %v2657 = vpop.f32.mrf.mxu0
      %v2658 = vpop.f32.mrf.mxu0
      %v2659 = vadd.f32 %v671, %v2658
      %v2660 = vpop.f32.mrf.mxu0
      %2661 = vmatprep.mubr.bf16.mxu0 0
      %2662 = vmatmul.mubr.bf16.gmra.mxu0 %v1672
      %v2663 = vpop.f32.mrf.mxu0
      %v2664 = vadd.f32 %v671, %v2663
      %v2665 = vpop.f32.mrf.mxu0
      %v2666 = vpop.f32.mrf.mxu0
      %v2667 = vadd.f32 %v671, %v2666
      %v2668 = vpop.f32.mrf.mxu0
      %2669 = vmatprep.mubr.bf16.mxu0 0
      %2670 = vmatmul.mubr.bf16.gmra.mxu0 %v1675
      %v2671 = vpop.f32.mrf.mxu0
      %v2672 = vadd.f32 %v671, %v2671
      %v2673 = vpop.f32.mrf.mxu0
      %v2674 = vpop.f32.mrf.mxu0
      %v2675 = vadd.f32 %v671, %v2674
      %v2676 = vpop.f32.mrf.mxu0
      %2677 = vmatprep.mubr.bf16.mxu0 0
      %2678 = vmatmul.mubr.bf16.gmra.mxu0 %v1678
      %v2679 = vpop.f32.mrf.mxu0
      %v2680 = vadd.f32 %v671, %v2679
      %v2681 = vpop.f32.mrf.mxu0
      %v2682 = vpop.f32.mrf.mxu0
      %v2683 = vadd.f32 %v671, %v2682
      %v2684 = vpop.f32.mrf.mxu0
      %2685 = vmatprep.mubr.bf16.mxu0 0
      %2686 = vmatmul.mubr.bf16.gmra.mxu0 %v1681
      %v2687 = vpop.f32.mrf.mxu0
      %v2688 = vadd.f32 %v671, %v2687
      %v2689 = vpop.f32.mrf.mxu0
      %v2690 = vpop.f32.mrf.mxu0
      %v2691 = vadd.f32 %v671, %v2690
      %v2692 = vpop.f32.mrf.mxu0
      %2693 = vmatprep.mubr.bf16.mxu0 0
      %2694 = vmatmul.mubr.bf16.gmra.mxu0 %v1684
      %v2695 = vpop.f32.mrf.mxu0
      %v2696 = vadd.f32 %v671, %v2695
      %v2697 = vpop.f32.mrf.mxu0
      %v2698 = vpop.f32.mrf.mxu0
      %v2699 = vadd.f32 %v671, %v2698
      %v2700 = vpop.f32.mrf.mxu0
      %2701 = vmatprep.mubr.bf16.mxu0 0
      %2702 = vmatmul.mubr.bf16.gmra.mxu0 %v1687
      %v2703 = vpop.f32.mrf.mxu0
      %v2704 = vadd.f32 %v671, %v2703
      %v2705 = vpop.f32.mrf.mxu0
      %v2706 = vpop.f32.mrf.mxu0
      %v2707 = vadd.f32 %v671, %v2706
      %v2708 = vpop.f32.mrf.mxu0
      %2709 = vmatprep.mubr.bf16.mxu0 0
      %2710 = vmatmul.mubr.bf16.gmra.mxu0 %v1690
      %v2711 = vpop.f32.mrf.mxu0
      %v2712 = vadd.f32 %v671, %v2711
      %v2713 = vpop.f32.mrf.mxu0
      %v2714 = vpop.f32.mrf.mxu0
      %v2715 = vadd.f32 %v671, %v2714
      %v2716 = vpop.f32.mrf.mxu0
      %2717 = vmatprep.mubr.bf16.mxu0 0
      %2718 = vmatmul.mubr.bf16.gmra.mxu0 %v1693
      %v2719 = vpop.f32.mrf.mxu0
      %v2720 = vadd.f32 %v671, %v2719
      %v2721 = vpop.f32.mrf.mxu0
      %v2722 = vpop.f32.mrf.mxu0
      %v2723 = vadd.f32 %v671, %v2722
      %v2724 = vpop.f32.mrf.mxu0
      %2725 = vmatprep.mubr.bf16.mxu0 0
      %2726 = vmatmul.mubr.bf16.gmra.mxu0 %v1696
      %v2727 = vpop.f32.mrf.mxu0
      %v2728 = vadd.f32 %v671, %v2727
      %v2729 = vpop.f32.mrf.mxu0
      %v2730 = vpop.f32.mrf.mxu0
      %v2731 = vadd.f32 %v671, %v2730
      %v2732 = vpop.f32.mrf.mxu0
      %2733 = vmatprep.mubr.bf16.mxu0 0
      %2734 = vmatmul.mubr.bf16.gmra.mxu0 %v1699
      %v2735 = vpop.f32.mrf.mxu0
      %v2736 = vadd.f32 %v671, %v2735
      %v2737 = vpop.f32.mrf.mxu0
      %v2738 = vpop.f32.mrf.mxu0
      %v2739 = vadd.f32 %v671, %v2738
      %v2740 = vpop.f32.mrf.mxu0
      %2741 = vmatprep.mubr.bf16.mxu0 0
      %2742 = vmatmul.mubr.bf16.gmra.mxu0 %v1702
      %v2743 = vpop.f32.mrf.mxu0
      %v2744 = vadd.f32 %v671, %v2743
      %v2745 = vpop.f32.mrf.mxu0
      %v2746 = vpop.f32.mrf.mxu0
      %v2747 = vadd.f32 %v671, %v2746
      %v2748 = vpop.f32.mrf.mxu0
      %2749 = vmatprep.mubr.bf16.mxu0 0
      %2750 = vmatmul.mubr.bf16.gmra.mxu0 %v1705
      %v2751 = vpop.f32.mrf.mxu0
      %v2752 = vadd.f32 %v671, %v2751
      %v2753 = vpop.f32.mrf.mxu0
      %v2754 = vpop.f32.mrf.mxu0
      %v2755 = vadd.f32 %v671, %v2754
      %v2756 = vpop.f32.mrf.mxu0
      %2757 = vmatprep.mubr.bf16.mxu0 0
      %2758 = vmatmul.mubr.bf16.gmra.mxu0 %v1708
      %v2759 = vpop.f32.mrf.mxu0
      %v2760 = vadd.f32 %v671, %v2759
      %v2761 = vpop.f32.mrf.mxu0
      %v2762 = vpop.f32.mrf.mxu0
      %v2763 = vadd.f32 %v671, %v2762
      %v2764 = vpop.f32.mrf.mxu0
      %2765 = vmatprep.mubr.bf16.mxu0 0
      %2766 = vmatmul.mubr.bf16.gmra.mxu0 %v1711
      %v2767 = vpop.f32.mrf.mxu0
      %v2768 = vadd.f32 %v671, %v2767
      %v2769 = vpop.f32.mrf.mxu0
      %v2770 = vpop.f32.mrf.mxu0
      %v2771 = vadd.f32 %v671, %v2770
      %v2772 = vpop.f32.mrf.mxu0
      %2773 = vdwg.mxu0
      %v2774 = vmax.f32 %v1752, 0.0
      %v2775 = vmax.f32 %v1755, 0.0
      %v2776 = vmax.f32 %v1760, 0.0
      %v2777 = vmax.f32 %v1763, 0.0
      %v2778 = vmax.f32 %v1768, 0.0
      %v2779 = vmax.f32 %v1771, 0.0
      %v2780 = vmax.f32 %v1776, 0.0
      %v2781 = vmax.f32 %v1779, 0.0
      %v2782 = vmax.f32 %v1784, 0.0
      %v2783 = vmax.f32 %v1787, 0.0
      %v2784 = vmax.f32 %v1792, 0.0
      %v2785 = vmax.f32 %v1795, 0.0
      %v2786 = vmax.f32 %v1800, 0.0
      %v2787 = vmax.f32 %v1803, 0.0
      %v2788 = vmax.f32 %v1808, 0.0
      %v2789 = vmax.f32 %v1811, 0.0
      %v2790 = vmax.f32 %v1816, 0.0
      %v2791 = vmax.f32 %v1819, 0.0
      %v2792 = vmax.f32 %v1824, 0.0
      %v2793 = vmax.f32 %v1827, 0.0
      %v2794 = vmax.f32 %v1832, 0.0
      %v2795 = vmax.f32 %v1835, 0.0
      %v2796 = vmax.f32 %v1840, 0.0
      %v2797 = vmax.f32 %v1843, 0.0
      %v2798 = vmax.f32 %v1848, 0.0
      %v2799 = vmax.f32 %v1851, 0.0
      %v2800 = vmax.f32 %v1856, 0.0
      %v2801 = vmax.f32 %v1859, 0.0
      %v2802 = vmax.f32 %v1864, 0.0
      %v2803 = vmax.f32 %v1867, 0.0
      %v2804 = vmax.f32 %v1872, 0.0
      %v2805 = vmax.f32 %v1875, 0.0
      %v2806 = vmax.f32 %v1880, 0.0
      %v2807 = vmax.f32 %v1883, 0.0
      %v2808 = vmax.f32 %v1888, 0.0
      %v2809 = vmax.f32 %v1891, 0.0
      %v2810 = vmax.f32 %v1896, 0.0
      %v2811 = vmax.f32 %v1899, 0.0
      %v2812 = vmax.f32 %v1904, 0.0
      %v2813 = vmax.f32 %v1907, 0.0
      %v2814 = vmax.f32 %v1912, 0.0
      %v2815 = vmax.f32 %v1915, 0.0
      %v2816 = vmax.f32 %v1920, 0.0
      %v2817 = vmax.f32 %v1923, 0.0
      %v2818 = vmax.f32 %v1928, 0.0
      %v2819 = vmax.f32 %v1931, 0.0
      %v2820 = vmax.f32 %v1936, 0.0
      %v2821 = vmax.f32 %v1939, 0.0
      %v2822 = vmax.f32 %v1944, 0.0
      %v2823 = vmax.f32 %v1947, 0.0
      %v2824 = vmax.f32 %v1952, 0.0
      %v2825 = vmax.f32 %v1955, 0.0
      %v2826 = vmax.f32 %v1960, 0.0
      %v2827 = vmax.f32 %v1963, 0.0
      %v2828 = vmax.f32 %v1968, 0.0
      %v2829 = vmax.f32 %v1971, 0.0
      %v2830 = vmax.f32 %v1976, 0.0
      %v2831 = vmax.f32 %v1979, 0.0
      %v2832 = vmax.f32 %v1984, 0.0
      %v2833 = vmax.f32 %v1987, 0.0
      %v2834 = vmax.f32 %v1992, 0.0
      %v2835 = vmax.f32 %v1995, 0.0
      %v2836 = vmax.f32 %v2000, 0.0
      %v2837 = vmax.f32 %v2003, 0.0
      %v2838 = vmax.f32 %v2008, 0.0
      %v2839 = vmax.f32 %v2011, 0.0
      %v2840 = vmax.f32 %v2016, 0.0
      %v2841 = vmax.f32 %v2019, 0.0
      %v2842 = vmax.f32 %v2024, 0.0
      %v2843 = vmax.f32 %v2027, 0.0
      %v2844 = vmax.f32 %v2032, 0.0
      %v2845 = vmax.f32 %v2035, 0.0
      %v2846 = vmax.f32 %v2040, 0.0
      %v2847 = vmax.f32 %v2043, 0.0
      %v2848 = vmax.f32 %v2048, 0.0
      %v2849 = vmax.f32 %v2051, 0.0
      %v2850 = vmax.f32 %v2056, 0.0
      %v2851 = vmax.f32 %v2059, 0.0
      %v2852 = vmax.f32 %v2064, 0.0
      %v2853 = vmax.f32 %v2067, 0.0
      %v2854 = vmax.f32 %v2072, 0.0
      %v2855 = vmax.f32 %v2075, 0.0
      %v2856 = vmax.f32 %v2080, 0.0
      %v2857 = vmax.f32 %v2083, 0.0
      %v2858 = vmax.f32 %v2088, 0.0
      %v2859 = vmax.f32 %v2091, 0.0
      %v2860 = vmax.f32 %v2096, 0.0
      %v2861 = vmax.f32 %v2099, 0.0
      %v2862 = vmax.f32 %v2104, 0.0
      %v2863 = vmax.f32 %v2107, 0.0
      %v2864 = vmax.f32 %v2112, 0.0
      %v2865 = vmax.f32 %v2115, 0.0
      %v2866 = vmax.f32 %v2120, 0.0
      %v2867 = vmax.f32 %v2123, 0.0
      %v2868 = vmax.f32 %v2128, 0.0
      %v2869 = vmax.f32 %v2131, 0.0
      %v2870 = vmax.f32 %v2136, 0.0
      %v2871 = vmax.f32 %v2139, 0.0
      %v2872 = vmax.f32 %v2144, 0.0
      %v2873 = vmax.f32 %v2147, 0.0
      %v2874 = vmax.f32 %v2152, 0.0
      %v2875 = vmax.f32 %v2155, 0.0
      %v2876 = vmax.f32 %v2160, 0.0
      %v2877 = vmax.f32 %v2163, 0.0
      %v2878 = vmax.f32 %v2168, 0.0
      %v2879 = vmax.f32 %v2171, 0.0
      %v2880 = vmax.f32 %v2176, 0.0
      %v2881 = vmax.f32 %v2179, 0.0
      %v2882 = vmax.f32 %v2184, 0.0
      %v2883 = vmax.f32 %v2187, 0.0
      %v2884 = vmax.f32 %v2192, 0.0
      %v2885 = vmax.f32 %v2195, 0.0
      %v2886 = vmax.f32 %v2200, 0.0
      %v2887 = vmax.f32 %v2203, 0.0
      %v2888 = vmax.f32 %v2208, 0.0
      %v2889 = vmax.f32 %v2211, 0.0
      %v2890 = vmax.f32 %v2216, 0.0
      %v2891 = vmax.f32 %v2219, 0.0
      %v2892 = vmax.f32 %v2224, 0.0
      %v2893 = vmax.f32 %v2227, 0.0
      %v2894 = vmax.f32 %v2232, 0.0
      %v2895 = vmax.f32 %v2235, 0.0
      %v2896 = vmax.f32 %v2240, 0.0
      %v2897 = vmax.f32 %v2243, 0.0
      %v2898 = vmax.f32 %v2248, 0.0
      %v2899 = vmax.f32 %v2251, 0.0
      %v2900 = vmax.f32 %v2256, 0.0
      %v2901 = vmax.f32 %v2259, 0.0
      %v2902 = vmax.f32 %v2264, 0.0
      %v2903 = vmax.f32 %v2267, 0.0
      %v2904 = vmax.f32 %v2272, 0.0
      %v2905 = vmax.f32 %v2275, 0.0
      %v2906 = vmax.f32 %v2280, 0.0
      %v2907 = vmax.f32 %v2283, 0.0
      %v2908 = vmax.f32 %v2288, 0.0
      %v2909 = vmax.f32 %v2291, 0.0
      %v2910 = vmax.f32 %v2296, 0.0
      %v2911 = vmax.f32 %v2299, 0.0
      %v2912 = vmax.f32 %v2304, 0.0
      %v2913 = vmax.f32 %v2307, 0.0
      %v2914 = vmax.f32 %v2312, 0.0
      %v2915 = vmax.f32 %v2315, 0.0
      %v2916 = vmax.f32 %v2320, 0.0
      %v2917 = vmax.f32 %v2323, 0.0
      %v2918 = vmax.f32 %v2328, 0.0
      %v2919 = vmax.f32 %v2331, 0.0
      %v2920 = vmax.f32 %v2336, 0.0
      %v2921 = vmax.f32 %v2339, 0.0
      %v2922 = vmax.f32 %v2344, 0.0
      %v2923 = vmax.f32 %v2347, 0.0
      %v2924 = vmax.f32 %v2352, 0.0
      %v2925 = vmax.f32 %v2355, 0.0
      %v2926 = vmax.f32 %v2360, 0.0
      %v2927 = vmax.f32 %v2363, 0.0
      %v2928 = vmax.f32 %v2368, 0.0
      %v2929 = vmax.f32 %v2371, 0.0
      %v2930 = vmax.f32 %v2376, 0.0
      %v2931 = vmax.f32 %v2379, 0.0
      %v2932 = vmax.f32 %v2384, 0.0
      %v2933 = vmax.f32 %v2387, 0.0
      %v2934 = vmax.f32 %v2392, 0.0
      %v2935 = vmax.f32 %v2395, 0.0
      %v2936 = vmax.f32 %v2400, 0.0
      %v2937 = vmax.f32 %v2403, 0.0
      %v2938 = vmax.f32 %v2408, 0.0
      %v2939 = vmax.f32 %v2411, 0.0
      %v2940 = vmax.f32 %v2416, 0.0
      %v2941 = vmax.f32 %v2419, 0.0
      %v2942 = vmax.f32 %v2424, 0.0
      %v2943 = vmax.f32 %v2427, 0.0
      %v2944 = vmax.f32 %v2432, 0.0
      %v2945 = vmax.f32 %v2435, 0.0
      %v2946 = vmax.f32 %v2440, 0.0
      %v2947 = vmax.f32 %v2443, 0.0
      %v2948 = vmax.f32 %v2448, 0.0
      %v2949 = vmax.f32 %v2451, 0.0
      %v2950 = vmax.f32 %v2456, 0.0
      %v2951 = vmax.f32 %v2459, 0.0
      %v2952 = vmax.f32 %v2464, 0.0
      %v2953 = vmax.f32 %v2467, 0.0
      %v2954 = vmax.f32 %v2472, 0.0
      %v2955 = vmax.f32 %v2475, 0.0
      %v2956 = vmax.f32 %v2480, 0.0
      %v2957 = vmax.f32 %v2483, 0.0
      %v2958 = vmax.f32 %v2488, 0.0
      %v2959 = vmax.f32 %v2491, 0.0
      %v2960 = vmax.f32 %v2496, 0.0
      %v2961 = vmax.f32 %v2499, 0.0
      %v2962 = vmax.f32 %v2504, 0.0
      %v2963 = vmax.f32 %v2507, 0.0
      %v2964 = vmax.f32 %v2512, 0.0
      %v2965 = vmax.f32 %v2515, 0.0
      %v2966 = vmax.f32 %v2520, 0.0
      %v2967 = vmax.f32 %v2523, 0.0
      %v2968 = vmax.f32 %v2528, 0.0
      %v2969 = vmax.f32 %v2531, 0.0
      %v2970 = vmax.f32 %v2536, 0.0
      %v2971 = vmax.f32 %v2539, 0.0
      %v2972 = vmax.f32 %v2544, 0.0
      %v2973 = vmax.f32 %v2547, 0.0
      %v2974 = vmax.f32 %v2552, 0.0
      %v2975 = vmax.f32 %v2555, 0.0
      %v2976 = vmax.f32 %v2560, 0.0
      %v2977 = vmax.f32 %v2563, 0.0
      %v2978 = vmax.f32 %v2568, 0.0
      %v2979 = vmax.f32 %v2571, 0.0
      %v2980 = vmax.f32 %v2576, 0.0
      %v2981 = vmax.f32 %v2579, 0.0
      %v2982 = vmax.f32 %v2584, 0.0
      %v2983 = vmax.f32 %v2587, 0.0
      %v2984 = vmax.f32 %v2592, 0.0
      %v2985 = vmax.f32 %v2595, 0.0
      %v2986 = vmax.f32 %v2600, 0.0
      %v2987 = vmax.f32 %v2603, 0.0
      %v2988 = vmax.f32 %v2608, 0.0
      %v2989 = vmax.f32 %v2611, 0.0
      %v2990 = vmax.f32 %v2616, 0.0
      %v2991 = vmax.f32 %v2619, 0.0
      %v2992 = vmax.f32 %v2624, 0.0
      %v2993 = vmax.f32 %v2627, 0.0
      %v2994 = vmax.f32 %v2632, 0.0
      %v2995 = vmax.f32 %v2635, 0.0
      %v2996 = vmax.f32 %v2640, 0.0
      %v2997 = vmax.f32 %v2643, 0.0
      %v2998 = vmax.f32 %v2648, 0.0
      %v2999 = vmax.f32 %v2651, 0.0
      %v3000 = vmax.f32 %v2656, 0.0
      %v3001 = vmax.f32 %v2659, 0.0
      %v3002 = vmax.f32 %v2664, 0.0
      %v3003 = vmax.f32 %v2667, 0.0
      %v3004 = vmax.f32 %v2672, 0.0
      %v3005 = vmax.f32 %v2675, 0.0
      %v3006 = vmax.f32 %v2680, 0.0
      %v3007 = vmax.f32 %v2683, 0.0
      %v3008 = vmax.f32 %v2688, 0.0
      %v3009 = vmax.f32 %v2691, 0.0
      %v3010 = vmax.f32 %v2696, 0.0
      %v3011 = vmax.f32 %v2699, 0.0
      %v3012 = vmax.f32 %v2704, 0.0
      %v3013 = vmax.f32 %v2707, 0.0
      %v3014 = vmax.f32 %v2712, 0.0
      %v3015 = vmax.f32 %v2715, 0.0
      %v3016 = vmax.f32 %v2720, 0.0
      %v3017 = vmax.f32 %v2723, 0.0
      %v3018 = vmax.f32 %v2728, 0.0
      %v3019 = vmax.f32 %v2731, 0.0
      %v3020 = vmax.f32 %v2736, 0.0
      %v3021 = vmax.f32 %v2739, 0.0
      %v3022 = vmax.f32 %v2744, 0.0
      %v3023 = vmax.f32 %v2747, 0.0
      %v3024 = vmax.f32 %v2752, 0.0
      %v3025 = vmax.f32 %v2755, 0.0
      %v3026 = vmax.f32 %v2760, 0.0
      %v3027 = vmax.f32 %v2763, 0.0
      %v3028 = vmax.f32 %v2768, 0.0
      %v3029 = vmax.f32 %v2771, 0.0
      %v3030 = vlaneseq
      %v3031 = vshrl.u32 %v3030, 7
      %v3032 = vlaneseq
      %v3033 = vand.u32 %v3032, 127
      %v3034 = vadd.s32 %v3033, 128
      %v3035 = vadd.s32 %v3033, 256
      %v3036 = vadd.s32 %v3033, 384
      %v3037 = vadd.s32 %v3033, 512
      %v3038 = vadd.s32 %v3033, 640
      %v3039 = vadd.s32 %v3033, 768
      %v3040 = vadd.s32 %v3033, 896
      %v3041 = vadd.s32 %v3033, 1024
      %v3042 = vadd.s32 %v3033, 1152
      %v3043 = vadd.s32 %v3033, 1280
      %v3044 = vadd.s32 %v3033, 1408
      %v3045 = vadd.s32 %v3033, 1536
      %v3046 = vadd.s32 %v3033, 1664
      %v3047 = vadd.s32 %v3033, 1792
      %v3048 = vadd.s32 %v3033, 1920
      %v3049 = vmul.u32 %v3031, 256
      %vm3050 = vcmp.ge.s32.totalorder %v3033, %v3049
      %vm3051 = vcmp.ge.s32.totalorder %v3034, %v3049
      %vm3052 = vcmp.ge.s32.totalorder %v3035, %v3049
      %vm3053 = vcmp.ge.s32.totalorder %v3036, %v3049
      %vm3054 = vcmp.ge.s32.totalorder %v3037, %v3049
      %vm3055 = vcmp.ge.s32.totalorder %v3038, %v3049
      %vm3056 = vcmp.ge.s32.totalorder %v3039, %v3049
      %vm3057 = vcmp.ge.s32.totalorder %v3040, %v3049
      %vm3058 = vcmp.ge.s32.totalorder %v3041, %v3049
      %vm3059 = vcmp.ge.s32.totalorder %v3042, %v3049
      %vm3060 = vcmp.ge.s32.totalorder %v3043, %v3049
      %vm3061 = vcmp.ge.s32.totalorder %v3044, %v3049
      %vm3062 = vcmp.ge.s32.totalorder %v3045, %v3049
      %vm3063 = vcmp.ge.s32.totalorder %v3046, %v3049
      %vm3064 = vcmp.ge.s32.totalorder %v3047, %v3049
      %vm3065 = vcmp.ge.s32.totalorder %v3048, %v3049
      %v3066 = vadd.s32 %v3031, 1
      %v3067 = vmul.u32 %v3066, 256
      %vm3068 = vcmp.lt.s32.totalorder %v3033, %v3067
      %vm3069 = vcmp.lt.s32.totalorder %v3034, %v3067
      %vm3070 = vcmp.lt.s32.totalorder %v3035, %v3067
      %vm3071 = vcmp.lt.s32.totalorder %v3036, %v3067
      %vm3072 = vcmp.lt.s32.totalorder %v3037, %v3067
      %vm3073 = vcmp.lt.s32.totalorder %v3038, %v3067
      %vm3074 = vcmp.lt.s32.totalorder %v3039, %v3067
      %vm3075 = vcmp.lt.s32.totalorder %v3040, %v3067
      %vm3076 = vcmp.lt.s32.totalorder %v3041, %v3067
      %vm3077 = vcmp.lt.s32.totalorder %v3042, %v3067
      %vm3078 = vcmp.lt.s32.totalorder %v3043, %v3067
      %vm3079 = vcmp.lt.s32.totalorder %v3044, %v3067
      %vm3080 = vcmp.lt.s32.totalorder %v3045, %v3067
      %vm3081 = vcmp.lt.s32.totalorder %v3046, %v3067
      %vm3082 = vcmp.lt.s32.totalorder %v3047, %v3067
      %vm3083 = vcmp.lt.s32.totalorder %v3048, %v3067
      %vm3084 = vmand %vm3050, %vm3068
      %vm3085 = vmand %vm3051, %vm3069
      %vm3086 = vmand %vm3052, %vm3070
      %vm3087 = vmand %vm3053, %vm3071
      %vm3088 = vmand %vm3054, %vm3072
      %vm3089 = vmand %vm3055, %vm3073
      %vm3090 = vmand %vm3056, %vm3074
      %vm3091 = vmand %vm3057, %vm3075
      %vm3092 = vmand %vm3058, %vm3076
      %vm3093 = vmand %vm3059, %vm3077
      %vm3094 = vmand %vm3060, %vm3078
      %vm3095 = vmand %vm3061, %vm3079
      %vm3096 = vmand %vm3062, %vm3080
      %vm3097 = vmand %vm3063, %vm3081
      %vm3098 = vmand %vm3064, %vm3082
      %vm3099 = vmand %vm3065, %vm3083
      %v3100 = vsel %vm3084, 0.00390625, 0.0
      %v3101 = vsel %vm3085, 0.00390625, 0.0
      %v3102 = vsel %vm3086, 0.00390625, 0.0
      %v3103 = vsel %vm3087, 0.00390625, 0.0
      %v3104 = vsel %vm3088, 0.00390625, 0.0
      %v3105 = vsel %vm3089, 0.00390625, 0.0
      %v3106 = vsel %vm3090, 0.00390625, 0.0
      %v3107 = vsel %vm3091, 0.00390625, 0.0
      %v3108 = vsel %vm3092, 0.00390625, 0.0
      %v3109 = vsel %vm3093, 0.00390625, 0.0
      %v3110 = vsel %vm3094, 0.00390625, 0.0
      %v3111 = vsel %vm3095, 0.00390625, 0.0
      %v3112 = vsel %vm3096, 0.00390625, 0.0
      %v3113 = vsel %vm3097, 0.00390625, 0.0
      %v3114 = vsel %vm3098, 0.00390625, 0.0
      %v3115 = vsel %vm3099, 0.00390625, 0.0
      %3116 = vmatprep.subr.mxu0 0.0
      %3117 = vmatpush1.msra.mxu0 %v2789
      %3118 = vmatprep.subr.mxu0 0.0
      %3119 = vmatpush1.msra.mxu0 %v2788
      %3120 = vmatprep.subr.mxu0 0.0
      %3121 = vmatpush1.msra.mxu0 %v2787
      %3122 = vmatprep.subr.mxu0 0.0
      %3123 = vmatpush1.msra.mxu0 %v2786
      %3124 = vmatprep.subr.mxu0 0.0
      %3125 = vmatpush1.msra.mxu0 %v2785
      %3126 = vmatprep.subr.mxu0 0.0
      %3127 = vmatpush1.msra.mxu0 %v2784
      %3128 = vmatprep.subr.mxu0 0.0
      %3129 = vmatpush1.msra.mxu0 %v2783
      %3130 = vmatprep.subr.mxu0 0.0
      %3131 = vmatpush1.msra.mxu0 %v2782
      %3132 = vmatprep.subr.mxu0 0.0
      %3133 = vmatpush1.msra.mxu0 %v2781
      %3134 = vmatprep.subr.mxu0 0.0
      %3135 = vmatpush1.msra.mxu0 %v2780
      %3136 = vmatprep.subr.mxu0 0.0
      %3137 = vmatpush1.msra.mxu0 %v2779
      %3138 = vmatprep.subr.mxu0 0.0
      %3139 = vmatpush1.msra.mxu0 %v2778
      %3140 = vmatprep.subr.mxu0 0.0
      %3141 = vmatpush1.msra.mxu0 %v2777
      %3142 = vmatprep.subr.mxu0 0.0
      %3143 = vmatpush1.msra.mxu0 %v2776
      %3144 = vmatprep.subr.mxu0 0.0
      %3145 = vmatpush1.msra.mxu0 %v2775
      %3146 = vmatprep.subr.mxu0 0.0
      %3147 = vmatpush1.msra.mxu0 %v2774
      %3148 = vmatprep.subr.mxu0 0.0
      %3149 = vmatpush2.msra.mxu0 %v2805
      %3150 = vmatprep.subr.mxu0 0.0
      %3151 = vmatpush2.msra.mxu0 %v2804
      %3152 = vmatprep.subr.mxu0 0.0
      %3153 = vmatpush2.msra.mxu0 %v2803
      %3154 = vmatprep.subr.mxu0 0.0
      %3155 = vmatpush2.msra.mxu0 %v2802
      %3156 = vmatprep.subr.mxu0 0.0
      %3157 = vmatpush2.msra.mxu0 %v2801
      %3158 = vmatprep.subr.mxu0 0.0
      %3159 = vmatpush2.msra.mxu0 %v2800
      %3160 = vmatprep.subr.mxu0 0.0
      %3161 = vmatpush2.msra.mxu0 %v2799
      %3162 = vmatprep.subr.mxu0 0.0
      %3163 = vmatpush2.msra.mxu0 %v2798
      %3164 = vmatprep.subr.mxu0 0.0
      %3165 = vmatpush2.msra.mxu0 %v2797
      %3166 = vmatprep.subr.mxu0 0.0
      %3167 = vmatpush2.msra.mxu0 %v2796
      %3168 = vmatprep.subr.mxu0 0.0
      %3169 = vmatpush2.msra.mxu0 %v2795
      %3170 = vmatprep.subr.mxu0 0.0
      %3171 = vmatpush2.msra.mxu0 %v2794
      %3172 = vmatprep.subr.mxu0 0.0
      %3173 = vmatpush2.msra.mxu0 %v2793
      %3174 = vmatprep.subr.mxu0 0.0
      %3175 = vmatpush2.msra.mxu0 %v2792
      %3176 = vmatprep.subr.mxu0 0.0
      %3177 = vmatpush2.msra.mxu0 %v2791
      %3178 = vmatprep.subr.mxu0 0.0
      %3179 = vmatpush2.msra.mxu0 %v2790
      %3180 = vmatprep.mubr.f32.mxu0 %v3101
      %3181 = vmatmul.mubr.f32.gmra.mxu0 %v3100
      %v3182 = vpop.f32.mrf.mxu0
      %v3183 = vadd.f32 0.0, %v3182
      %v3184 = vpop.f32.mrf.mxu0
      %3185 = vdwg.mxu0
      %3186 = vmatprep.subr.mxu0 0.0
      %3187 = vmatpush1.msra.mxu0 %v2821
      %3188 = vmatprep.subr.mxu0 0.0
      %3189 = vmatpush1.msra.mxu0 %v2820
      %3190 = vmatprep.subr.mxu0 0.0
      %3191 = vmatpush1.msra.mxu0 %v2819
      %3192 = vmatprep.subr.mxu0 0.0
      %3193 = vmatpush1.msra.mxu0 %v2818
      %3194 = vmatprep.subr.mxu0 0.0
      %3195 = vmatpush1.msra.mxu0 %v2817
      %3196 = vmatprep.subr.mxu0 0.0
      %3197 = vmatpush1.msra.mxu0 %v2816
      %3198 = vmatprep.subr.mxu0 0.0
      %3199 = vmatpush1.msra.mxu0 %v2815
      %3200 = vmatprep.subr.mxu0 0.0
      %3201 = vmatpush1.msra.mxu0 %v2814
      %3202 = vmatprep.subr.mxu0 0.0
      %3203 = vmatpush1.msra.mxu0 %v2813
      %3204 = vmatprep.subr.mxu0 0.0
      %3205 = vmatpush1.msra.mxu0 %v2812
      %3206 = vmatprep.subr.mxu0 0.0
      %3207 = vmatpush1.msra.mxu0 %v2811
      %3208 = vmatprep.subr.mxu0 0.0
      %3209 = vmatpush1.msra.mxu0 %v2810
      %3210 = vmatprep.subr.mxu0 0.0
      %3211 = vmatpush1.msra.mxu0 %v2809
      %3212 = vmatprep.subr.mxu0 0.0
      %3213 = vmatpush1.msra.mxu0 %v2808
      %3214 = vmatprep.subr.mxu0 0.0
      %3215 = vmatpush1.msra.mxu0 %v2807
      %3216 = vmatprep.subr.mxu0 0.0
      %3217 = vmatpush1.msra.mxu0 %v2806
      %3218 = vmatprep.subr.mxu0 0.0
      %3219 = vmatpush2.msra.mxu0 %v2837
      %3220 = vmatprep.subr.mxu0 0.0
      %3221 = vmatpush2.msra.mxu0 %v2836
      %3222 = vmatprep.subr.mxu0 0.0
      %3223 = vmatpush2.msra.mxu0 %v2835
      %3224 = vmatprep.subr.mxu0 0.0
      %3225 = vmatpush2.msra.mxu0 %v2834
      %3226 = vmatprep.subr.mxu0 0.0
      %3227 = vmatpush2.msra.mxu0 %v2833
      %3228 = vmatprep.subr.mxu0 0.0
      %3229 = vmatpush2.msra.mxu0 %v2832
      %3230 = vmatprep.subr.mxu0 0.0
      %3231 = vmatpush2.msra.mxu0 %v2831
      %3232 = vmatprep.subr.mxu0 0.0
      %3233 = vmatpush2.msra.mxu0 %v2830
      %3234 = vmatprep.subr.mxu0 0.0
      %3235 = vmatpush2.msra.mxu0 %v2829
      %3236 = vmatprep.subr.mxu0 0.0
      %3237 = vmatpush2.msra.mxu0 %v2828
      %3238 = vmatprep.subr.mxu0 0.0
      %3239 = vmatpush2.msra.mxu0 %v2827
      %3240 = vmatprep.subr.mxu0 0.0
      %3241 = vmatpush2.msra.mxu0 %v2826
      %3242 = vmatprep.subr.mxu0 0.0
      %3243 = vmatpush2.msra.mxu0 %v2825
      %3244 = vmatprep.subr.mxu0 0.0
      %3245 = vmatpush2.msra.mxu0 %v2824
      %3246 = vmatprep.subr.mxu0 0.0
      %3247 = vmatpush2.msra.mxu0 %v2823
      %3248 = vmatprep.subr.mxu0 0.0
      %3249 = vmatpush2.msra.mxu0 %v2822
      %3250 = vmatprep.mubr.f32.mxu0 %v3103
      %3251 = vmatmul.mubr.f32.gmra.mxu0 %v3102
      %v3252 = vpop.f32.mrf.mxu0
      %v3253 = vadd.f32 %v3183, %v3252
      %v3254 = vpop.f32.mrf.mxu0
      %3255 = vdwg.mxu0
      %3256 = vmatprep.subr.mxu0 0.0
      %3257 = vmatpush1.msra.mxu0 %v2853
      %3258 = vmatprep.subr.mxu0 0.0
      %3259 = vmatpush1.msra.mxu0 %v2852
      %3260 = vmatprep.subr.mxu0 0.0
      %3261 = vmatpush1.msra.mxu0 %v2851
      %3262 = vmatprep.subr.mxu0 0.0
      %3263 = vmatpush1.msra.mxu0 %v2850
      %3264 = vmatprep.subr.mxu0 0.0
      %3265 = vmatpush1.msra.mxu0 %v2849
      %3266 = vmatprep.subr.mxu0 0.0
      %3267 = vmatpush1.msra.mxu0 %v2848
      %3268 = vmatprep.subr.mxu0 0.0
      %3269 = vmatpush1.msra.mxu0 %v2847
      %3270 = vmatprep.subr.mxu0 0.0
      %3271 = vmatpush1.msra.mxu0 %v2846
      %3272 = vmatprep.subr.mxu0 0.0
      %3273 = vmatpush1.msra.mxu0 %v2845
      %3274 = vmatprep.subr.mxu0 0.0
      %3275 = vmatpush1.msra.mxu0 %v2844
      %3276 = vmatprep.subr.mxu0 0.0
      %3277 = vmatpush1.msra.mxu0 %v2843
      %3278 = vmatprep.subr.mxu0 0.0
      %3279 = vmatpush1.msra.mxu0 %v2842
      %3280 = vmatprep.subr.mxu0 0.0
      %3281 = vmatpush1.msra.mxu0 %v2841
      %3282 = vmatprep.subr.mxu0 0.0
      %3283 = vmatpush1.msra.mxu0 %v2840
      %3284 = vmatprep.subr.mxu0 0.0
      %3285 = vmatpush1.msra.mxu0 %v2839
      %3286 = vmatprep.subr.mxu0 0.0
      %3287 = vmatpush1.msra.mxu0 %v2838
      %3288 = vmatprep.subr.mxu0 0.0
      %3289 = vmatpush2.msra.mxu0 %v2869
      %3290 = vmatprep.subr.mxu0 0.0
      %3291 = vmatpush2.msra.mxu0 %v2868
      %3292 = vmatprep.subr.mxu0 0.0
      %3293 = vmatpush2.msra.mxu0 %v2867
      %3294 = vmatprep.subr.mxu0 0.0
      %3295 = vmatpush2.msra.mxu0 %v2866
      %3296 = vmatprep.subr.mxu0 0.0
      %3297 = vmatpush2.msra.mxu0 %v2865
      %3298 = vmatprep.subr.mxu0 0.0
      %3299 = vmatpush2.msra.mxu0 %v2864
      %3300 = vmatprep.subr.mxu0 0.0
      %3301 = vmatpush2.msra.mxu0 %v2863
      %3302 = vmatprep.subr.mxu0 0.0
      %3303 = vmatpush2.msra.mxu0 %v2862
      %3304 = vmatprep.subr.mxu0 0.0
      %3305 = vmatpush2.msra.mxu0 %v2861
      %3306 = vmatprep.subr.mxu0 0.0
      %3307 = vmatpush2.msra.mxu0 %v2860
      %3308 = vmatprep.subr.mxu0 0.0
      %3309 = vmatpush2.msra.mxu0 %v2859
      %3310 = vmatprep.subr.mxu0 0.0
      %3311 = vmatpush2.msra.mxu0 %v2858
      %3312 = vmatprep.subr.mxu0 0.0
      %3313 = vmatpush2.msra.mxu0 %v2857
      %3314 = vmatprep.subr.mxu0 0.0
      %3315 = vmatpush2.msra.mxu0 %v2856
      %3316 = vmatprep.subr.mxu0 0.0
      %3317 = vmatpush2.msra.mxu0 %v2855
      %3318 = vmatprep.subr.mxu0 0.0
      %3319 = vmatpush2.msra.mxu0 %v2854
      %3320 = vmatprep.mubr.f32.mxu0 %v3105
      %3321 = vmatmul.mubr.f32.gmra.mxu0 %v3104
      %v3322 = vpop.f32.mrf.mxu0
      %v3323 = vadd.f32 %v3253, %v3322
      %v3324 = vpop.f32.mrf.mxu0
      %3325 = vdwg.mxu0
      %3326 = vmatprep.subr.mxu0 0.0
      %3327 = vmatpush1.msra.mxu0 %v2885
      %3328 = vmatprep.subr.mxu0 0.0
      %3329 = vmatpush1.msra.mxu0 %v2884
      %3330 = vmatprep.subr.mxu0 0.0
      %3331 = vmatpush1.msra.mxu0 %v2883
      %3332 = vmatprep.subr.mxu0 0.0
      %3333 = vmatpush1.msra.mxu0 %v2882
      %3334 = vmatprep.subr.mxu0 0.0
      %3335 = vmatpush1.msra.mxu0 %v2881
      %3336 = vmatprep.subr.mxu0 0.0
      %3337 = vmatpush1.msra.mxu0 %v2880
      %3338 = vmatprep.subr.mxu0 0.0
      %3339 = vmatpush1.msra.mxu0 %v2879
      %3340 = vmatprep.subr.mxu0 0.0
      %3341 = vmatpush1.msra.mxu0 %v2878
      %3342 = vmatprep.subr.mxu0 0.0
      %3343 = vmatpush1.msra.mxu0 %v2877
      %3344 = vmatprep.subr.mxu0 0.0
      %3345 = vmatpush1.msra.mxu0 %v2876
      %3346 = vmatprep.subr.mxu0 0.0
      %3347 = vmatpush1.msra.mxu0 %v2875
      %3348 = vmatprep.subr.mxu0 0.0
      %3349 = vmatpush1.msra.mxu0 %v2874
      %3350 = vmatprep.subr.mxu0 0.0
      %3351 = vmatpush1.msra.mxu0 %v2873
      %3352 = vmatprep.subr.mxu0 0.0
      %3353 = vmatpush1.msra.mxu0 %v2872
      %3354 = vmatprep.subr.mxu0 0.0
      %3355 = vmatpush1.msra.mxu0 %v2871
      %3356 = vmatprep.subr.mxu0 0.0
      %3357 = vmatpush1.msra.mxu0 %v2870
      %3358 = vmatprep.subr.mxu0 0.0
      %3359 = vmatpush2.msra.mxu0 %v2901
      %3360 = vmatprep.subr.mxu0 0.0
      %3361 = vmatpush2.msra.mxu0 %v2900
      %3362 = vmatprep.subr.mxu0 0.0
      %3363 = vmatpush2.msra.mxu0 %v2899
      %3364 = vmatprep.subr.mxu0 0.0
      %3365 = vmatpush2.msra.mxu0 %v2898
      %3366 = vmatprep.subr.mxu0 0.0
      %3367 = vmatpush2.msra.mxu0 %v2897
      %3368 = vmatprep.subr.mxu0 0.0
      %3369 = vmatpush2.msra.mxu0 %v2896
      %3370 = vmatprep.subr.mxu0 0.0
      %3371 = vmatpush2.msra.mxu0 %v2895
      %3372 = vmatprep.subr.mxu0 0.0
      %3373 = vmatpush2.msra.mxu0 %v2894
      %3374 = vmatprep.subr.mxu0 0.0
      %3375 = vmatpush2.msra.mxu0 %v2893
      %3376 = vmatprep.subr.mxu0 0.0
      %3377 = vmatpush2.msra.mxu0 %v2892
      %3378 = vmatprep.subr.mxu0 0.0
      %3379 = vmatpush2.msra.mxu0 %v2891
      %3380 = vmatprep.subr.mxu0 0.0
      %3381 = vmatpush2.msra.mxu0 %v2890
      %3382 = vmatprep.subr.mxu0 0.0
      %3383 = vmatpush2.msra.mxu0 %v2889
      %3384 = vmatprep.subr.mxu0 0.0
      %3385 = vmatpush2.msra.mxu0 %v2888
      %3386 = vmatprep.subr.mxu0 0.0
      %3387 = vmatpush2.msra.mxu0 %v2887
      %3388 = vmatprep.subr.mxu0 0.0
      %3389 = vmatpush2.msra.mxu0 %v2886
      %3390 = vmatprep.mubr.f32.mxu0 %v3107
      %3391 = vmatmul.mubr.f32.gmra.mxu0 %v3106
      %v3392 = vpop.f32.mrf.mxu0
      %v3393 = vadd.f32 %v3323, %v3392
      %v3394 = vpop.f32.mrf.mxu0
      %3395 = vdwg.mxu0
      %3396 = vmatprep.subr.mxu0 0.0
      %3397 = vmatpush1.msra.mxu0 %v2917
      %3398 = vmatprep.subr.mxu0 0.0
      %3399 = vmatpush1.msra.mxu0 %v2916
      %3400 = vmatprep.subr.mxu0 0.0
      %3401 = vmatpush1.msra.mxu0 %v2915
      %3402 = vmatprep.subr.mxu0 0.0
      %3403 = vmatpush1.msra.mxu0 %v2914
      %3404 = vmatprep.subr.mxu0 0.0
      %3405 = vmatpush1.msra.mxu0 %v2913
      %3406 = vmatprep.subr.mxu0 0.0
      %3407 = vmatpush1.msra.mxu0 %v2912
      %3408 = vmatprep.subr.mxu0 0.0
      %3409 = vmatpush1.msra.mxu0 %v2911
      %3410 = vmatprep.subr.mxu0 0.0
      %3411 = vmatpush1.msra.mxu0 %v2910
      %3412 = vmatprep.subr.mxu0 0.0
      %3413 = vmatpush1.msra.mxu0 %v2909
      %3414 = vmatprep.subr.mxu0 0.0
      %3415 = vmatpush1.msra.mxu0 %v2908
      %3416 = vmatprep.subr.mxu0 0.0
      %3417 = vmatpush1.msra.mxu0 %v2907
      %3418 = vmatprep.subr.mxu0 0.0
      %3419 = vmatpush1.msra.mxu0 %v2906
      %3420 = vmatprep.subr.mxu0 0.0
      %3421 = vmatpush1.msra.mxu0 %v2905
      %3422 = vmatprep.subr.mxu0 0.0
      %3423 = vmatpush1.msra.mxu0 %v2904
      %3424 = vmatprep.subr.mxu0 0.0
      %3425 = vmatpush1.msra.mxu0 %v2903
      %3426 = vmatprep.subr.mxu0 0.0
      %3427 = vmatpush1.msra.mxu0 %v2902
      %3428 = vmatprep.subr.mxu0 0.0
      %3429 = vmatpush2.msra.mxu0 %v2933
      %3430 = vmatprep.subr.mxu0 0.0
      %3431 = vmatpush2.msra.mxu0 %v2932
      %3432 = vmatprep.subr.mxu0 0.0
      %3433 = vmatpush2.msra.mxu0 %v2931
      %3434 = vmatprep.subr.mxu0 0.0
      %3435 = vmatpush2.msra.mxu0 %v2930
      %3436 = vmatprep.subr.mxu0 0.0
      %3437 = vmatpush2.msra.mxu0 %v2929
      %3438 = vmatprep.subr.mxu0 0.0
      %3439 = vmatpush2.msra.mxu0 %v2928
      %3440 = vmatprep.subr.mxu0 0.0
      %3441 = vmatpush2.msra.mxu0 %v2927
      %3442 = vmatprep.subr.mxu0 0.0
      %3443 = vmatpush2.msra.mxu0 %v2926
      %3444 = vmatprep.subr.mxu0 0.0
      %3445 = vmatpush2.msra.mxu0 %v2925
      %3446 = vmatprep.subr.mxu0 0.0
      %3447 = vmatpush2.msra.mxu0 %v2924
      %3448 = vmatprep.subr.mxu0 0.0
      %3449 = vmatpush2.msra.mxu0 %v2923
      %3450 = vmatprep.subr.mxu0 0.0
      %3451 = vmatpush2.msra.mxu0 %v2922
      %3452 = vmatprep.subr.mxu0 0.0
      %3453 = vmatpush2.msra.mxu0 %v2921
      %3454 = vmatprep.subr.mxu0 0.0
      %3455 = vmatpush2.msra.mxu0 %v2920
      %3456 = vmatprep.subr.mxu0 0.0
      %3457 = vmatpush2.msra.mxu0 %v2919
      %3458 = vmatprep.subr.mxu0 0.0
      %3459 = vmatpush2.msra.mxu0 %v2918
      %3460 = vmatprep.mubr.f32.mxu0 %v3109
      %3461 = vmatmul.mubr.f32.gmra.mxu0 %v3108
      %v3462 = vpop.f32.mrf.mxu0
      %v3463 = vadd.f32 %v3393, %v3462
      %v3464 = vpop.f32.mrf.mxu0
      %3465 = vdwg.mxu0
      %3466 = vmatprep.subr.mxu0 0.0
      %3467 = vmatpush1.msra.mxu0 %v2949
      %3468 = vmatprep.subr.mxu0 0.0
      %3469 = vmatpush1.msra.mxu0 %v2948
      %3470 = vmatprep.subr.mxu0 0.0
      %3471 = vmatpush1.msra.mxu0 %v2947
      %3472 = vmatprep.subr.mxu0 0.0
      %3473 = vmatpush1.msra.mxu0 %v2946
      %3474 = vmatprep.subr.mxu0 0.0
      %3475 = vmatpush1.msra.mxu0 %v2945
      %3476 = vmatprep.subr.mxu0 0.0
      %3477 = vmatpush1.msra.mxu0 %v2944
      %3478 = vmatprep.subr.mxu0 0.0
      %3479 = vmatpush1.msra.mxu0 %v2943
      %3480 = vmatprep.subr.mxu0 0.0
      %3481 = vmatpush1.msra.mxu0 %v2942
      %3482 = vmatprep.subr.mxu0 0.0
      %3483 = vmatpush1.msra.mxu0 %v2941
      %3484 = vmatprep.subr.mxu0 0.0
      %3485 = vmatpush1.msra.mxu0 %v2940
      %3486 = vmatprep.subr.mxu0 0.0
      %3487 = vmatpush1.msra.mxu0 %v2939
      %3488 = vmatprep.subr.mxu0 0.0
      %3489 = vmatpush1.msra.mxu0 %v2938
      %3490 = vmatprep.subr.mxu0 0.0
      %3491 = vmatpush1.msra.mxu0 %v2937
      %3492 = vmatprep.subr.mxu0 0.0
      %3493 = vmatpush1.msra.mxu0 %v2936
      %3494 = vmatprep.subr.mxu0 0.0
      %3495 = vmatpush1.msra.mxu0 %v2935
      %3496 = vmatprep.subr.mxu0 0.0
      %3497 = vmatpush1.msra.mxu0 %v2934
      %3498 = vmatprep.subr.mxu0 0.0
      %3499 = vmatpush2.msra.mxu0 %v2965
      %3500 = vmatprep.subr.mxu0 0.0
      %3501 = vmatpush2.msra.mxu0 %v2964
      %3502 = vmatprep.subr.mxu0 0.0
      %3503 = vmatpush2.msra.mxu0 %v2963
      %3504 = vmatprep.subr.mxu0 0.0
      %3505 = vmatpush2.msra.mxu0 %v2962
      %3506 = vmatprep.subr.mxu0 0.0
      %3507 = vmatpush2.msra.mxu0 %v2961
      %3508 = vmatprep.subr.mxu0 0.0
      %3509 = vmatpush2.msra.mxu0 %v2960
      %3510 = vmatprep.subr.mxu0 0.0
      %3511 = vmatpush2.msra.mxu0 %v2959
      %3512 = vmatprep.subr.mxu0 0.0
      %3513 = vmatpush2.msra.mxu0 %v2958
      %3514 = vmatprep.subr.mxu0 0.0
      %3515 = vmatpush2.msra.mxu0 %v2957
      %3516 = vmatprep.subr.mxu0 0.0
      %3517 = vmatpush2.msra.mxu0 %v2956
      %3518 = vmatprep.subr.mxu0 0.0
      %3519 = vmatpush2.msra.mxu0 %v2955
      %3520 = vmatprep.subr.mxu0 0.0
      %3521 = vmatpush2.msra.mxu0 %v2954
      %3522 = vmatprep.subr.mxu0 0.0
      %3523 = vmatpush2.msra.mxu0 %v2953
      %3524 = vmatprep.subr.mxu0 0.0
      %3525 = vmatpush2.msra.mxu0 %v2952
      %3526 = vmatprep.subr.mxu0 0.0
      %3527 = vmatpush2.msra.mxu0 %v2951
      %3528 = vmatprep.subr.mxu0 0.0
      %3529 = vmatpush2.msra.mxu0 %v2950
      %3530 = vmatprep.mubr.f32.mxu0 %v3111
      %3531 = vmatmul.mubr.f32.gmra.mxu0 %v3110
      %v3532 = vpop.f32.mrf.mxu0
      %v3533 = vadd.f32 %v3463, %v3532
      %v3534 = vpop.f32.mrf.mxu0
      %3535 = vdwg.mxu0
      %3536 = vmatprep.subr.mxu0 0.0
      %3537 = vmatpush1.msra.mxu0 %v2981
      %3538 = vmatprep.subr.mxu0 0.0
      %3539 = vmatpush1.msra.mxu0 %v2980
      %3540 = vmatprep.subr.mxu0 0.0
      %3541 = vmatpush1.msra.mxu0 %v2979
      %3542 = vmatprep.subr.mxu0 0.0
      %3543 = vmatpush1.msra.mxu0 %v2978
      %3544 = vmatprep.subr.mxu0 0.0
      %3545 = vmatpush1.msra.mxu0 %v2977
      %3546 = vmatprep.subr.mxu0 0.0
      %3547 = vmatpush1.msra.mxu0 %v2976
      %3548 = vmatprep.subr.mxu0 0.0
      %3549 = vmatpush1.msra.mxu0 %v2975
      %3550 = vmatprep.subr.mxu0 0.0
      %3551 = vmatpush1.msra.mxu0 %v2974
      %3552 = vmatprep.subr.mxu0 0.0
      %3553 = vmatpush1.msra.mxu0 %v2973
      %3554 = vmatprep.subr.mxu0 0.0
      %3555 = vmatpush1.msra.mxu0 %v2972
      %3556 = vmatprep.subr.mxu0 0.0
      %3557 = vmatpush1.msra.mxu0 %v2971
      %3558 = vmatprep.subr.mxu0 0.0
      %3559 = vmatpush1.msra.mxu0 %v2970
      %3560 = vmatprep.subr.mxu0 0.0
      %3561 = vmatpush1.msra.mxu0 %v2969
      %3562 = vmatprep.subr.mxu0 0.0
      %3563 = vmatpush1.msra.mxu0 %v2968
      %3564 = vmatprep.subr.mxu0 0.0
      %3565 = vmatpush1.msra.mxu0 %v2967
      %3566 = vmatprep.subr.mxu0 0.0
      %3567 = vmatpush1.msra.mxu0 %v2966
      %3568 = vmatprep.subr.mxu0 0.0
      %3569 = vmatpush2.msra.mxu0 %v2997
      %3570 = vmatprep.subr.mxu0 0.0
      %3571 = vmatpush2.msra.mxu0 %v2996
      %3572 = vmatprep.subr.mxu0 0.0
      %3573 = vmatpush2.msra.mxu0 %v2995
      %3574 = vmatprep.subr.mxu0 0.0
      %3575 = vmatpush2.msra.mxu0 %v2994
      %3576 = vmatprep.subr.mxu0 0.0
      %3577 = vmatpush2.msra.mxu0 %v2993
      %3578 = vmatprep.subr.mxu0 0.0
      %3579 = vmatpush2.msra.mxu0 %v2992
      %3580 = vmatprep.subr.mxu0 0.0
      %3581 = vmatpush2.msra.mxu0 %v2991
      %3582 = vmatprep.subr.mxu0 0.0
      %3583 = vmatpush2.msra.mxu0 %v2990
      %3584 = vmatprep.subr.mxu0 0.0
      %3585 = vmatpush2.msra.mxu0 %v2989
      %3586 = vmatprep.subr.mxu0 0.0
      %3587 = vmatpush2.msra.mxu0 %v2988
      %3588 = vmatprep.subr.mxu0 0.0
      %3589 = vmatpush2.msra.mxu0 %v2987
      %3590 = vmatprep.subr.mxu0 0.0
      %3591 = vmatpush2.msra.mxu0 %v2986
      %3592 = vmatprep.subr.mxu0 0.0
      %3593 = vmatpush2.msra.mxu0 %v2985
      %3594 = vmatprep.subr.mxu0 0.0
      %3595 = vmatpush2.msra.mxu0 %v2984
      %3596 = vmatprep.subr.mxu0 0.0
      %3597 = vmatpush2.msra.mxu0 %v2983
      %3598 = vmatprep.subr.mxu0 0.0
      %3599 = vmatpush2.msra.mxu0 %v2982
      %3600 = vmatprep.mubr.f32.mxu0 %v3113
      %3601 = vmatmul.mubr.f32.gmra.mxu0 %v3112
      %v3602 = vpop.f32.mrf.mxu0
      %v3603 = vadd.f32 %v3533, %v3602
      %v3604 = vpop.f32.mrf.mxu0
      %3605 = vdwg.mxu0
      %3606 = vmatprep.subr.mxu0 0.0
      %3607 = vmatpush1.msra.mxu0 %v3013
      %3608 = vmatprep.subr.mxu0 0.0
      %3609 = vmatpush1.msra.mxu0 %v3012
      %3610 = vmatprep.subr.mxu0 0.0
      %3611 = vmatpush1.msra.mxu0 %v3011
      %3612 = vmatprep.subr.mxu0 0.0
      %3613 = vmatpush1.msra.mxu0 %v3010
      %3614 = vmatprep.subr.mxu0 0.0
      %3615 = vmatpush1.msra.mxu0 %v3009
      %3616 = vmatprep.subr.mxu0 0.0
      %3617 = vmatpush1.msra.mxu0 %v3008
      %3618 = vmatprep.subr.mxu0 0.0
      %3619 = vmatpush1.msra.mxu0 %v3007
      %3620 = vmatprep.subr.mxu0 0.0
      %3621 = vmatpush1.msra.mxu0 %v3006
      %3622 = vmatprep.subr.mxu0 0.0
      %3623 = vmatpush1.msra.mxu0 %v3005
      %3624 = vmatprep.subr.mxu0 0.0
      %3625 = vmatpush1.msra.mxu0 %v3004
      %3626 = vmatprep.subr.mxu0 0.0
      %3627 = vmatpush1.msra.mxu0 %v3003
      %3628 = vmatprep.subr.mxu0 0.0
      %3629 = vmatpush1.msra.mxu0 %v3002
      %3630 = vmatprep.subr.mxu0 0.0
      %3631 = vmatpush1.msra.mxu0 %v3001
      %3632 = vmatprep.subr.mxu0 0.0
      %3633 = vmatpush1.msra.mxu0 %v3000
      %3634 = vmatprep.subr.mxu0 0.0
      %3635 = vmatpush1.msra.mxu0 %v2999
      %3636 = vmatprep.subr.mxu0 0.0
      %3637 = vmatpush1.msra.mxu0 %v2998
      %3638 = vmatprep.subr.mxu0 0.0
      %3639 = vmatpush2.msra.mxu0 %v3029
      %3640 = vmatprep.subr.mxu0 0.0
      %3641 = vmatpush2.msra.mxu0 %v3028
      %3642 = vmatprep.subr.mxu0 0.0
      %3643 = vmatpush2.msra.mxu0 %v3027
      %3644 = vmatprep.subr.mxu0 0.0
      %3645 = vmatpush2.msra.mxu0 %v3026
      %3646 = vmatprep.subr.mxu0 0.0
      %3647 = vmatpush2.msra.mxu0 %v3025
      %3648 = vmatprep.subr.mxu0 0.0
      %3649 = vmatpush2.msra.mxu0 %v3024
      %3650 = vmatprep.subr.mxu0 0.0
      %3651 = vmatpush2.msra.mxu0 %v3023
      %3652 = vmatprep.subr.mxu0 0.0
      %3653 = vmatpush2.msra.mxu0 %v3022
      %3654 = vmatprep.subr.mxu0 0.0
      %3655 = vmatpush2.msra.mxu0 %v3021
      %3656 = vmatprep.subr.mxu0 0.0
      %3657 = vmatpush2.msra.mxu0 %v3020
      %3658 = vmatprep.subr.mxu0 0.0
      %3659 = vmatpush2.msra.mxu0 %v3019
      %3660 = vmatprep.subr.mxu0 0.0
      %3661 = vmatpush2.msra.mxu0 %v3018
      %3662 = vmatprep.subr.mxu0 0.0
      %3663 = vmatpush2.msra.mxu0 %v3017
      %3664 = vmatprep.subr.mxu0 0.0
      %3665 = vmatpush2.msra.mxu0 %v3016
      %3666 = vmatprep.subr.mxu0 0.0
      %3667 = vmatpush2.msra.mxu0 %v3015
      %3668 = vmatprep.subr.mxu0 0.0
      %3669 = vmatpush2.msra.mxu0 %v3014
      %3670 = vmatprep.mubr.f32.mxu0 %v3115
      %3671 = vmatmul.mubr.f32.gmra.mxu0 %v3114
      %v3672 = vpop.f32.mrf.mxu0
      %v3673 = vadd.f32 %v3603, %v3672
      %v3674 = vpop.f32.mrf.mxu0
      %3675 = vdwg.mxu0
      %v3676 = vld [vmem:[%s4] sm:$0xff]
      %v3677 = vld [vmem:[%s5] sm:$0x1]
      %v3679 = vlaneseq
      %v3680 = vshrl.u32 %v3679, 7
      %v3681 = vsub.s32 0, %v3680
      %v3682 = vrot.slane %v3677, %v3681
      %vm3684 = vcmask 64512
      %v3686 = vsel %vm3684, %v3673, 0
      %3688 = vmatprep.subr.mxu0 0.0
      %3689 = vmatpush1.msra.mxu0 0.0
      %3690 = vmatprep.subr.mxu0 0.0
      %3691 = vmatpush1.msra.mxu0 0.0
      %3692 = vmatprep.subr.mxu0 0.0
      %3693 = vmatpush1.msra.mxu0 0.0
      %3694 = vmatprep.subr.mxu0 0.0
      %3695 = vmatpush1.msra.mxu0 0.0
      %3696 = vmatprep.subr.mxu0 0.0
      %3697 = vmatpush1.msra.mxu0 0.0
      %3698 = vmatprep.subr.mxu0 0.0
      %3699 = vmatpush1.msra.mxu0 0.0
      %3700 = vmatprep.subr.mxu0 0.0
      %3701 = vmatpush1.msra.mxu0 0.0
      %3702 = vmatprep.subr.mxu0 0.0
      %3703 = vmatpush1.msra.mxu0 0.0
      %3704 = vmatprep.subr.mxu0 0.0
      %3705 = vmatpush1.msra.mxu0 0.0
      %3706 = vmatprep.subr.mxu0 0.0
      %3707 = vmatpush1.msra.mxu0 0.0
      %3708 = vmatprep.subr.mxu0 0.0
      %3709 = vmatpush1.msra.mxu0 0.0
      %3710 = vmatprep.subr.mxu0 0.0
      %3711 = vmatpush1.msra.mxu0 0.0
      %3712 = vmatprep.subr.mxu0 0.0
      %3713 = vmatpush1.msra.mxu0 0.0
      %3714 = vmatprep.subr.mxu0 0.0
      %3715 = vmatpush1.msra.mxu0 0.0
      %3716 = vmatprep.subr.mxu0 0.0
      %3717 = vmatpush1.msra.mxu0 0.0
      %3718 = vmatprep.subr.mxu0 0.0
      %3719 = vmatpush1.msra.mxu0 %v3676
      %3720 = vmatprep.subr.mxu0 0.0
      %3721 = vmatpush2.msra.mxu0 0.0
      %3722 = vmatprep.subr.mxu0 0.0
      %3723 = vmatpush2.msra.mxu0 0.0
      %3724 = vmatprep.subr.mxu0 0.0
      %3725 = vmatpush2.msra.mxu0 0.0
      %3726 = vmatprep.subr.mxu0 0.0
      %3727 = vmatpush2.msra.mxu0 0.0
      %3728 = vmatprep.subr.mxu0 0.0
      %3729 = vmatpush2.msra.mxu0 0.0
      %3730 = vmatprep.subr.mxu0 0.0
      %3731 = vmatpush2.msra.mxu0 0.0
      %3732 = vmatprep.subr.mxu0 0.0
      %3733 = vmatpush2.msra.mxu0 0.0
      %3734 = vmatprep.subr.mxu0 0.0
      %3735 = vmatpush2.msra.mxu0 0.0
      %3736 = vmatprep.subr.mxu0 0.0
      %3737 = vmatpush2.msra.mxu0 0.0
      %3738 = vmatprep.subr.mxu0 0.0
      %3739 = vmatpush2.msra.mxu0 0.0
      %3740 = vmatprep.subr.mxu0 0.0
      %3741 = vmatpush2.msra.mxu0 0.0
      %3742 = vmatprep.subr.mxu0 0.0
      %3743 = vmatpush2.msra.mxu0 0.0
      %3744 = vmatprep.subr.mxu0 0.0
      %3745 = vmatpush2.msra.mxu0 0.0
      %3746 = vmatprep.subr.mxu0 0.0
      %3747 = vmatpush2.msra.mxu0 0.0
      %3748 = vmatprep.subr.mxu0 0.0
      %3749 = vmatpush2.msra.mxu0 0.0
      %3750 = vmatprep.subr.mxu0 0.0
      %3751 = vmatpush2.msra.mxu0 0.0
      %3752 = vmatprep.mubr.f32.mxu0 0.0
      %3753 = vmatmul.mubr.f32.gmra.mxu0 %v3686
      %v3754 = vpop.f32.mrf.mxu0
      %v3755 = vadd.f32 %v3682, %v3754
      %v3756 = vpop.f32.mrf.mxu0
      %3757 = vdwg.mxu0
      %v3758 = vld [vmem:[%s399] sm:$0xff]
      %v3759 = vld [vmem:[%s6] sm:$0xff]
      %v3760 = vld [vmem:[%s6 + $0x8] sm:$0xff]
      %v3761 = vld [vmem:[%s6 + $0x10] sm:$0xff]
      %v3762 = vld [vmem:[%s6 + $0x18] sm:$0xff]
      %v3763 = vld [vmem:[%s7] sm:$0x1]
      %v3765 = vlaneseq
      %v3766 = vshrl.u32 %v3765, 7
      %v3767 = vsub.s32 0, %v3766
      %v3768 = vrot.slane %v3763, %v3767
      %vm3770 = vcmask 261120
      %v3772 = vsel %vm3770, %v3758, 0
      %3774 = vmatprep.subr.mxu0 0.0
      %3775 = vmatpush1.msra.mxu0 0.0
      %3776 = vmatprep.subr.mxu0 0.0
      %3777 = vmatpush1.msra.mxu0 0.0
      %3778 = vmatprep.subr.mxu0 0.0
      %3779 = vmatpush1.msra.mxu0 0.0
      %3780 = vmatprep.subr.mxu0 0.0
      %3781 = vmatpush1.msra.mxu0 0.0
      %3782 = vmatprep.subr.mxu0 0.0
      %3783 = vmatpush1.msra.mxu0 0.0
      %3784 = vmatprep.subr.mxu0 0.0
      %3785 = vmatpush1.msra.mxu0 0.0
      %3786 = vmatprep.subr.mxu0 0.0
      %3787 = vmatpush1.msra.mxu0 0.0
      %3788 = vmatprep.subr.mxu0 0.0
      %3789 = vmatpush1.msra.mxu0 0.0
      %3790 = vmatprep.subr.mxu0 0.0
      %3791 = vmatpush1.msra.mxu0 0.0
      %3792 = vmatprep.subr.mxu0 0.0
      %3793 = vmatpush1.msra.mxu0 0.0
      %3794 = vmatprep.subr.mxu0 0.0
      %3795 = vmatpush1.msra.mxu0 0.0
      %3796 = vmatprep.subr.mxu0 0.0
      %3797 = vmatpush1.msra.mxu0 0.0
      %3798 = vmatprep.subr.mxu0 0.0
      %3799 = vmatpush1.msra.mxu0 %v3762
      %3800 = vmatprep.subr.mxu0 0.0
      %3801 = vmatpush1.msra.mxu0 %v3761
      %3802 = vmatprep.subr.mxu0 0.0
      %3803 = vmatpush1.msra.mxu0 %v3760
      %3804 = vmatprep.subr.mxu0 0.0
      %3805 = vmatpush1.msra.mxu0 %v3759
      %3806 = vmatprep.subr.mxu0 0.0
      %3807 = vmatpush2.msra.mxu0 0.0
      %3808 = vmatprep.subr.mxu0 0.0
      %3809 = vmatpush2.msra.mxu0 0.0
      %3810 = vmatprep.subr.mxu0 0.0
      %3811 = vmatpush2.msra.mxu0 0.0
      %3812 = vmatprep.subr.mxu0 0.0
      %3813 = vmatpush2.msra.mxu0 0.0
      %3814 = vmatprep.subr.mxu0 0.0
      %3815 = vmatpush2.msra.mxu0 0.0
      %3816 = vmatprep.subr.mxu0 0.0
      %3817 = vmatpush2.msra.mxu0 0.0
      %3818 = vmatprep.subr.mxu0 0.0
      %3819 = vmatpush2.msra.mxu0 0.0
      %3820 = vmatprep.subr.mxu0 0.0
      %3821 = vmatpush2.msra.mxu0 0.0
      %3822 = vmatprep.subr.mxu0 0.0
      %3823 = vmatpush2.msra.mxu0 0.0
      %3824 = vmatprep.subr.mxu0 0.0
      %3825 = vmatpush2.msra.mxu0 0.0
      %3826 = vmatprep.subr.mxu0 0.0
      %3827 = vmatpush2.msra.mxu0 0.0
      %3828 = vmatprep.subr.mxu0 0.0
      %3829 = vmatpush2.msra.mxu0 0.0
      %3830 = vmatprep.subr.mxu0 0.0
      %3831 = vmatpush2.msra.mxu0 0.0
      %3832 = vmatprep.subr.mxu0 0.0
      %3833 = vmatpush2.msra.mxu0 0.0
      %3834 = vmatprep.subr.mxu0 0.0
      %3835 = vmatpush2.msra.mxu0 0.0
      %3836 = vmatprep.subr.mxu0 0.0
      %3837 = vmatpush2.msra.mxu0 0.0
      %3838 = vmatprep.mubr.f32.mxu0 0.0
      %3839 = vmatmul.mubr.f32.gmra.mxu0 %v3772
      %v3840 = vpop.f32.mrf.mxu0
      %v3841 = vadd.f32 %v3768, %v3840
      %v3842 = vpop.f32.mrf.mxu0
      %3843 = vdwg.mxu0
      %v3844 = vmax.f32 %v3841, 0.0
      %v3845 = vld [vmem:[%s8] sm:$0xff]
      %v3846 = vld [vmem:[%s8 + $0x8] sm:$0xff]
      %v3847 = vld [vmem:[%s8 + $0x10] sm:$0xff]
      %v3848 = vld [vmem:[%s8 + $0x18] sm:$0xff]
      %v3849 = vld [vmem:[%s9] sm:$0xff]
      %v3850 = vld [vmem:[%s9 + $0x8] sm:$0xff]
      %v3851 = vld [vmem:[%s9 + $0x10] sm:$0xff]
      %v3852 = vld [vmem:[%s9 + $0x18] sm:$0xff]
      %v3854 = vsel %vm3770, %v3844, 0
      %3856 = vmatprep.subr.mxu0 0.0
      %3857 = vmatpush1.msra.mxu0 0.0
      %3858 = vmatprep.subr.mxu0 0.0
      %3859 = vmatpush1.msra.mxu0 0.0
      %3860 = vmatprep.subr.mxu0 0.0
      %3861 = vmatpush1.msra.mxu0 0.0
      %3862 = vmatprep.subr.mxu0 0.0
      %3863 = vmatpush1.msra.mxu0 0.0
      %3864 = vmatprep.subr.mxu0 0.0
      %3865 = vmatpush1.msra.mxu0 0.0
      %3866 = vmatprep.subr.mxu0 0.0
      %3867 = vmatpush1.msra.mxu0 0.0
      %3868 = vmatprep.subr.mxu0 0.0
      %3869 = vmatpush1.msra.mxu0 0.0
      %3870 = vmatprep.subr.mxu0 0.0
      %3871 = vmatpush1.msra.mxu0 0.0
      %3872 = vmatprep.subr.mxu0 0.0
      %3873 = vmatpush1.msra.mxu0 0.0
      %3874 = vmatprep.subr.mxu0 0.0
      %3875 = vmatpush1.msra.mxu0 0.0
      %3876 = vmatprep.subr.mxu0 0.0
      %3877 = vmatpush1.msra.mxu0 0.0
      %3878 = vmatprep.subr.mxu0 0.0
      %3879 = vmatpush1.msra.mxu0 0.0
      %3880 = vmatprep.subr.mxu0 0.0
      %3881 = vmatpush1.msra.mxu0 %v3852
      %3882 = vmatprep.subr.mxu0 0.0
      %3883 = vmatpush1.msra.mxu0 %v3851
      %3884 = vmatprep.subr.mxu0 0.0
      %3885 = vmatpush1.msra.mxu0 %v3850
      %3886 = vmatprep.subr.mxu0 0.0
      %3887 = vmatpush1.msra.mxu0 %v3849
      %3888 = vmatprep.subr.mxu0 0.0
      %3889 = vmatpush2.msra.mxu0 0.0
      %3890 = vmatprep.subr.mxu0 0.0
      %3891 = vmatpush2.msra.mxu0 0.0
      %3892 = vmatprep.subr.mxu0 0.0
      %3893 = vmatpush2.msra.mxu0 0.0
      %3894 = vmatprep.subr.mxu0 0.0
      %3895 = vmatpush2.msra.mxu0 0.0
      %3896 = vmatprep.subr.mxu0 0.0
      %3897 = vmatpush2.msra.mxu0 0.0
      %3898 = vmatprep.subr.mxu0 0.0
      %3899 = vmatpush2.msra.mxu0 0.0
      %3900 = vmatprep.subr.mxu0 0.0
      %3901 = vmatpush2.msra.mxu0 0.0
      %3902 = vmatprep.subr.mxu0 0.0
      %3903 = vmatpush2.msra.mxu0 0.0
      %3904 = vmatprep.subr.mxu0 0.0
      %3905 = vmatpush2.msra.mxu0 0.0
      %3906 = vmatprep.subr.mxu0 0.0
      %3907 = vmatpush2.msra.mxu0 0.0
      %3908 = vmatprep.subr.mxu0 0.0
      %3909 = vmatpush2.msra.mxu0 0.0
      %3910 = vmatprep.subr.mxu0 0.0
      %3911 = vmatpush2.msra.mxu0 0.0
      %3912 = vmatprep.subr.mxu0 0.0
      %3913 = vmatpush2.msra.mxu0 0.0
      %3914 = vmatprep.subr.mxu0 0.0
      %3915 = vmatpush2.msra.mxu0 0.0
      %3916 = vmatprep.subr.mxu0 0.0
      %3917 = vmatpush2.msra.mxu0 0.0
      %3918 = vmatprep.subr.mxu0 0.0
      %3919 = vmatpush2.msra.mxu0 0.0
      %3920 = vmatprep.mubr.f32.mxu0 0.0
      %3921 = vmatmul.mubr.f32.gmra.mxu0 %v3854
      %v3922 = vpop.f32.mrf.mxu0
      %v3923 = vadd.f32 0.0, %v3922
      %v3924 = vpop.f32.mrf.mxu0
      %3925 = vdwg.mxu0
      %v3927 = vsel %vm3770, %v3755, 0
      %3929 = vmatprep.subr.mxu0 0.0
      %3930 = vmatpush1.msra.mxu0 0.0
      %3931 = vmatprep.subr.mxu0 0.0
      %3932 = vmatpush1.msra.mxu0 0.0
      %3933 = vmatprep.subr.mxu0 0.0
      %3934 = vmatpush1.msra.mxu0 0.0
      %3935 = vmatprep.subr.mxu0 0.0
      %3936 = vmatpush1.msra.mxu0 0.0
      %3937 = vmatprep.subr.mxu0 0.0
      %3938 = vmatpush1.msra.mxu0 0.0
      %3939 = vmatprep.subr.mxu0 0.0
      %3940 = vmatpush1.msra.mxu0 0.0
      %3941 = vmatprep.subr.mxu0 0.0
      %3942 = vmatpush1.msra.mxu0 0.0
      %3943 = vmatprep.subr.mxu0 0.0
      %3944 = vmatpush1.msra.mxu0 0.0
      %3945 = vmatprep.subr.mxu0 0.0
      %3946 = vmatpush1.msra.mxu0 0.0
      %3947 = vmatprep.subr.mxu0 0.0
      %3948 = vmatpush1.msra.mxu0 0.0
      %3949 = vmatprep.subr.mxu0 0.0
      %3950 = vmatpush1.msra.mxu0 0.0
      %3951 = vmatprep.subr.mxu0 0.0
      %3952 = vmatpush1.msra.mxu0 0.0
      %3953 = vmatprep.subr.mxu0 0.0
      %3954 = vmatpush1.msra.mxu0 %v3848
      %3955 = vmatprep.subr.mxu0 0.0
      %3956 = vmatpush1.msra.mxu0 %v3847
      %3957 = vmatprep.subr.mxu0 0.0
      %3958 = vmatpush1.msra.mxu0 %v3846
      %3959 = vmatprep.subr.mxu0 0.0
      %3960 = vmatpush1.msra.mxu0 %v3845
      %3961 = vmatprep.subr.mxu0 0.0
      %3962 = vmatpush2.msra.mxu0 0.0
      %3963 = vmatprep.subr.mxu0 0.0
      %3964 = vmatpush2.msra.mxu0 0.0
      %3965 = vmatprep.subr.mxu0 0.0
      %3966 = vmatpush2.msra.mxu0 0.0
      %3967 = vmatprep.subr.mxu0 0.0
      %3968 = vmatpush2.msra.mxu0 0.0
      %3969 = vmatprep.subr.mxu0 0.0
      %3970 = vmatpush2.msra.mxu0 0.0
      %3971 = vmatprep.subr.mxu0 0.0
      %3972 = vmatpush2.msra.mxu0 0.0
      %3973 = vmatprep.subr.mxu0 0.0
      %3974 = vmatpush2.msra.mxu0 0.0
      %3975 = vmatprep.subr.mxu0 0.0
      %3976 = vmatpush2.msra.mxu0 0.0
      %3977 = vmatprep.subr.mxu0 0.0
      %3978 = vmatpush2.msra.mxu0 0.0
      %3979 = vmatprep.subr.mxu0 0.0
      %3980 = vmatpush2.msra.mxu0 0.0
      %3981 = vmatprep.subr.mxu0 0.0
      %3982 = vmatpush2.msra.mxu0 0.0
      %3983 = vmatprep.subr.mxu0 0.0
      %3984 = vmatpush2.msra.mxu0 0.0
      %3985 = vmatprep.subr.mxu0 0.0
      %3986 = vmatpush2.msra.mxu0 0.0
      %3987 = vmatprep.subr.mxu0 0.0
      %3988 = vmatpush2.msra.mxu0 0.0
      %3989 = vmatprep.subr.mxu0 0.0
      %3990 = vmatpush2.msra.mxu0 0.0
      %3991 = vmatprep.subr.mxu0 0.0
      %3992 = vmatpush2.msra.mxu0 0.0
      %3993 = vmatprep.mubr.f32.mxu0 0.0
      %3994 = vmatmul.mubr.f32.gmra.mxu0 %v3927
      %v3995 = vpop.f32.mrf.mxu0
      %v3996 = vadd.f32 %v3923, %v3995
      %v3997 = vpop.f32.mrf.mxu0
      %3998 = vdwg.mxu0
      %v3999 = vld [vmem:[%s10] sm:$0x1]
      %v4001 = vlaneseq
      %v4002 = vshrl.u32 %v4001, 7
      %v4003 = vsub.s32 0, %v4002
      %v4004 = vrot.slane %v3999, %v4003
      %v4006 = vadd.f32 %v3996, %v4004
      %4007 = vst [vmem:[%s403] sm:$0xff] %v4006
      %p4008 = scmp.lt.s32.totalorder %s22, 1
      %s4009 = scalar_select %p4008, %s22, 1
      %s4010 = smul.addr %s4009, 8
      %s4011 = scalar_lea.vmem %s11, %s4010
      // Predicated region
      $region65: #{avsr_forward.1} parent=63 // pred_check
        %p4012 = pneg %p281
      $region66: #{avsr_forward.1} parent=63 // pred_check_branch
        %4014 = sbr.rel (%p4012) target = $region68
      $region67: #{avsr_forward.1} parent=63 // pred_region
        _
      $region68: #{avsr_forward.1} parent=63 // pred_fallthru
        _
    $region64: #{avsr_forward.1} parent=5 // pred_fallthru
      _
    %p4015 = scmp.le.s32.totalorder 2, %s17
    // Predicated region
    $region69: #{avsr_forward.1} parent=5 // pred_check
      %p4016 = pneg %p4015
    $region70: #{avsr_forward.1} parent=5 // pred_check_branch
      %4018 = sbr.rel (%p4016) target = $region72
    $region71: #{avsr_forward.1} parent=5 // pred_region
      %s4019 = ssub.s32 %s17, 2
      // Predicated region
      $region73: #{avsr_forward.1} parent=71 // pred_check
        %p4020 = pneg %p287
      $region74: #{avsr_forward.1} parent=71 // pred_check_branch
        %4022 = sbr.rel (%p4020) target = $region76
      $region75: #{avsr_forward.1} parent=71 // pred_region
        %p4023 = scmp.lt.s32.totalorder %s23, 1
        %s4024 = scalar_select %p4023, %s23, 1
        %s4025 = smul.addr %s4024, 8
        %s4026 = scalar_lea.vmem %s11, %s4025
      $region76: #{avsr_forward.1} parent=71 // pred_fallthru
        _
    $region72: #{avsr_forward.1} parent=5 // pred_fallthru
      _
  $region6: #{avsr_forward.1} parent=0 // loop_footer
    %s21 = sadd.s32 1, %s17
  $region7: #{avsr_forward.1} parent=0 // loop_footer_branch
    %16 = sbr.rel target = $region3
  $region8: #{avsr_forward.1} parent=0 // loop_exit
    _

</llo_original>
